<compile_context>
chip_gen: v7x
topology: tpu7x:2x2x1
jax: 0.10.0
libtpu: 0.0.40
codegen_flags: <defaults>
</compile_context>

<pallas_src>
import jax
import jax.numpy as jnp
from jax.experimental import pallas as pl
from jax.experimental.pallas import tpu as pltpu


def _round_up(x, m):
    return (x + m - 1) // m * m


def _pick_row_tile(h, w, max_pix=2048):
    """Largest row-tile height dividing H, sublane-friendly, ~max_pix pixels."""
    cands = [t for t in range(1, h + 1)
             if h % t == 0 and ((t * w) % 8 == 0 or t == h)]
    small = [t for t in cands if t * w <= max_pix]
    return max(small) if small else min(cands)


def _pick_seq_tile(n, cap=512):
    """Largest tile dividing n, sublane-friendly, <= cap."""
    cands = [t for t in range(1, n + 1) if n % t == 0 and (t % 8 == 0 or t == n)]
    small = [t for t in cands if t <= cap]
    return max(small) if small else min(cands)


def _vmem_cap_bytes():
    # Generation-aware ceiling with headroom for Mosaic-internal scratch:
    # ~52 MiB on v7x (64 MiB physical), ~104 MiB on v5e/v6e (128 MiB physical).
    try:
        cap = int(pltpu.get_tpu_info().vmem_capacity_bytes)
    except Exception:
        cap = 64 * 1024 * 1024
    return (cap * 13) // 16


def _clamp_vmem(need_bytes):
    return int(min(max(2 * need_bytes, 32 * 1024 * 1024), _vmem_cap_bytes()))


# --------------------------------------------------------------------------- #
# Pass 1: conv1(3x3)+PReLU, conv2(1x1)+PReLU, branch-specific 1x1 projections #
# --------------------------------------------------------------------------- #
def feature_kernel(xs_ref, w1_ref, b1_ref, a1_ref, w2_ref, b2_ref, a2_ref,
                   wc1_ref, wc23_ref, c1_ref, d1_ref, d2_ref, d0_ref):
    hp2 = xs_ref.shape[2] // 2          # row-tile height + 2 (halo)
    wp2 = xs_ref.shape[3]               # image width + 2 (halo)
    cin = xs_ref.shape[4]
    th, tw = hp2 - 2, wp2 - 2
    mt = th * tw                        # pixels in this row tile
    chp = wc1_ref.shape[1]

    w1 = w1_ref[...]                    # (9, Cin, Cfp) bf16
    b1, a1 = b1_ref[...], a1_ref[...]   # (1, Cfp) f32
    b2, a2 = b2_ref[...], a2_ref[...]

    x = xs_ref[...][0, 0]               # (2*(th+2), W+2, Cin) bf16
    x_rgb, x_dep = x[:hp2], x[hp2:]     # halo tiles per branch

    def conv_branch(xh):
        # conv1: 3x3 conv as 9 shifted (mt, Cin) @ (Cin, Cfp) matmuls, f32 acc.
        acc = None
        for t in range(9):
            dy, dx = divmod(t, 3)
            patch = xh[dy:dy + th, dx:dx + tw, :].reshape(mt, cin)
            part = jnp.dot(patch, w1[t], preferred_element_type=jnp.float32)
            acc = part if acc is None else acc + part
        y = acc + b1
        y = jnp.where(y >= 0.0, y, a1 * y)                        # PReLU (f32)
        # conv2: 1x1 conv == channel matmul (+bias, +PReLU)
        y = jnp.dot(y.astype(jnp.bfloat16), w2_ref[...],
                    preferred_element_type=jnp.float32) + b2
        return jnp.where(y >= 0.0, y, a2 * y)                     # (mt, Cfp) f32

    c0 = conv_branch(x_rgb)             # rgb features
    d0 = conv_branch(x_dep)             # depth features

    # Split projections (no wasted MXU work): wc1 on rgb, [wc2|wc3] on depth.
    c1 = jnp.dot(c0.astype(jnp.bfloat16), wc1_ref[...],
                 preferred_element_type=jnp.float32)              # (mt, chp)
    d12 = jnp.dot(d0.astype(jnp.bfloat16), wc23_ref[...],
                  preferred_element_type=jnp.float32)             # (mt, 2*chp)

    c1_ref[...] = c1[None].astype(jnp.bfloat16)
    d1_ref[...] = d12[:, :chp][None].astype(jnp.bfloat16)
    d2_ref[...] = d12[:, chp:][None].astype(jnp.bfloat16)
    d0_ref[...] = d0[None].astype(jnp.bfloat16)


# --------------------------------------------------------------------------- #
# Pass 2: flash-style spatial self-attention + wc4 projection + residual      #
# --------------------------------------------------------------------------- #
def attention_kernel(d1_ref, d2_ref, c1_ref, d0_ref, wc4_ref, out_ref,
                     m_sc, l_sc, acc_sc):
    kb = pl.program_id(2)

    @pl.when(kb == 0)
    def _():
        m_sc[...] = jnp.full(m_sc.shape, -jnp.inf, jnp.float32)
        l_sc[...] = jnp.zeros(l_sc.shape, jnp.float32)
        acc_sc[...] = jnp.zeros(acc_sc.shape, jnp.float32)

    q = d1_ref[0]                                   # (tq, chp) bf16  queries
    k = d2_ref[0]                                   # (tk, chp) bf16  keys
    v = c1_ref[0]                                   # (tk, chp) bf16  values

    # logits[q, k] = <d1[q, :], d2[k, :]>  (contract the channel dim on MXU)
    s = jax.lax.dot_general(q, k, (((1,), (1,)), ((), ())),
                            preferred_element_type=jnp.float32)   # (tq, tk)

    m_prev = m_sc[...]
    m_new = jnp.maximum(m_prev, jnp.max(s, axis=-1, keepdims=True))
    alpha = jnp.exp(m_prev - m_new)
    p = jnp.exp(s - m_new)
    l_sc[...] = alpha * l_sc[...] + jnp.sum(p, axis=-1, keepdims=True)
    acc_sc[...] = alpha * acc_sc[...] + jnp.dot(
        p.astype(jnp.bfloat16), v, preferred_element_type=jnp.float32)
    m_sc[...] = m_new

    @pl.when(kb == pl.num_programs(2) - 1)
    def _():
        guided = acc_sc[...] / l_sc[...]            # exact softmax normalization
        out = jnp.dot(guided.astype(jnp.bfloat16), wc4_ref[...],
                      preferred_element_type=jnp.float32)
        out = out + d0_ref[0].astype(jnp.float32)   # residual with depth features
        out_ref[...] = out[None].astype(out_ref.dtype)


# --------------------------------------------------------------------------- #
# Wrapper                                                                      #
# --------------------------------------------------------------------------- #
def lde_forward(rgb, depth, params):
    b, h, w, cin = rgb.shape
    cf = params["w2"].shape[1]
    ch = params["wc1"].shape[1]
    hw = h * w

    cfp = _round_up(cf, 128)            # num_filter, lane-padded
    chp = _round_up(ch, 128)            # num_filter // 2, lane-padded

    th = _pick_row_tile(h, w)
    n_r = h // th
    mt = th * w

    # ---- halo-padded, row-tiled, branch-stacked NHWC input (no im2col in HBM).
    def row_windows(x):
        xp = jnp.pad(x, ((0, 0), (1, 1), (1, 1), (0, 0)))
        return jnp.stack([xp[:, r * th:r * th + th + 2] for r in range(n_r)],
                         axis=1)                                  # (B, n_r, th+2, W+2, C)

    xs = jnp.concatenate([row_windows(rgb), row_windows(depth)], axis=2)
    xs = xs.astype(jnp.bfloat16)        # (B, n_r, 2*(th+2), W+2, Cin)

    # ---- weights: pad channel dims to 128 lanes, bf16 matmul operands.
    w1 = jnp.pad(params["w1"].reshape(9, cin, cf),
                 ((0, 0), (0, 0), (0, cfp - cf))).astype(jnp.bfloat16)
    w2 = jnp.pad(params["w2"], ((0, cfp - cf), (0, cfp - cf))).astype(jnp.bfloat16)
    b1 = jnp.pad(params["b1"], ((0, 0), (0, cfp - cf)))
    a1 = jnp.pad(params["a1"], ((0, 0), (0, cfp - cf)))
    b2 = jnp.pad(params["b2"], ((0, 0), (0, cfp - cf)))
    a2 = jnp.pad(params["a2"], ((0, 0), (0, cfp - cf)))
    wc1 = jnp.pad(params["wc1"], ((0, cfp - cf), (0, chp - ch))).astype(jnp.bfloat16)
    wc23 = jnp.concatenate(
        [jnp.pad(params[k], ((0, cfp - cf), (0, chp - ch))) for k in ("wc2", "wc3")],
        axis=1).astype(jnp.bfloat16)                              # (Cfp, 2*chp)
    wc4 = jnp.pad(params["wc4"], ((0, chp - ch), (0, cfp - cf))).astype(jnp.bfloat16)

    # ---- pass 1: conv features + projections.
    zmap2 = lambda bi, ri: (0, 0)
    feat_vmem = _clamp_vmem(
        2 * (2 * (th + 2) * (w + 2) * cin * 2
             + (9 * cin * cfp + cfp * cfp + 3 * cfp * chp) * 2 + 4 * cfp * 4
             + (3 * mt * chp + mt * cfp) * 2)
        + 8 * mt * cfp * 4 + 3 * mt * chp * 4)

    c1a, d1a, d2a, d0a = pl.pallas_call(
        feature_kernel,
        out_shape=(jax.ShapeDtypeStruct((b, hw, chp), jnp.bfloat16),   # c1
                   jax.ShapeDtypeStruct((b, hw, chp), jnp.bfloat16),   # d1
                   jax.ShapeDtypeStruct((b, hw, chp), jnp.bfloat16),   # d2
                   jax.ShapeDtypeStruct((b, hw, cfp), jnp.bfloat16)),  # d0
        grid=(b, n_r),
        in_specs=[
            pl.BlockSpec((1, 1, 2 * (th + 2), w + 2, cin),
                         lambda bi, ri: (bi, ri, 0, 0, 0)),            # halo'd tile
            pl.BlockSpec((9, cin, cfp), lambda bi, ri: (0, 0, 0)),     # w1 taps
            pl.BlockSpec((1, cfp), zmap2),                             # b1
            pl.BlockSpec((1, cfp), zmap2),                             # a1
            pl.BlockSpec((cfp, cfp), zmap2),                           # w2
            pl.BlockSpec((1, cfp), zmap2),                             # b2
            pl.BlockSpec((1, cfp), zmap2),                             # a2
            pl.BlockSpec((cfp, chp), zmap2),                           # wc1
            pl.BlockSpec((cfp, 2 * chp), zmap2),                       # [wc2|wc3]
        ],
        out_specs=(
            pl.BlockSpec((1, mt, chp), lambda bi, ri: (bi, ri, 0)),
            pl.BlockSpec((1, mt, chp), lambda bi, ri: (bi, ri, 0)),
            pl.BlockSpec((1, mt, chp), lambda bi, ri: (bi, ri, 0)),
            pl.BlockSpec((1, mt, cfp), lambda bi, ri: (bi, ri, 0)),
        ),
        compiler_params=pltpu.CompilerParams(
            dimension_semantics=("parallel", "parallel"),
            vmem_limit_bytes=feat_vmem),
    )(xs, w1, b1, a1, w2, b2, a2, wc1, wc23)

    # ---- pass 2: flash-style attention + wc4 + residual.
    tq = _pick_seq_tile(hw)
    tk = _pick_seq_tile(hw)
    n_q, n_k = hw // tq, hw // tk

    attn_vmem = _clamp_vmem(
        2 * ((tq * chp + 2 * tk * chp + 2 * tq * cfp) * 2 + chp * cfp * 2)
        + tq * (chp + 16) * 4 + 4 * tq * tk * 4 + 3 * tq * cfp * 4)

    out = pl.pallas_call(
        attention_kernel,
        out_shape=jax.ShapeDtypeStruct((b, hw, cfp), jnp.bfloat16),
        grid=(b, n_q, n_k),
        in_specs=[
            pl.BlockSpec((1, tq, chp), lambda bi, qi, ki: (bi, qi, 0)),   # d1 (queries)
            pl.BlockSpec((1, tk, chp), lambda bi, qi, ki: (bi, ki, 0)),   # d2 (keys)
            pl.BlockSpec((1, tk, chp), lambda bi, qi, ki: (bi, ki, 0)),   # c1 (values)
            pl.BlockSpec((1, tq, cfp), lambda bi, qi, ki: (bi, qi, 0)),   # d0 (residual)
            pl.BlockSpec((chp, cfp), lambda bi, qi, ki: (0, 0)),          # wc4
        ],
        out_specs=pl.BlockSpec((1, tq, cfp), lambda bi, qi, ki: (bi, qi, 0)),
        scratch_shapes=[pltpu.VMEM((tq, 1), jnp.float32),     # running max
                        pltpu.VMEM((tq, 1), jnp.float32),     # running sum
                        pltpu.VMEM((tq, chp), jnp.float32)],  # output accumulator
        compiler_params=pltpu.CompilerParams(
            dimension_semantics=("parallel", "parallel", "arbitrary"),
            vmem_limit_bytes=attn_vmem),
    )(d1a, d2a, c1a, d0a, wc4)

    return out[:, :, :cf].reshape(b, h, w, cf).astype(jnp.float32)


def make_params(key, in_filter, num_filter):
    ks = jax.random.split(key, 8)
    cf, ch = num_filter, num_filter // 2
    s = 0.1
    return {
        "w1": jax.random.normal(ks[0], (3, 3, in_filter, cf), jnp.float32) * s,
        "b1": jax.random.normal(ks[1], (1, cf), jnp.float32) * s,
        "a1": jnp.full((1, cf), 0.25, jnp.float32),   # PReLU default (shared, broadcast)
        "w2": jax.random.normal(ks[2], (cf, cf), jnp.float32) * s,
        "b2": jax.random.normal(ks[3], (1, cf), jnp.float32) * s,
        "a2": jnp.full((1, cf), 0.25, jnp.float32),
        "wc1": jax.random.normal(ks[4], (cf, ch), jnp.float32) * s,
        "wc2": jax.random.normal(ks[5], (cf, ch), jnp.float32) * s,
        "wc3": jax.random.normal(ks[6], (cf, ch), jnp.float32) * s,
        "wc4": jax.random.normal(ks[7], (ch, cf), jnp.float32) * s,
    }


def lde_reference(rgb, depth, p):
    # Pure-JAX f32 reference (mirrors the PyTorch forward), for correctness check.
    def prelu(x, a):
        return jnp.where(x >= 0, x, a * x)

    def branch(x):
        y = jax.lax.conv_general_dilated(
            x, p["w1"], (1, 1), ((1, 1), (1, 1)),
            dimension_numbers=("NHWC", "HWIO", "NHWC")) + p["b1"]
        y = prelu(y, p["a1"])
        y = prelu(jnp.einsum("nhwc,cd->nhwd", y, p["w2"]) + p["b2"], p["a2"])
        return y

    c0 = branch(rgb)
    d0 = branch(depth)
    b, h, w, cf = d0.shape
    c1 = jnp.einsum("nhwc,cd->nhwd", c0, p["wc1"]).reshape(b, h * w, -1)
    d1 = jnp.einsum("nhwc,cd->nhwd", d0, p["wc2"]).reshape(b, h * w, -1)
    d2 = jnp.einsum("nhwc,cd->nhwd", d0, p["wc3"]).reshape(b, h * w, -1)
    sm = jax.nn.softmax(jnp.einsum("bqc,bkc->bqk", d1, d2), axis=-1)
    guided = jnp.einsum("bqk,bkc->bqc", sm, c1)
    guided = jnp.einsum("bqc,cd->bqd", guided, p["wc4"]).reshape(b, h, w, cf)
    return guided + d0


if __name__ == "__main__":
    key = jax.random.PRNGKey(0)
    k_rgb, k_dep, k_par = jax.random.split(key, 3)

    B, C, H, W = 2, 8, 8, 8          # in_filter == num_filter == 8 (module requirement)
    rgb = jax.random.normal(k_rgb, (B, H, W, C), jnp.float32)     # NHWC
    depth = jax.random.normal(k_dep, (B, H, W, C), jnp.float32)   # NHWC
    params = make_params(k_par, in_filter=C, num_filter=C)

    out = jax.block_until_ready(lde_forward(rgb, depth, params))
    ref = jax.block_until_ready(lde_reference(rgb, depth, params))
    assert out.shape == (B, H, W, C)
    # Tolerance vs the pure-f32 reference: matmuls use bf16 operands (f32
    # accumulation) and intermediates / kernel output are stored in bf16.
    assert jnp.allclose(out, ref, atol=2e-2, rtol=2e-2), "mismatch vs JAX reference"

    print("KERNEL_OK")
</pallas_src>

<mosaic_0001>
module attributes {stable_mosaic.version = 11 : i64} {
  func.func @feature_kernel(%arg0: i32, %arg1: i32, %arg2: memref<1x1x20x10x8xbf16, #tpu.memory_space<vmem>>, %arg3: memref<9x8x128xbf16, #tpu.memory_space<vmem>>, %arg4: memref<1x128xf32, #tpu.memory_space<vmem>>, %arg5: memref<1x128xf32, #tpu.memory_space<vmem>>, %arg6: memref<128x128xbf16, #tpu.memory_space<vmem>>, %arg7: memref<1x128xf32, #tpu.memory_space<vmem>>, %arg8: memref<1x128xf32, #tpu.memory_space<vmem>>, %arg9: memref<128x128xbf16, #tpu.memory_space<vmem>>, %arg10: memref<128x256xbf16, #tpu.memory_space<vmem>>, %arg11: memref<1x64x128xbf16, #tpu.memory_space<vmem>>, %arg12: memref<1x64x128xbf16, #tpu.memory_space<vmem>>, %arg13: memref<1x64x128xbf16, #tpu.memory_space<vmem>>, %arg14: memref<1x64x128xbf16, #tpu.memory_space<vmem>>) attributes {dimension_semantics = [#tpu.dimension_semantics<parallel>, #tpu.dimension_semantics<parallel>], iteration_bounds = array<i64: 2, 1>, scalar_prefetch = 0 : i64, scratch_operands = 0 : i64, tpu.core_type = #tpu.core_type<tc>, window_params = [{transform_indices = @transform_0, window_bounds = array<i64: 1, 1, 20, 10, 8>}, {pipeline_mode = #tpu.pipeline_mode<synchronous>, transform_indices = @transform_1, window_bounds = array<i64: 9, 8, 128>}, {pipeline_mode = #tpu.pipeline_mode<synchronous>, transform_indices = @transform_2, window_bounds = array<i64: 1, 128>}, {pipeline_mode = #tpu.pipeline_mode<synchronous>, transform_indices = @transform_3, window_bounds = array<i64: 1, 128>}, {pipeline_mode = #tpu.pipeline_mode<synchronous>, transform_indices = @transform_4, window_bounds = array<i64: 128, 128>}, {pipeline_mode = #tpu.pipeline_mode<synchronous>, transform_indices = @transform_5, window_bounds = array<i64: 1, 128>}, {pipeline_mode = #tpu.pipeline_mode<synchronous>, transform_indices = @transform_6, window_bounds = array<i64: 1, 128>}, {pipeline_mode = #tpu.pipeline_mode<synchronous>, transform_indices = @transform_7, window_bounds = array<i64: 128, 128>}, {pipeline_mode = #tpu.pipeline_mode<synchronous>, transform_indices = @transform_8, window_bounds = array<i64: 128, 256>}, {transform_indices = @transform_9, window_bounds = array<i64: 1, 64, 128>}, {transform_indices = @transform_10, window_bounds = array<i64: 1, 64, 128>}, {transform_indices = @transform_11, window_bounds = array<i64: 1, 64, 128>}, {transform_indices = @transform_12, window_bounds = array<i64: 1, 64, 128>}]} {
    %c0 = arith.constant 0 : index
    %c0_0 = arith.constant 0 : index
    %c0_1 = arith.constant 0 : index
    %0 = vector.load %arg3[%c0, %c0_0, %c0_1] : memref<9x8x128xbf16, #tpu.memory_space<vmem>>, vector<9x8x128xbf16>
    %c0_2 = arith.constant 0 : index
    %c0_3 = arith.constant 0 : index
    %1 = vector.load %arg4[%c0_2, %c0_3] : memref<1x128xf32, #tpu.memory_space<vmem>>, vector<1x128xf32>
    %c0_4 = arith.constant 0 : index
    %c0_5 = arith.constant 0 : index
    %2 = vector.load %arg5[%c0_4, %c0_5] : memref<1x128xf32, #tpu.memory_space<vmem>>, vector<1x128xf32>
    %c0_6 = arith.constant 0 : index
    %c0_7 = arith.constant 0 : index
    %3 = vector.load %arg7[%c0_6, %c0_7] : memref<1x128xf32, #tpu.memory_space<vmem>>, vector<1x128xf32>
    %c0_8 = arith.constant 0 : index
    %c0_9 = arith.constant 0 : index
    %4 = vector.load %arg8[%c0_8, %c0_9] : memref<1x128xf32, #tpu.memory_space<vmem>>, vector<1x128xf32>
    %c0_10 = arith.constant 0 : index
    %c0_11 = arith.constant 0 : index
    %c0_12 = arith.constant 0 : index
    %c0_13 = arith.constant 0 : index
    %c0_14 = arith.constant 0 : index
    %5 = vector.load %arg2[%c0_10, %c0_11, %c0_12, %c0_13, %c0_14] : memref<1x1x20x10x8xbf16, #tpu.memory_space<vmem>>, vector<1x1x20x10x8xbf16>
    %6 = vector.shape_cast %5 : vector<1x1x20x10x8xbf16> to vector<20x10x8xbf16>
    %7 = vector.extract_strided_slice %6 {offsets = [0, 0, 0], sizes = [10, 10, 8], strides = [1, 1, 1]} : vector<20x10x8xbf16> to vector<10x10x8xbf16>
    %8 = vector.extract_strided_slice %6 {offsets = [10, 0, 0], sizes = [10, 10, 8], strides = [1, 1, 1]} : vector<20x10x8xbf16> to vector<10x10x8xbf16>
    %9 = vector.extract_strided_slice %7 {offsets = [0, 0, 0], sizes = [8, 8, 8], strides = [1, 1, 1]} : vector<10x10x8xbf16> to vector<8x8x8xbf16>
    %10 = vector.shape_cast %9 : vector<8x8x8xbf16> to vector<64x8xbf16>
    %11 = vector.extract_strided_slice %0 {offsets = [0, 0, 0], sizes = [1, 8, 128], strides = [1, 1, 1]} : vector<9x8x128xbf16> to vector<1x8x128xbf16>
    %12 = vector.shape_cast %11 : vector<1x8x128xbf16> to vector<8x128xbf16>
    %cst = arith.constant dense<0.000000e+00> : vector<64x128xf32>
    %13 = tpu.matmul %10, %12, %cst {dimension_numbers = #tpu.dot_dimension_numbers<[1], [0], [0], [1], [0, 0, 1, 1], [], []>} : vector<64x8xbf16>, vector<8x128xbf16>, vector<64x128xf32> -> vector<64x128xf32>
    %14 = vector.extract_strided_slice %7 {offsets = [0, 1, 0], sizes = [8, 8, 8], strides = [1, 1, 1]} : vector<10x10x8xbf16> to vector<8x8x8xbf16>
    %15 = vector.shape_cast %14 : vector<8x8x8xbf16> to vector<64x8xbf16>
    %16 = vector.extract_strided_slice %0 {offsets = [1, 0, 0], sizes = [1, 8, 128], strides = [1, 1, 1]} : vector<9x8x128xbf16> to vector<1x8x128xbf16>
    %17 = vector.shape_cast %16 : vector<1x8x128xbf16> to vector<8x128xbf16>
    %cst_15 = arith.constant dense<0.000000e+00> : vector<64x128xf32>
    %18 = tpu.matmul %15, %17, %cst_15 {dimension_numbers = #tpu.dot_dimension_numbers<[1], [0], [0], [1], [0, 0, 1, 1], [], []>} : vector<64x8xbf16>, vector<8x128xbf16>, vector<64x128xf32> -> vector<64x128xf32>
    %19 = arith.addf %13, %18 : vector<64x128xf32>
    %20 = vector.extract_strided_slice %7 {offsets = [0, 2, 0], sizes = [8, 8, 8], strides = [1, 1, 1]} : vector<10x10x8xbf16> to vector<8x8x8xbf16>
    %21 = vector.shape_cast %20 : vector<8x8x8xbf16> to vector<64x8xbf16>
    %22 = vector.extract_strided_slice %0 {offsets = [2, 0, 0], sizes = [1, 8, 128], strides = [1, 1, 1]} : vector<9x8x128xbf16> to vector<1x8x128xbf16>
    %23 = vector.shape_cast %22 : vector<1x8x128xbf16> to vector<8x128xbf16>
    %cst_16 = arith.constant dense<0.000000e+00> : vector<64x128xf32>
    %24 = tpu.matmul %21, %23, %cst_16 {dimension_numbers = #tpu.dot_dimension_numbers<[1], [0], [0], [1], [0, 0, 1, 1], [], []>} : vector<64x8xbf16>, vector<8x128xbf16>, vector<64x128xf32> -> vector<64x128xf32>
    %25 = arith.addf %19, %24 : vector<64x128xf32>
    %26 = vector.extract_strided_slice %7 {offsets = [1, 0, 0], sizes = [8, 8, 8], strides = [1, 1, 1]} : vector<10x10x8xbf16> to vector<8x8x8xbf16>
    %27 = vector.shape_cast %26 : vector<8x8x8xbf16> to vector<64x8xbf16>
    %28 = vector.extract_strided_slice %0 {offsets = [3, 0, 0], sizes = [1, 8, 128], strides = [1, 1, 1]} : vector<9x8x128xbf16> to vector<1x8x128xbf16>
    %29 = vector.shape_cast %28 : vector<1x8x128xbf16> to vector<8x128xbf16>
    %cst_17 = arith.constant dense<0.000000e+00> : vector<64x128xf32>
    %30 = tpu.matmul %27, %29, %cst_17 {dimension_numbers = #tpu.dot_dimension_numbers<[1], [0], [0], [1], [0, 0, 1, 1], [], []>} : vector<64x8xbf16>, vector<8x128xbf16>, vector<64x128xf32> -> vector<64x128xf32>
    %31 = arith.addf %25, %30 : vector<64x128xf32>
    %32 = vector.extract_strided_slice %7 {offsets = [1, 1, 0], sizes = [8, 8, 8], strides = [1, 1, 1]} : vector<10x10x8xbf16> to vector<8x8x8xbf16>
    %33 = vector.shape_cast %32 : vector<8x8x8xbf16> to vector<64x8xbf16>
    %34 = vector.extract_strided_slice %0 {offsets = [4, 0, 0], sizes = [1, 8, 128], strides = [1, 1, 1]} : vector<9x8x128xbf16> to vector<1x8x128xbf16>
    %35 = vector.shape_cast %34 : vector<1x8x128xbf16> to vector<8x128xbf16>
    %cst_18 = arith.constant dense<0.000000e+00> : vector<64x128xf32>
    %36 = tpu.matmul %33, %35, %cst_18 {dimension_numbers = #tpu.dot_dimension_numbers<[1], [0], [0], [1], [0, 0, 1, 1], [], []>} : vector<64x8xbf16>, vector<8x128xbf16>, vector<64x128xf32> -> vector<64x128xf32>
    %37 = arith.addf %31, %36 : vector<64x128xf32>
    %38 = vector.extract_strided_slice %7 {offsets = [1, 2, 0], sizes = [8, 8, 8], strides = [1, 1, 1]} : vector<10x10x8xbf16> to vector<8x8x8xbf16>
    %39 = vector.shape_cast %38 : vector<8x8x8xbf16> to vector<64x8xbf16>
    %40 = vector.extract_strided_slice %0 {offsets = [5, 0, 0], sizes = [1, 8, 128], strides = [1, 1, 1]} : vector<9x8x128xbf16> to vector<1x8x128xbf16>
    %41 = vector.shape_cast %40 : vector<1x8x128xbf16> to vector<8x128xbf16>
    %cst_19 = arith.constant dense<0.000000e+00> : vector<64x128xf32>
    %42 = tpu.matmul %39, %41, %cst_19 {dimension_numbers = #tpu.dot_dimension_numbers<[1], [0], [0], [1], [0, 0, 1, 1], [], []>} : vector<64x8xbf16>, vector<8x128xbf16>, vector<64x128xf32> -> vector<64x128xf32>
    %43 = arith.addf %37, %42 : vector<64x128xf32>
    %44 = vector.extract_strided_slice %7 {offsets = [2, 0, 0], sizes = [8, 8, 8], strides = [1, 1, 1]} : vector<10x10x8xbf16> to vector<8x8x8xbf16>
    %45 = vector.shape_cast %44 : vector<8x8x8xbf16> to vector<64x8xbf16>
    %46 = vector.extract_strided_slice %0 {offsets = [6, 0, 0], sizes = [1, 8, 128], strides = [1, 1, 1]} : vector<9x8x128xbf16> to vector<1x8x128xbf16>
    %47 = vector.shape_cast %46 : vector<1x8x128xbf16> to vector<8x128xbf16>
    %cst_20 = arith.constant dense<0.000000e+00> : vector<64x128xf32>
    %48 = tpu.matmul %45, %47, %cst_20 {dimension_numbers = #tpu.dot_dimension_numbers<[1], [0], [0], [1], [0, 0, 1, 1], [], []>} : vector<64x8xbf16>, vector<8x128xbf16>, vector<64x128xf32> -> vector<64x128xf32>
    %49 = arith.addf %43, %48 : vector<64x128xf32>
    %50 = vector.extract_strided_slice %7 {offsets = [2, 1, 0], sizes = [8, 8, 8], strides = [1, 1, 1]} : vector<10x10x8xbf16> to vector<8x8x8xbf16>
    %51 = vector.shape_cast %50 : vector<8x8x8xbf16> to vector<64x8xbf16>
    %52 = vector.extract_strided_slice %0 {offsets = [7, 0, 0], sizes = [1, 8, 128], strides = [1, 1, 1]} : vector<9x8x128xbf16> to vector<1x8x128xbf16>
    %53 = vector.shape_cast %52 : vector<1x8x128xbf16> to vector<8x128xbf16>
    %cst_21 = arith.constant dense<0.000000e+00> : vector<64x128xf32>
    %54 = tpu.matmul %51, %53, %cst_21 {dimension_numbers = #tpu.dot_dimension_numbers<[1], [0], [0], [1], [0, 0, 1, 1], [], []>} : vector<64x8xbf16>, vector<8x128xbf16>, vector<64x128xf32> -> vector<64x128xf32>
    %55 = arith.addf %49, %54 : vector<64x128xf32>
    %56 = vector.extract_strided_slice %7 {offsets = [2, 2, 0], sizes = [8, 8, 8], strides = [1, 1, 1]} : vector<10x10x8xbf16> to vector<8x8x8xbf16>
    %57 = vector.shape_cast %56 : vector<8x8x8xbf16> to vector<64x8xbf16>
    %58 = vector.extract_strided_slice %0 {offsets = [8, 0, 0], sizes = [1, 8, 128], strides = [1, 1, 1]} : vector<9x8x128xbf16> to vector<1x8x128xbf16>
    %59 = vector.shape_cast %58 : vector<1x8x128xbf16> to vector<8x128xbf16>
    %cst_22 = arith.constant dense<0.000000e+00> : vector<64x128xf32>
    %60 = tpu.matmul %57, %59, %cst_22 {dimension_numbers = #tpu.dot_dimension_numbers<[1], [0], [0], [1], [0, 0, 1, 1], [], []>} : vector<64x8xbf16>, vector<8x128xbf16>, vector<64x128xf32> -> vector<64x128xf32>
    %61 = arith.addf %55, %60 : vector<64x128xf32>
    %62 = vector.broadcast %1 : vector<1x128xf32> to vector<64x128xf32>
    %63 = arith.addf %61, %62 : vector<64x128xf32>
    %cst_23 = arith.constant 0.000000e+00 : f32
    %64 = vector.broadcast %cst_23 : f32 to vector<64x128xf32>
    %65 = arith.cmpf oge, %63, %64 : vector<64x128xf32>
    %66 = vector.broadcast %2 : vector<1x128xf32> to vector<64x128xf32>
    %67 = arith.mulf %66, %63 : vector<64x128xf32>
    %68 = arith.select %65, %63, %67 : vector<64x128xi1>, vector<64x128xf32>
    %69 = arith.truncf %68 : vector<64x128xf32> to vector<64x128xbf16>
    %c0_24 = arith.constant 0 : index
    %c0_25 = arith.constant 0 : index
    %70 = vector.load %arg6[%c0_24, %c0_25] : memref<128x128xbf16, #tpu.memory_space<vmem>>, vector<128x128xbf16>
    %cst_26 = arith.constant dense<0.000000e+00> : vector<64x128xf32>
    %71 = tpu.matmul %69, %70, %cst_26 {dimension_numbers = #tpu.dot_dimension_numbers<[1], [0], [0], [1], [0, 0, 1, 1], [], []>} : vector<64x128xbf16>, vector<128x128xbf16>, vector<64x128xf32> -> vector<64x128xf32>
    %72 = vector.broadcast %3 : vector<1x128xf32> to vector<64x128xf32>
    %73 = arith.addf %71, %72 : vector<64x128xf32>
    %cst_27 = arith.constant 0.000000e+00 : f32
    %74 = vector.broadcast %cst_27 : f32 to vector<64x128xf32>
    %75 = arith.cmpf oge, %73, %74 : vector<64x128xf32>
    %76 = vector.broadcast %4 : vector<1x128xf32> to vector<64x128xf32>
    %77 = arith.mulf %76, %73 : vector<64x128xf32>
    %78 = arith.select %75, %73, %77 : vector<64x128xi1>, vector<64x128xf32>
    %79 = vector.extract_strided_slice %8 {offsets = [0, 0, 0], sizes = [8, 8, 8], strides = [1, 1, 1]} : vector<10x10x8xbf16> to vector<8x8x8xbf16>
    %80 = vector.shape_cast %79 : vector<8x8x8xbf16> to vector<64x8xbf16>
    %81 = vector.extract_strided_slice %0 {offsets = [0, 0, 0], sizes = [1, 8, 128], strides = [1, 1, 1]} : vector<9x8x128xbf16> to vector<1x8x128xbf16>
    %82 = vector.shape_cast %81 : vector<1x8x128xbf16> to vector<8x128xbf16>
    %cst_28 = arith.constant dense<0.000000e+00> : vector<64x128xf32>
    %83 = tpu.matmul %80, %82, %cst_28 {dimension_numbers = #tpu.dot_dimension_numbers<[1], [0], [0], [1], [0, 0, 1, 1], [], []>} : vector<64x8xbf16>, vector<8x128xbf16>, vector<64x128xf32> -> vector<64x128xf32>
    %84 = vector.extract_strided_slice %8 {offsets = [0, 1, 0], sizes = [8, 8, 8], strides = [1, 1, 1]} : vector<10x10x8xbf16> to vector<8x8x8xbf16>
    %85 = vector.shape_cast %84 : vector<8x8x8xbf16> to vector<64x8xbf16>
    %86 = vector.extract_strided_slice %0 {offsets = [1, 0, 0], sizes = [1, 8, 128], strides = [1, 1, 1]} : vector<9x8x128xbf16> to vector<1x8x128xbf16>
    %87 = vector.shape_cast %86 : vector<1x8x128xbf16> to vector<8x128xbf16>
    %cst_29 = arith.constant dense<0.000000e+00> : vector<64x128xf32>
    %88 = tpu.matmul %85, %87, %cst_29 {dimension_numbers = #tpu.dot_dimension_numbers<[1], [0], [0], [1], [0, 0, 1, 1], [], []>} : vector<64x8xbf16>, vector<8x128xbf16>, vector<64x128xf32> -> vector<64x128xf32>
    %89 = arith.addf %83, %88 : vector<64x128xf32>
    %90 = vector.extract_strided_slice %8 {offsets = [0, 2, 0], sizes = [8, 8, 8], strides = [1, 1, 1]} : vector<10x10x8xbf16> to vector<8x8x8xbf16>
    %91 = vector.shape_cast %90 : vector<8x8x8xbf16> to vector<64x8xbf16>
    %92 = vector.extract_strided_slice %0 {offsets = [2, 0, 0], sizes = [1, 8, 128], strides = [1, 1, 1]} : vector<9x8x128xbf16> to vector<1x8x128xbf16>
    %93 = vector.shape_cast %92 : vector<1x8x128xbf16> to vector<8x128xbf16>
    %cst_30 = arith.constant dense<0.000000e+00> : vector<64x128xf32>
    %94 = tpu.matmul %91, %93, %cst_30 {dimension_numbers = #tpu.dot_dimension_numbers<[1], [0], [0], [1], [0, 0, 1, 1], [], []>} : vector<64x8xbf16>, vector<8x128xbf16>, vector<64x128xf32> -> vector<64x128xf32>
    %95 = arith.addf %89, %94 : vector<64x128xf32>
    %96 = vector.extract_strided_slice %8 {offsets = [1, 0, 0], sizes = [8, 8, 8], strides = [1, 1, 1]} : vector<10x10x8xbf16> to vector<8x8x8xbf16>
    %97 = vector.shape_cast %96 : vector<8x8x8xbf16> to vector<64x8xbf16>
    %98 = vector.extract_strided_slice %0 {offsets = [3, 0, 0], sizes = [1, 8, 128], strides = [1, 1, 1]} : vector<9x8x128xbf16> to vector<1x8x128xbf16>
    %99 = vector.shape_cast %98 : vector<1x8x128xbf16> to vector<8x128xbf16>
    %cst_31 = arith.constant dense<0.000000e+00> : vector<64x128xf32>
    %100 = tpu.matmul %97, %99, %cst_31 {dimension_numbers = #tpu.dot_dimension_numbers<[1], [0], [0], [1], [0, 0, 1, 1], [], []>} : vector<64x8xbf16>, vector<8x128xbf16>, vector<64x128xf32> -> vector<64x128xf32>
    %101 = arith.addf %95, %100 : vector<64x128xf32>
    %102 = vector.extract_strided_slice %8 {offsets = [1, 1, 0], sizes = [8, 8, 8], strides = [1, 1, 1]} : vector<10x10x8xbf16> to vector<8x8x8xbf16>
    %103 = vector.shape_cast %102 : vector<8x8x8xbf16> to vector<64x8xbf16>
    %104 = vector.extract_strided_slice %0 {offsets = [4, 0, 0], sizes = [1, 8, 128], strides = [1, 1, 1]} : vector<9x8x128xbf16> to vector<1x8x128xbf16>
    %105 = vector.shape_cast %104 : vector<1x8x128xbf16> to vector<8x128xbf16>
    %cst_32 = arith.constant dense<0.000000e+00> : vector<64x128xf32>
    %106 = tpu.matmul %103, %105, %cst_32 {dimension_numbers = #tpu.dot_dimension_numbers<[1], [0], [0], [1], [0, 0, 1, 1], [], []>} : vector<64x8xbf16>, vector<8x128xbf16>, vector<64x128xf32> -> vector<64x128xf32>
    %107 = arith.addf %101, %106 : vector<64x128xf32>
    %108 = vector.extract_strided_slice %8 {offsets = [1, 2, 0], sizes = [8, 8, 8], strides = [1, 1, 1]} : vector<10x10x8xbf16> to vector<8x8x8xbf16>
    %109 = vector.shape_cast %108 : vector<8x8x8xbf16> to vector<64x8xbf16>
    %110 = vector.extract_strided_slice %0 {offsets = [5, 0, 0], sizes = [1, 8, 128], strides = [1, 1, 1]} : vector<9x8x128xbf16> to vector<1x8x128xbf16>
    %111 = vector.shape_cast %110 : vector<1x8x128xbf16> to vector<8x128xbf16>
    %cst_33 = arith.constant dense<0.000000e+00> : vector<64x128xf32>
    %112 = tpu.matmul %109, %111, %cst_33 {dimension_numbers = #tpu.dot_dimension_numbers<[1], [0], [0], [1], [0, 0, 1, 1], [], []>} : vector<64x8xbf16>, vector<8x128xbf16>, vector<64x128xf32> -> vector<64x128xf32>
    %113 = arith.addf %107, %112 : vector<64x128xf32>
    %114 = vector.extract_strided_slice %8 {offsets = [2, 0, 0], sizes = [8, 8, 8], strides = [1, 1, 1]} : vector<10x10x8xbf16> to vector<8x8x8xbf16>
    %115 = vector.shape_cast %114 : vector<8x8x8xbf16> to vector<64x8xbf16>
    %116 = vector.extract_strided_slice %0 {offsets = [6, 0, 0], sizes = [1, 8, 128], strides = [1, 1, 1]} : vector<9x8x128xbf16> to vector<1x8x128xbf16>
    %117 = vector.shape_cast %116 : vector<1x8x128xbf16> to vector<8x128xbf16>
    %cst_34 = arith.constant dense<0.000000e+00> : vector<64x128xf32>
    %118 = tpu.matmul %115, %117, %cst_34 {dimension_numbers = #tpu.dot_dimension_numbers<[1], [0], [0], [1], [0, 0, 1, 1], [], []>} : vector<64x8xbf16>, vector<8x128xbf16>, vector<64x128xf32> -> vector<64x128xf32>
    %119 = arith.addf %113, %118 : vector<64x128xf32>
    %120 = vector.extract_strided_slice %8 {offsets = [2, 1, 0], sizes = [8, 8, 8], strides = [1, 1, 1]} : vector<10x10x8xbf16> to vector<8x8x8xbf16>
    %121 = vector.shape_cast %120 : vector<8x8x8xbf16> to vector<64x8xbf16>
    %122 = vector.extract_strided_slice %0 {offsets = [7, 0, 0], sizes = [1, 8, 128], strides = [1, 1, 1]} : vector<9x8x128xbf16> to vector<1x8x128xbf16>
    %123 = vector.shape_cast %122 : vector<1x8x128xbf16> to vector<8x128xbf16>
    %cst_35 = arith.constant dense<0.000000e+00> : vector<64x128xf32>
    %124 = tpu.matmul %121, %123, %cst_35 {dimension_numbers = #tpu.dot_dimension_numbers<[1], [0], [0], [1], [0, 0, 1, 1], [], []>} : vector<64x8xbf16>, vector<8x128xbf16>, vector<64x128xf32> -> vector<64x128xf32>
    %125 = arith.addf %119, %124 : vector<64x128xf32>
    %126 = vector.extract_strided_slice %8 {offsets = [2, 2, 0], sizes = [8, 8, 8], strides = [1, 1, 1]} : vector<10x10x8xbf16> to vector<8x8x8xbf16>
    %127 = vector.shape_cast %126 : vector<8x8x8xbf16> to vector<64x8xbf16>
    %128 = vector.extract_strided_slice %0 {offsets = [8, 0, 0], sizes = [1, 8, 128], strides = [1, 1, 1]} : vector<9x8x128xbf16> to vector<1x8x128xbf16>
    %129 = vector.shape_cast %128 : vector<1x8x128xbf16> to vector<8x128xbf16>
    %cst_36 = arith.constant dense<0.000000e+00> : vector<64x128xf32>
    %130 = tpu.matmul %127, %129, %cst_36 {dimension_numbers = #tpu.dot_dimension_numbers<[1], [0], [0], [1], [0, 0, 1, 1], [], []>} : vector<64x8xbf16>, vector<8x128xbf16>, vector<64x128xf32> -> vector<64x128xf32>
    %131 = arith.addf %125, %130 : vector<64x128xf32>
    %132 = vector.broadcast %1 : vector<1x128xf32> to vector<64x128xf32>
    %133 = arith.addf %131, %132 : vector<64x128xf32>
    %cst_37 = arith.constant 0.000000e+00 : f32
    %134 = vector.broadcast %cst_37 : f32 to vector<64x128xf32>
    %135 = arith.cmpf oge, %133, %134 : vector<64x128xf32>
    %136 = vector.broadcast %2 : vector<1x128xf32> to vector<64x128xf32>
    %137 = arith.mulf %136, %133 : vector<64x128xf32>
    %138 = arith.select %135, %133, %137 : vector<64x128xi1>, vector<64x128xf32>
    %139 = arith.truncf %138 : vector<64x128xf32> to vector<64x128xbf16>
    %c0_38 = arith.constant 0 : index
    %c0_39 = arith.constant 0 : index
    %140 = vector.load %arg6[%c0_38, %c0_39] : memref<128x128xbf16, #tpu.memory_space<vmem>>, vector<128x128xbf16>
    %cst_40 = arith.constant dense<0.000000e+00> : vector<64x128xf32>
    %141 = tpu.matmul %139, %140, %cst_40 {dimension_numbers = #tpu.dot_dimension_numbers<[1], [0], [0], [1], [0, 0, 1, 1], [], []>} : vector<64x128xbf16>, vector<128x128xbf16>, vector<64x128xf32> -> vector<64x128xf32>
    %142 = vector.broadcast %3 : vector<1x128xf32> to vector<64x128xf32>
    %143 = arith.addf %141, %142 : vector<64x128xf32>
    %cst_41 = arith.constant 0.000000e+00 : f32
    %144 = vector.broadcast %cst_41 : f32 to vector<64x128xf32>
    %145 = arith.cmpf oge, %143, %144 : vector<64x128xf32>
    %146 = vector.broadcast %4 : vector<1x128xf32> to vector<64x128xf32>
    %147 = arith.mulf %146, %143 : vector<64x128xf32>
    %148 = arith.select %145, %143, %147 : vector<64x128xi1>, vector<64x128xf32>
    %149 = arith.truncf %78 : vector<64x128xf32> to vector<64x128xbf16>
    %c0_42 = arith.constant 0 : index
    %c0_43 = arith.constant 0 : index
    %150 = vector.load %arg9[%c0_42, %c0_43] : memref<128x128xbf16, #tpu.memory_space<vmem>>, vector<128x128xbf16>
    %cst_44 = arith.constant dense<0.000000e+00> : vector<64x128xf32>
    %151 = tpu.matmul %149, %150, %cst_44 {dimension_numbers = #tpu.dot_dimension_numbers<[1], [0], [0], [1], [0, 0, 1, 1], [], []>} : vector<64x128xbf16>, vector<128x128xbf16>, vector<64x128xf32> -> vector<64x128xf32>
    %152 = arith.truncf %148 : vector<64x128xf32> to vector<64x128xbf16>
    %c0_45 = arith.constant 0 : index
    %c0_46 = arith.constant 0 : index
    %153 = vector.load %arg10[%c0_45, %c0_46] : memref<128x256xbf16, #tpu.memory_space<vmem>>, vector<128x256xbf16>
    %cst_47 = arith.constant dense<0.000000e+00> : vector<64x256xf32>
    %154 = tpu.matmul %152, %153, %cst_47 {dimension_numbers = #tpu.dot_dimension_numbers<[1], [0], [0], [1], [0, 0, 1, 1], [], []>} : vector<64x128xbf16>, vector<128x256xbf16>, vector<64x256xf32> -> vector<64x256xf32>
    %155 = vector.shape_cast %151 : vector<64x128xf32> to vector<1x64x128xf32>
    %156 = arith.truncf %155 : vector<1x64x128xf32> to vector<1x64x128xbf16>
    %c0_48 = arith.constant 0 : index
    %c0_49 = arith.constant 0 : index
    %c0_50 = arith.constant 0 : index
    %157 = vector.load %arg11[%c0_48, %c0_49, %c0_50] : memref<1x64x128xbf16, #tpu.memory_space<vmem>>, vector<1x64x128xbf16>
    tpu.vector_store %arg11[%c0_48, %c0_49, %c0_50], %156 {strides = array<i32>} : memref<1x64x128xbf16, #tpu.memory_space<vmem>>, vector<1x64x128xbf16>,
    %158 = vector.extract_strided_slice %154 {offsets = [0, 0], sizes = [64, 128], strides = [1, 1]} : vector<64x256xf32> to vector<64x128xf32>
    %159 = vector.shape_cast %158 : vector<64x128xf32> to vector<1x64x128xf32>
    %160 = arith.truncf %159 : vector<1x64x128xf32> to vector<1x64x128xbf16>
    %c0_51 = arith.constant 0 : index
    %c0_52 = arith.constant 0 : index
    %c0_53 = arith.constant 0 : index
    %161 = vector.load %arg12[%c0_51, %c0_52, %c0_53] : memref<1x64x128xbf16, #tpu.memory_space<vmem>>, vector<1x64x128xbf16>
    tpu.vector_store %arg12[%c0_51, %c0_52, %c0_53], %160 {strides = array<i32>} : memref<1x64x128xbf16, #tpu.memory_space<vmem>>, vector<1x64x128xbf16>,
    %162 = vector.extract_strided_slice %154 {offsets = [0, 128], sizes = [64, 128], strides = [1, 1]} : vector<64x256xf32> to vector<64x128xf32>
    %163 = vector.shape_cast %162 : vector<64x128xf32> to vector<1x64x128xf32>
    %164 = arith.truncf %163 : vector<1x64x128xf32> to vector<1x64x128xbf16>
    %c0_54 = arith.constant 0 : index
    %c0_55 = arith.constant 0 : index
    %c0_56 = arith.constant 0 : index
    %165 = vector.load %arg13[%c0_54, %c0_55, %c0_56] : memref<1x64x128xbf16, #tpu.memory_space<vmem>>, vector<1x64x128xbf16>
    tpu.vector_store %arg13[%c0_54, %c0_55, %c0_56], %164 {strides = array<i32>} : memref<1x64x128xbf16, #tpu.memory_space<vmem>>, vector<1x64x128xbf16>,
    %166 = vector.shape_cast %148 : vector<64x128xf32> to vector<1x64x128xf32>
    %167 = arith.truncf %166 : vector<1x64x128xf32> to vector<1x64x128xbf16>
    %c0_57 = arith.constant 0 : index
    %c0_58 = arith.constant 0 : index
    %c0_59 = arith.constant 0 : index
    %168 = vector.load %arg14[%c0_57, %c0_58, %c0_59] : memref<1x64x128xbf16, #tpu.memory_space<vmem>>, vector<1x64x128xbf16>
    tpu.vector_store %arg14[%c0_57, %c0_58, %c0_59], %167 {strides = array<i32>} : memref<1x64x128xbf16, #tpu.memory_space<vmem>>, vector<1x64x128xbf16>,
    return
  }
  func.func @transform_0(%arg0: i32, %arg1: i32) -> (i32, i32, i32, i32, i32) {
    %c0_i32 = arith.constant 0 : i32
    %c0_i32_0 = arith.constant 0 : i32
    %c0_i32_1 = arith.constant 0 : i32
    %c0_i32_2 = arith.constant 0 : i32
    return %arg0, %arg1, %c0_i32, %c0_i32_0, %c0_i32_1 : i32, i32, i32, i32, i32
  }
  func.func @transform_1(%arg0: i32, %arg1: i32) -> (i32, i32, i32) {
    %c0_i32 = arith.constant 0 : i32
    %c0_i32_0 = arith.constant 0 : i32
    %c0_i32_1 = arith.constant 0 : i32
    %c0_i32_2 = arith.constant 0 : i32
    return %c0_i32, %c0_i32_0, %c0_i32_1 : i32, i32, i32
  }
  func.func @transform_2(%arg0: i32, %arg1: i32) -> (i32, i32) {
    %c0_i32 = arith.constant 0 : i32
    %c0_i32_0 = arith.constant 0 : i32
    %c0_i32_1 = arith.constant 0 : i32
    return %c0_i32, %c0_i32_0 : i32, i32
  }
  func.func @transform_3(%arg0: i32, %arg1: i32) -> (i32, i32) {
    %c0_i32 = arith.constant 0 : i32
    %c0_i32_0 = arith.constant 0 : i32
    %c0_i32_1 = arith.constant 0 : i32
    return %c0_i32, %c0_i32_0 : i32, i32
  }
  func.func @transform_4(%arg0: i32, %arg1: i32) -> (i32, i32) {
    %c0_i32 = arith.constant 0 : i32
    %c0_i32_0 = arith.constant 0 : i32
    %c0_i32_1 = arith.constant 0 : i32
    return %c0_i32, %c0_i32_0 : i32, i32
  }
  func.func @transform_5(%arg0: i32, %arg1: i32) -> (i32, i32) {
    %c0_i32 = arith.constant 0 : i32
    %c0_i32_0 = arith.constant 0 : i32
    %c0_i32_1 = arith.constant 0 : i32
    return %c0_i32, %c0_i32_0 : i32, i32
  }
  func.func @transform_6(%arg0: i32, %arg1: i32) -> (i32, i32) {
    %c0_i32 = arith.constant 0 : i32
    %c0_i32_0 = arith.constant 0 : i32
    %c0_i32_1 = arith.constant 0 : i32
    return %c0_i32, %c0_i32_0 : i32, i32
  }
  func.func @transform_7(%arg0: i32, %arg1: i32) -> (i32, i32) {
    %c0_i32 = arith.constant 0 : i32
    %c0_i32_0 = arith.constant 0 : i32
    %c0_i32_1 = arith.constant 0 : i32
    return %c0_i32, %c0_i32_0 : i32, i32
  }
  func.func @transform_8(%arg0: i32, %arg1: i32) -> (i32, i32) {
    %c0_i32 = arith.constant 0 : i32
    %c0_i32_0 = arith.constant 0 : i32
    %c0_i32_1 = arith.constant 0 : i32
    return %c0_i32, %c0_i32_0 : i32, i32
  }
  func.func @transform_9(%arg0: i32, %arg1: i32) -> (i32, i32, i32) {
    %c0_i32 = arith.constant 0 : i32
    %c0_i32_0 = arith.constant 0 : i32
    return %arg0, %arg1, %c0_i32 : i32, i32, i32
  }
  func.func @transform_10(%arg0: i32, %arg1: i32) -> (i32, i32, i32) {
    %c0_i32 = arith.constant 0 : i32
    %c0_i32_0 = arith.constant 0 : i32
    return %arg0, %arg1, %c0_i32 : i32, i32, i32
  }
  func.func @transform_11(%arg0: i32, %arg1: i32) -> (i32, i32, i32) {
    %c0_i32 = arith.constant 0 : i32
    %c0_i32_0 = arith.constant 0 : i32
    return %arg0, %arg1, %c0_i32 : i32, i32, i32
  }
  func.func @transform_12(%arg0: i32, %arg1: i32) -> (i32, i32, i32) {
    %c0_i32 = arith.constant 0 : i32
    %c0_i32_0 = arith.constant 0 : i32
    return %arg0, %arg1, %c0_i32 : i32, i32, i32
  }
}

</mosaic_0001>

<llo_original>
// kernel: tpu_custom_call.1
$region0: #{tpu_custom_call.1}
  #allocation0 [shape = 'u32[]', space=smem, size = 0x4, offset = 0x4, fixed_abs, tag = 'smem constant byte address 0x4 - core index']
  #allocation1 [shape = 'u32[144,128]{1,0:T(1,128)}', space=vmem, size = 0x12000, scoped, tag = 'internal scratch']
  %s0 = inlined_call_operand.vmem [shape: bf16[2,1,20,10,8], index: 0, kind: input, shape index: {}]
  %s1 = inlined_call_operand.vmem [shape: bf16[9,8,128], index: 1, kind: input, shape index: {}]
  %s2 = inlined_call_operand.vmem [shape: f32[1,128], index: 2, kind: input, shape index: {}]
  %s3 = inlined_call_operand.vmem [shape: f32[1,128], index: 3, kind: input, shape index: {}]
  %s4 = inlined_call_operand.vmem [shape: bf16[128,128], index: 4, kind: input, shape index: {}]
  %s5 = inlined_call_operand.vmem [shape: f32[1,128], index: 5, kind: input, shape index: {}]
  %s6 = inlined_call_operand.vmem [shape: f32[1,128], index: 6, kind: input, shape index: {}]
  %s7 = inlined_call_operand.vmem [shape: bf16[128,128], index: 7, kind: input, shape index: {}]
  %s8 = inlined_call_operand.vmem [shape: bf16[128,256], index: 8, kind: input, shape index: {}]
  %s9 = inlined_call_operand.hbm [shape: bf16[2,64,128], index: 9, kind: output, shape index: {0}]
  %s10 = inlined_call_operand.hbm [shape: bf16[2,64,128], index: 10, kind: output, shape index: {1}]
  %s11 = inlined_call_operand.hbm [shape: bf16[2,64,128], index: 11, kind: output, shape index: {2}]
  %s12 = inlined_call_operand.hbm [shape: bf16[2,64,128], index: 12, kind: output, shape index: {3}]
  %13 = xla_tuple %s9, %s10, %s11, %s12
  %s14 = sld [smem:[#allocation0]]
  $region93: #{tpu_custom_call.1} parent=0
    _
  %s16 = ssub.s32 1, %s14
  %s17 = scalar_select 0, %s16, %s14
  $region1: #{tpu_custom_call.1} parent=0
    #allocation2 [shape = 'u8[32768]{0}', space=vmem, size = 0x8000, scoped, tag = 'output window, operand 0']
    #allocation3 [shape = 's32[2]{0}', space=sflag, size = 0x8, scoped, tag = 'scoped memory for tpu_custom_call.1']
    #allocation4 [shape = 'u8[32768]{0}', space=vmem, size = 0x8000, scoped, tag = 'output window, operand 1']
    #allocation5 [shape = 's32[2]{0}', space=sflag, size = 0x8, scoped, tag = 'scoped memory for tpu_custom_call.1']
    #allocation6 [shape = 'u8[32768]{0}', space=vmem, size = 0x8000, scoped, tag = 'output window, operand 2']
    #allocation7 [shape = 'u8[32768]{0}', space=vmem, size = 0x8000, scoped, tag = 'output window, operand 3']
    #allocation8 [shape = 's32[2]{0}', space=sflag, size = 0x8, scoped, tag = 'scoped memory for tpu_custom_call.1']
    %18 = vsyncpa [#allocation3], 0
    %s19 = scalar_lea.sflag [#allocation3], 1
    %20 = vsyncpa %s19, 0
    %21 = vsyncpa [#allocation5], 0
    %s22 = scalar_lea.sflag [#allocation5], 1
    %23 = vsyncpa %s22, 0
    %24 = vsyncpa [#allocation8], 0
    %s25 = scalar_lea.sflag [#allocation8], 1
    %26 = vsyncpa %s25, 0
    loop: start=0, step=1, limit=4
    $region2: #{tpu_custom_call.1} parent=1 // loop_pre_header
      _
    $region3: #{tpu_custom_call.1} parent=1 // loop_header
      %s28 = sphi 0, %s32
      %p29 = scmp.ge.s32.totalorder %s28, 4
      %s35 = sphi 0, %s47
      %s36 = sphi 0, %s43
      %s37 = sphi 0, %s35
      %s38 = sphi 0, %s36
      %s39 = sphi 0, %s37
      %s40 = sphi 0, %s38
      %s52 = sphi 0, %s54
      %s55 = sphi 0, %s52
      %s56 = sphi 0, %s55
      %s72 = sphi 0, %s56
      %s76 = sphi 0, %s76
      %s78 = sphi 0, %s76
      %s79 = sphi 0, %s78
      %s93 = sphi 0, %s79
      %s97 = sphi 0, %s97
      %s99 = sphi 0, %s97
      %s100 = sphi 0, %s99
      %s114 = sphi 0, %s100
      %s118 = sphi 0, %s118
      %s120 = sphi 0, %s118
      %s121 = sphi 0, %s120
      %s135 = sphi 0, %s121
      %s139 = sphi 0, %s139
      %s141 = sphi 0, %s139
      %s142 = sphi 0, %s141
      %s156 = sphi 0, %s142
      %s160 = sphi 0, %s160
      %s162 = sphi 0, %s160
      %s163 = sphi 0, %s162
      %s177 = sphi 0, %s163
      %s181 = sphi 0, %s181
      %s183 = sphi 0, %s181
      %s184 = sphi 0, %s183
      %s198 = sphi 0, %s184
      %s202 = sphi 0, %s202
      %s204 = sphi 0, %s202
      %s205 = sphi 0, %s204
      %s219 = sphi 0, %s205
      %s223 = sphi 0, %s223
      %s225 = sphi 0, %s223
      %s226 = sphi 0, %s225
      %s240 = sphi 0, %s226
      %s248 = sphi 0, %s250
      %s251 = sphi 0, %s248
      %s252 = sphi 0, %s251
      %s268 = sphi 0, %s252
      %s276 = sphi 0, %s278
      %s279 = sphi 0, %s276
      %s280 = sphi 0, %s279
      %s296 = sphi 0, %s280
      %s304 = sphi 0, %s306
      %s307 = sphi 0, %s304
      %s308 = sphi 0, %s307
      %s324 = sphi 0, %s308
      %s332 = sphi 0, %s334
      %s335 = sphi 0, %s332
      %s336 = sphi 0, %s335
      %s352 = sphi 0, %s336
    $region4: #{tpu_custom_call.1} parent=1 // loop_header_branch
      %31 = sbr.rel (%p29) target = $region8
    $region5: #{tpu_custom_call.1} parent=1 // loop_body
      %s33 = ssub.s32 %s28, 1
      %s34 = ssub.s32 %s28, 2
      %s41 = sadd.s32 1, %s36
      %p42 = scmp.ge.s32.totalorder %s41, 1
      %s43 = scalar_select %p42, 0, %s41
      %s44 = sadd.s32 1, %s35
      %s45 = scalar_select %p42, %s44, %s35
      %p46 = scmp.ge.s32.totalorder %s45, 2
      %s47 = scalar_select %p46, 0, %s45
      %s48 = ssub.s32 %s35, %s47
      %s49 = ssub.s32 %s36, %s43
      %s50 = sor.u32 %s48, %s49
      %p51 = scmp.eq.s32.totalorder %s50, 0
      %s53 = sadd.s32 %s52, 1
      %s54 = scalar_select %p51, %s52, %s53
      %p57 = pneg %p51
      %p58 = scmp.eq.s32.totalorder %s28, 1
      %p59 = por %p57, %p58
      %p60 = scmp.ne.s32.totalorder %s52, %s55
      %p61 = scmp.eq.s32.totalorder %s28, 0
      %p62 = por %p60, %p61
      %p63 = scmp.ne.s32.totalorder %s52, %s55
      %p64 = scmp.eq.s32.totalorder %s33, 1
      %p65 = por %p63, %p64
      %p66 = scmp.ne.s32.totalorder %s55, %s56
      %p67 = scmp.eq.s32.totalorder %s33, 0
      %p68 = por %p66, %p67
      %p69 = scmp.ne.s32.totalorder %s55, %s56
      %p70 = scmp.eq.s32.totalorder %s34, 1
      %p71 = por %p69, %p70
      %p73 = scmp.ne.s32.totalorder %s56, %s72
      %p74 = scmp.eq.s32.totalorder %s34, 0
      %p75 = por %p73, %p74
      %s77 = sadd.s32 %s76, 1
      %p80 = scmp.eq.s32.totalorder %s28, 1
      %p81 = scmp.ne.s32.totalorder %s76, %s78
      %p82 = scmp.eq.s32.totalorder %s28, 0
      %p83 = por %p81, %p82
      %p84 = scmp.ne.s32.totalorder %s76, %s78
      %p85 = scmp.eq.s32.totalorder %s33, 1
      %p86 = por %p84, %p85
      %p87 = scmp.ne.s32.totalorder %s78, %s79
      %p88 = scmp.eq.s32.totalorder %s33, 0
      %p89 = por %p87, %p88
      %p90 = scmp.ne.s32.totalorder %s78, %s79
      %p91 = scmp.eq.s32.totalorder %s34, 1
      %p92 = por %p90, %p91
      %p94 = scmp.ne.s32.totalorder %s79, %s93
      %p95 = scmp.eq.s32.totalorder %s34, 0
      %p96 = por %p94, %p95
      %s98 = sadd.s32 %s97, 1
      %p101 = scmp.eq.s32.totalorder %s28, 1
      %p102 = scmp.ne.s32.totalorder %s97, %s99
      %p103 = scmp.eq.s32.totalorder %s28, 0
      %p104 = por %p102, %p103
      %p105 = scmp.ne.s32.totalorder %s97, %s99
      %p106 = scmp.eq.s32.totalorder %s33, 1
      %p107 = por %p105, %p106
      %p108 = scmp.ne.s32.totalorder %s99, %s100
      %p109 = scmp.eq.s32.totalorder %s33, 0
      %p110 = por %p108, %p109
      %p111 = scmp.ne.s32.totalorder %s99, %s100
      %p112 = scmp.eq.s32.totalorder %s34, 1
      %p113 = por %p111, %p112
      %p115 = scmp.ne.s32.totalorder %s100, %s114
      %p116 = scmp.eq.s32.totalorder %s34, 0
      %p117 = por %p115, %p116
      %s119 = sadd.s32 %s118, 1
      %p122 = scmp.eq.s32.totalorder %s28, 1
      %p123 = scmp.ne.s32.totalorder %s118, %s120
      %p124 = scmp.eq.s32.totalorder %s28, 0
      %p125 = por %p123, %p124
      %p126 = scmp.ne.s32.totalorder %s118, %s120
      %p127 = scmp.eq.s32.totalorder %s33, 1
      %p128 = por %p126, %p127
      %p129 = scmp.ne.s32.totalorder %s120, %s121
      %p130 = scmp.eq.s32.totalorder %s33, 0
      %p131 = por %p129, %p130
      %p132 = scmp.ne.s32.totalorder %s120, %s121
      %p133 = scmp.eq.s32.totalorder %s34, 1
      %p134 = por %p132, %p133
      %p136 = scmp.ne.s32.totalorder %s121, %s135
      %p137 = scmp.eq.s32.totalorder %s34, 0
      %p138 = por %p136, %p137
      %s140 = sadd.s32 %s139, 1
      %p143 = scmp.eq.s32.totalorder %s28, 1
      %p144 = scmp.ne.s32.totalorder %s139, %s141
      %p145 = scmp.eq.s32.totalorder %s28, 0
      %p146 = por %p144, %p145
      %p147 = scmp.ne.s32.totalorder %s139, %s141
      %p148 = scmp.eq.s32.totalorder %s33, 1
      %p149 = por %p147, %p148
      %p150 = scmp.ne.s32.totalorder %s141, %s142
      %p151 = scmp.eq.s32.totalorder %s33, 0
      %p152 = por %p150, %p151
      %p153 = scmp.ne.s32.totalorder %s141, %s142
      %p154 = scmp.eq.s32.totalorder %s34, 1
      %p155 = por %p153, %p154
      %p157 = scmp.ne.s32.totalorder %s142, %s156
      %p158 = scmp.eq.s32.totalorder %s34, 0
      %p159 = por %p157, %p158
      %s161 = sadd.s32 %s160, 1
      %p164 = scmp.eq.s32.totalorder %s28, 1
      %p165 = scmp.ne.s32.totalorder %s160, %s162
      %p166 = scmp.eq.s32.totalorder %s28, 0
      %p167 = por %p165, %p166
      %p168 = scmp.ne.s32.totalorder %s160, %s162
      %p169 = scmp.eq.s32.totalorder %s33, 1
      %p170 = por %p168, %p169
      %p171 = scmp.ne.s32.totalorder %s162, %s163
      %p172 = scmp.eq.s32.totalorder %s33, 0
      %p173 = por %p171, %p172
      %p174 = scmp.ne.s32.totalorder %s162, %s163
      %p175 = scmp.eq.s32.totalorder %s34, 1
      %p176 = por %p174, %p175
      %p178 = scmp.ne.s32.totalorder %s163, %s177
      %p179 = scmp.eq.s32.totalorder %s34, 0
      %p180 = por %p178, %p179
      %s182 = sadd.s32 %s181, 1
      %p185 = scmp.eq.s32.totalorder %s28, 1
      %p186 = scmp.ne.s32.totalorder %s181, %s183
      %p187 = scmp.eq.s32.totalorder %s28, 0
      %p188 = por %p186, %p187
      %p189 = scmp.ne.s32.totalorder %s181, %s183
      %p190 = scmp.eq.s32.totalorder %s33, 1
      %p191 = por %p189, %p190
      %p192 = scmp.ne.s32.totalorder %s183, %s184
      %p193 = scmp.eq.s32.totalorder %s33, 0
      %p194 = por %p192, %p193
      %p195 = scmp.ne.s32.totalorder %s183, %s184
      %p196 = scmp.eq.s32.totalorder %s34, 1
      %p197 = por %p195, %p196
      %p199 = scmp.ne.s32.totalorder %s184, %s198
      %p200 = scmp.eq.s32.totalorder %s34, 0
      %p201 = por %p199, %p200
      %s203 = sadd.s32 %s202, 1
      %p206 = scmp.eq.s32.totalorder %s28, 1
      %p207 = scmp.ne.s32.totalorder %s202, %s204
      %p208 = scmp.eq.s32.totalorder %s28, 0
      %p209 = por %p207, %p208
      %p210 = scmp.ne.s32.totalorder %s202, %s204
      %p211 = scmp.eq.s32.totalorder %s33, 1
      %p212 = por %p210, %p211
      %p213 = scmp.ne.s32.totalorder %s204, %s205
      %p214 = scmp.eq.s32.totalorder %s33, 0
      %p215 = por %p213, %p214
      %p216 = scmp.ne.s32.totalorder %s204, %s205
      %p217 = scmp.eq.s32.totalorder %s34, 1
      %p218 = por %p216, %p217
      %p220 = scmp.ne.s32.totalorder %s205, %s219
      %p221 = scmp.eq.s32.totalorder %s34, 0
      %p222 = por %p220, %p221
      %s224 = sadd.s32 %s223, 1
      %p227 = scmp.eq.s32.totalorder %s28, 1
      %p228 = scmp.ne.s32.totalorder %s223, %s225
      %p229 = scmp.eq.s32.totalorder %s28, 0
      %p230 = por %p228, %p229
      %p231 = scmp.ne.s32.totalorder %s223, %s225
      %p232 = scmp.eq.s32.totalorder %s33, 1
      %p233 = por %p231, %p232
      %p234 = scmp.ne.s32.totalorder %s225, %s226
      %p235 = scmp.eq.s32.totalorder %s33, 0
      %p236 = por %p234, %p235
      %p237 = scmp.ne.s32.totalorder %s225, %s226
      %p238 = scmp.eq.s32.totalorder %s34, 1
      %p239 = por %p237, %p238
      %p241 = scmp.ne.s32.totalorder %s226, %s240
      %p242 = scmp.eq.s32.totalorder %s34, 0
      %p243 = por %p241, %p242
      %s244 = ssub.s32 %s35, %s47
      %s245 = ssub.s32 %s36, %s43
      %s246 = sor.u32 %s244, %s245
      %p247 = scmp.eq.s32.totalorder %s246, 0
      %s249 = sadd.s32 %s248, 1
      %s250 = scalar_select %p247, %s248, %s249
      %p253 = pneg %p247
      %p254 = scmp.eq.s32.totalorder %s28, 1
      %p255 = por %p253, %p254
      %p256 = scmp.ne.s32.totalorder %s248, %s251
      %p257 = scmp.eq.s32.totalorder %s28, 0
      %p258 = por %p256, %p257
      %p259 = scmp.ne.s32.totalorder %s248, %s251
      %p260 = scmp.eq.s32.totalorder %s33, 1
      %p261 = por %p259, %p260
      %p262 = scmp.ne.s32.totalorder %s251, %s252
      %p263 = scmp.eq.s32.totalorder %s33, 0
      %p264 = por %p262, %p263
      %p265 = scmp.ne.s32.totalorder %s251, %s252
      %p266 = scmp.eq.s32.totalorder %s34, 1
      %p267 = por %p265, %p266
      %p269 = scmp.ne.s32.totalorder %s252, %s268
      %p270 = scmp.eq.s32.totalorder %s34, 0
      %p271 = por %p269, %p270
      %s272 = ssub.s32 %s35, %s47
      %s273 = ssub.s32 %s36, %s43
      %s274 = sor.u32 %s272, %s273
      %p275 = scmp.eq.s32.totalorder %s274, 0
      %s277 = sadd.s32 %s276, 1
      %s278 = scalar_select %p275, %s276, %s277
      %p281 = pneg %p275
      %p282 = scmp.eq.s32.totalorder %s28, 1
      %p283 = por %p281, %p282
      %p284 = scmp.ne.s32.totalorder %s276, %s279
      %p285 = scmp.eq.s32.totalorder %s28, 0
      %p286 = por %p284, %p285
      %p287 = scmp.ne.s32.totalorder %s276, %s279
      %p288 = scmp.eq.s32.totalorder %s33, 1
      %p289 = por %p287, %p288
      %p290 = scmp.ne.s32.totalorder %s279, %s280
      %p291 = scmp.eq.s32.totalorder %s33, 0
      %p292 = por %p290, %p291
      %p293 = scmp.ne.s32.totalorder %s279, %s280
      %p294 = scmp.eq.s32.totalorder %s34, 1
      %p295 = por %p293, %p294
      %p297 = scmp.ne.s32.totalorder %s280, %s296
      %p298 = scmp.eq.s32.totalorder %s34, 0
      %p299 = por %p297, %p298
      %s300 = ssub.s32 %s35, %s47
      %s301 = ssub.s32 %s36, %s43
      %s302 = sor.u32 %s300, %s301
      %p303 = scmp.eq.s32.totalorder %s302, 0
      %s305 = sadd.s32 %s304, 1
      %s306 = scalar_select %p303, %s304, %s305
      %p309 = pneg %p303
      %p310 = scmp.eq.s32.totalorder %s28, 1
      %p311 = por %p309, %p310
      %p312 = scmp.ne.s32.totalorder %s304, %s307
      %p313 = scmp.eq.s32.totalorder %s28, 0
      %p314 = por %p312, %p313
      %p315 = scmp.ne.s32.totalorder %s304, %s307
      %p316 = scmp.eq.s32.totalorder %s33, 1
      %p317 = por %p315, %p316
      %p318 = scmp.ne.s32.totalorder %s307, %s308
      %p319 = scmp.eq.s32.totalorder %s33, 0
      %p320 = por %p318, %p319
      %p321 = scmp.ne.s32.totalorder %s307, %s308
      %p322 = scmp.eq.s32.totalorder %s34, 1
      %p323 = por %p321, %p322
      %p325 = scmp.ne.s32.totalorder %s308, %s324
      %p326 = scmp.eq.s32.totalorder %s34, 0
      %p327 = por %p325, %p326
      %s328 = ssub.s32 %s35, %s47
      %s329 = ssub.s32 %s36, %s43
      %s330 = sor.u32 %s328, %s329
      %p331 = scmp.eq.s32.totalorder %s330, 0
      %s333 = sadd.s32 %s332, 1
      %s334 = scalar_select %p331, %s332, %s333
      %p337 = pneg %p331
      %p338 = scmp.eq.s32.totalorder %s28, 1
      %p339 = por %p337, %p338
      %p340 = scmp.ne.s32.totalorder %s332, %s335
      %p341 = scmp.eq.s32.totalorder %s28, 0
      %p342 = por %p340, %p341
      %p343 = scmp.ne.s32.totalorder %s332, %s335
      %p344 = scmp.eq.s32.totalorder %s33, 1
      %p345 = por %p343, %p344
      %p346 = scmp.ne.s32.totalorder %s335, %s336
      %p347 = scmp.eq.s32.totalorder %s33, 0
      %p348 = por %p346, %p347
      %p349 = scmp.ne.s32.totalorder %s335, %s336
      %p350 = scmp.eq.s32.totalorder %s34, 1
      %p351 = por %p349, %p350
      %p353 = scmp.ne.s32.totalorder %s336, %s352
      %p354 = scmp.eq.s32.totalorder %s34, 0
      %p355 = por %p353, %p354
      %p356 = scmp.le.s32.totalorder 1, %s28
      %p357 = scmp.lt.s32.totalorder %s28, 3
      %p358 = pnand %p356, %p357
      %p359 = pneg %p358
      // Predicated region
      $region9: #{tpu_custom_call.1} parent=5 // pred_check
        _
      $region10: #{tpu_custom_call.1} parent=5 // pred_check_branch
        %361 = sbr.rel (%p358) target = $region12
      $region11: #{tpu_custom_call.1} parent=5 // pred_region
        %s362 = ssub.s32 %s28, 1
        // Predicated region
        $region13: #{tpu_custom_call.1} parent=11 // pred_check
          %p363 = pneg %p89
        $region14: #{tpu_custom_call.1} parent=11 // pred_check_branch
          %365 = sbr.rel (%p363) target = $region16
        $region15: #{tpu_custom_call.1} parent=11 // pred_region
          _
        $region16: #{tpu_custom_call.1} parent=11 // pred_fallthru
          _
        // Predicated region
        $region17: #{tpu_custom_call.1} parent=11 // pred_check
          %p366 = pneg %p110
        $region18: #{tpu_custom_call.1} parent=11 // pred_check_branch
          %368 = sbr.rel (%p366) target = $region20
        $region19: #{tpu_custom_call.1} parent=11 // pred_region
          _
        $region20: #{tpu_custom_call.1} parent=11 // pred_fallthru
          _
        // Predicated region
        $region21: #{tpu_custom_call.1} parent=11 // pred_check
          %p369 = pneg %p131
        $region22: #{tpu_custom_call.1} parent=11 // pred_check_branch
          %371 = sbr.rel (%p369) target = $region24
        $region23: #{tpu_custom_call.1} parent=11 // pred_region
          _
        $region24: #{tpu_custom_call.1} parent=11 // pred_fallthru
          _
        // Predicated region
        $region25: #{tpu_custom_call.1} parent=11 // pred_check
          %p372 = pneg %p152
        $region26: #{tpu_custom_call.1} parent=11 // pred_check_branch
          %374 = sbr.rel (%p372) target = $region28
        $region27: #{tpu_custom_call.1} parent=11 // pred_region
          _
        $region28: #{tpu_custom_call.1} parent=11 // pred_fallthru
          _
        // Predicated region
        $region29: #{tpu_custom_call.1} parent=11 // pred_check
          %p375 = pneg %p173
        $region30: #{tpu_custom_call.1} parent=11 // pred_check_branch
          %377 = sbr.rel (%p375) target = $region32
        $region31: #{tpu_custom_call.1} parent=11 // pred_region
          _
        $region32: #{tpu_custom_call.1} parent=11 // pred_fallthru
          _
        // Predicated region
        $region33: #{tpu_custom_call.1} parent=11 // pred_check
          %p378 = pneg %p194
        $region34: #{tpu_custom_call.1} parent=11 // pred_check_branch
          %380 = sbr.rel (%p378) target = $region36
        $region35: #{tpu_custom_call.1} parent=11 // pred_region
          _
        $region36: #{tpu_custom_call.1} parent=11 // pred_fallthru
          _
        // Predicated region
        $region37: #{tpu_custom_call.1} parent=11 // pred_check
          %p381 = pneg %p215
        $region38: #{tpu_custom_call.1} parent=11 // pred_check_branch
          %383 = sbr.rel (%p381) target = $region40
        $region39: #{tpu_custom_call.1} parent=11 // pred_region
          _
        $region40: #{tpu_custom_call.1} parent=11 // pred_fallthru
          _
        // Predicated region
        $region41: #{tpu_custom_call.1} parent=11 // pred_check
          %p384 = pneg %p236
        $region42: #{tpu_custom_call.1} parent=11 // pred_check_branch
          %386 = sbr.rel (%p384) target = $region44
        $region43: #{tpu_custom_call.1} parent=11 // pred_region
          _
        $region44: #{tpu_custom_call.1} parent=11 // pred_fallthru
          _
      $region12: #{tpu_custom_call.1} parent=5 // pred_fallthru
        _
      %p387 = scmp.lt.s32.totalorder %s28, 2
      // Predicated region
      $region45: #{tpu_custom_call.1} parent=5 // pred_check
        %p388 = pneg %p387
      $region46: #{tpu_custom_call.1} parent=5 // pred_check_branch
        %390 = sbr.rel (%p388) target = $region48
      $region47: #{tpu_custom_call.1} parent=5 // pred_region
        // Predicated region
        $region49: #{tpu_custom_call.1} parent=47 // pred_check
          %p391 = pneg %p62
        $region50: #{tpu_custom_call.1} parent=47 // pred_check_branch
          %393 = sbr.rel (%p391) target = $region52
        $region51: #{tpu_custom_call.1} parent=47 // pred_region
          %p394 = scmp.lt.s32.totalorder %s35, 1
          %s395 = scalar_select %p394, %s35, 1
          %p396 = scmp.lt.s32.totalorder %s36, 0
          %s397 = scalar_select %p396, %s36, 0
          %s398 = smul.addr %s397, 40
          %s399 = smul.addr %s395, 40
          %s400 = sadd.s32 %s398, %s399
          %s401 = smul.addr %s400, 4
          %s402 = scalar_lea.vmem %s0, %s401
        $region52: #{tpu_custom_call.1} parent=47 // pred_fallthru
          _
      $region48: #{tpu_custom_call.1} parent=5 // pred_fallthru
        _
      %p403 = scmp.le.s32.totalorder 1, %s28
      %p404 = scmp.lt.s32.totalorder %s28, 3
      %p405 = pnand %p403, %p404
      %p406 = pneg %p405
      // Predicated region
      $region53: #{tpu_custom_call.1} parent=5 // pred_check
        _
      $region54: #{tpu_custom_call.1} parent=5 // pred_check_branch
        %408 = sbr.rel (%p405) target = $region56
      $region55: #{tpu_custom_call.1} parent=5 // pred_region
        %s409 = ssub.s32 %s28, 1
        %p410 = scmp.lt.s32.totalorder %s37, 1
        %s411 = scalar_select %p410, %s37, 1
        %p412 = scmp.lt.s32.totalorder %s38, 0
        %s413 = scalar_select %p412, %s38, 0
        %s414 = smul.addr %s413, 40
        %s415 = smul.addr %s411, 40
        %s416 = sadd.s32 %s414, %s415
        %s417 = smul.addr %s416, 4
        %s418 = scalar_lea.vmem %s0, %s417
        %p419 = pneg %p68
        %p420 = pneg %p65
        %p421 = pneg %p89
        %p422 = pneg %p86
        %p423 = pneg %p110
        %p424 = pneg %p107
        %p425 = pneg %p131
        %p426 = pneg %p128
        %p427 = pneg %p152
        %p428 = pneg %p149
        %p429 = pneg %p173
        %p430 = pneg %p170
        %p431 = pneg %p194
        %p432 = pneg %p191
        %p433 = pneg %p215
        %p434 = pneg %p212
        %p435 = pneg %p236
        %p436 = pneg %p233
        %p437 = pneg %p264
        %p438 = pneg %p261
        %s439 = sand.u32 %s251, 1
        %s440 = scalar_lea.sflag [#allocation3], %s439
        %s441 = sand.u32 %s251, 1
        %s442 = smul.addr %s441, 32
        %s443 = scalar_lea.vmem [#allocation2], %s442
        %p444 = pneg %p292
        %p445 = pneg %p289
        %s446 = sand.u32 %s33, 1
        %s447 = scalar_lea.sflag [#allocation5], %s446
        %s448 = sand.u32 %s279, 1
        %s449 = smul.addr %s448, 32
        %s450 = scalar_lea.vmem [#allocation4], %s449
        %p451 = pneg %p320
        %p452 = pneg %p317
        %s453 = sand.u32 %s33, 1
        %s454 = scalar_lea.sflag [#allocation5], %s453
        %s455 = sand.u32 %s307, 1
        %s456 = smul.addr %s455, 32
        %s457 = scalar_lea.vmem [#allocation6], %s456
        %p458 = pneg %p348
        %p459 = pneg %p345
        %s460 = sand.u32 %s335, 1
        %s461 = scalar_lea.sflag [#allocation8], %s460
        %s462 = sand.u32 %s335, 1
        %s463 = smul.addr %s462, 32
        %s464 = scalar_lea.vmem [#allocation7], %s463
        %p465 = scmp.lt.s32.totalorder %s37, 1
        %s466 = scalar_select %p465, %s37, 1
        %p467 = scmp.lt.s32.totalorder %s38, 0
        %s468 = scalar_select %p467, %s38, 0
        %s469 = smul.addr %s468, 40
        %s470 = smul.addr %s466, 40
        %s471 = sadd.s32 %s469, %s470
        %s472 = smul.addr %s471, 4
        %s473 = scalar_lea.vmem %s0, %s472
        %s474 = smul.u32 8, %s38
        %s475 = smul.u32 8, %s38
        %s476 = smul.u32 8, %s38
        %s477 = smul.u32 8, %s38
        %v479 = vld [vmem:[%s1] sm:$0xf]
        %v480 = vld [vmem:[%s1 + $0x4] sm:$0xf]
        %v481 = vld [vmem:[%s1 + $0x8] sm:$0xf]
        %v482 = vld [vmem:[%s1 + $0xc] sm:$0xf]
        %v483 = vld [vmem:[%s1 + $0x10] sm:$0xf]
        %v484 = vld [vmem:[%s1 + $0x14] sm:$0xf]
        %v485 = vld [vmem:[%s1 + $0x18] sm:$0xf]
        %v486 = vld [vmem:[%s1 + $0x1c] sm:$0xf]
        %v487 = vld [vmem:[%s1 + $0x20] sm:$0xf]
        %v488 = vld [vmem:[%s2] sm:$0x1]
        %v489 = vld [vmem:[%s3] sm:$0x1]
        %v490 = vld [vmem:[%s5] sm:$0x1]
        %v491 = vld [vmem:[%s6] sm:$0x1]
        %v492 = vld [vmem:[%s473] sm:$0xf]
        %v493 = vld [vmem:[%s473 + $0x4] sm:$0x1]
        %v494 = vld [vmem:[%s473 + $0x8] sm:$0xf]
        %v495 = vld [vmem:[%s473 + $0xc] sm:$0x1]
        %v496 = vld [vmem:[%s473 + $0x10] sm:$0xf]
        %v497 = vld [vmem:[%s473 + $0x14] sm:$0x1]
        %v498 = vld [vmem:[%s473 + $0x18] sm:$0xf]
        %v499 = vld [vmem:[%s473 + $0x1c] sm:$0x1]
        %v500 = vld [vmem:[%s473 + $0x20] sm:$0xf]
        %v501 = vld [vmem:[%s473 + $0x24] sm:$0x1]
        %v502 = vld [vmem:[%s473 + $0x28] sm:$0xf]
        %v503 = vld [vmem:[%s473 + $0x2c] sm:$0x1]
        %v504 = vld [vmem:[%s473 + $0x30] sm:$0xf]
        %v505 = vld [vmem:[%s473 + $0x34] sm:$0x1]
        %v506 = vld [vmem:[%s473 + $0x38] sm:$0xf]
        %v507 = vld [vmem:[%s473 + $0x3c] sm:$0x1]
        %v508 = vld [vmem:[%s473 + $0x40] sm:$0xf]
        %v509 = vld [vmem:[%s473 + $0x44] sm:$0x1]
        %v510 = vld [vmem:[%s473 + $0x48] sm:$0xf]
        %v511 = vld [vmem:[%s473 + $0x4c] sm:$0x1]
        %v512 = vld [vmem:[%s473 + $0x50] sm:$0xf]
        %v513 = vld [vmem:[%s473 + $0x54] sm:$0x1]
        %v514 = vld [vmem:[%s473 + $0x58] sm:$0xf]
        %v515 = vld [vmem:[%s473 + $0x5c] sm:$0x1]
        %v516 = vld [vmem:[%s473 + $0x60] sm:$0xf]
        %v517 = vld [vmem:[%s473 + $0x64] sm:$0x1]
        %v518 = vld [vmem:[%s473 + $0x68] sm:$0xf]
        %v519 = vld [vmem:[%s473 + $0x6c] sm:$0x1]
        %v520 = vld [vmem:[%s473 + $0x70] sm:$0xf]
        %v521 = vld [vmem:[%s473 + $0x74] sm:$0x1]
        %v522 = vld [vmem:[%s473 + $0x78] sm:$0xf]
        %v523 = vld [vmem:[%s473 + $0x7c] sm:$0x1]
        %v524 = vld [vmem:[%s473 + $0x80] sm:$0xf]
        %v525 = vld [vmem:[%s473 + $0x84] sm:$0x1]
        %v526 = vld [vmem:[%s473 + $0x88] sm:$0xf]
        %v527 = vld [vmem:[%s473 + $0x8c] sm:$0x1]
        %v528 = vld [vmem:[%s473 + $0x90] sm:$0xf]
        %v529 = vld [vmem:[%s473 + $0x94] sm:$0x1]
        %v530 = vld [vmem:[%s473 + $0x98] sm:$0xf]
        %v531 = vld [vmem:[%s473 + $0x9c] sm:$0x1]
        %vm532 = vsmask.f32 3328
        %vm533 = vsmask.f32 7440
        %vm534 = vmor %vm532, %vm533
        %v536 = vshrl.u32 %v492, 16
        %v538 = vrot.slane %v536, 4
        %v539 = vshll.u32 %v492, 16
        %v541 = vrot.slane %v539, 5
        %v542 = vor.u32 %v538, %v541
        %v543 = vrot.slane %v542, 4
        %v545 = vshll.u32 %v493, 16
        %v547 = vrot.slane %v545, 5
        %v548 = vsel %vm534, %v543, %v547
        %v550 = vshrl.u32 %v494, 16
        %v552 = vrot.slane %v550, 4
        %v553 = vshll.u32 %v494, 16
        %v555 = vrot.slane %v553, 5
        %v556 = vor.u32 %v552, %v555
        %v557 = vrot.slane %v556, 4
        %v559 = vshll.u32 %v495, 16
        %v561 = vrot.slane %v559, 5
        %v562 = vsel %vm534, %v557, %v561
        %v564 = vshrl.u32 %v496, 16
        %v566 = vrot.slane %v564, 4
        %v567 = vshll.u32 %v496, 16
        %v569 = vrot.slane %v567, 5
        %v570 = vor.u32 %v566, %v569
        %v571 = vrot.slane %v570, 4
        %v573 = vshll.u32 %v497, 16
        %v575 = vrot.slane %v573, 5
        %v576 = vsel %vm534, %v571, %v575
        %v578 = vshrl.u32 %v498, 16
        %v580 = vrot.slane %v578, 4
        %v581 = vshll.u32 %v498, 16
        %v583 = vrot.slane %v581, 5
        %v584 = vor.u32 %v580, %v583
        %v585 = vrot.slane %v584, 4
        %v587 = vshll.u32 %v499, 16
        %v589 = vrot.slane %v587, 5
        %v590 = vsel %vm534, %v585, %v589
        %v592 = vshrl.u32 %v500, 16
        %v594 = vrot.slane %v592, 4
        %v595 = vshll.u32 %v500, 16
        %v597 = vrot.slane %v595, 5
        %v598 = vor.u32 %v594, %v597
        %v599 = vrot.slane %v598, 4
        %v601 = vshll.u32 %v501, 16
        %v603 = vrot.slane %v601, 5
        %v604 = vsel %vm534, %v599, %v603
        %v606 = vshrl.u32 %v502, 16
        %v608 = vrot.slane %v606, 4
        %v609 = vshll.u32 %v502, 16
        %v611 = vrot.slane %v609, 5
        %v612 = vor.u32 %v608, %v611
        %v613 = vrot.slane %v612, 4
        %v615 = vshll.u32 %v503, 16
        %v617 = vrot.slane %v615, 5
        %v618 = vsel %vm534, %v613, %v617
        %v620 = vshrl.u32 %v504, 16
        %v622 = vrot.slane %v620, 4
        %v623 = vshll.u32 %v504, 16
        %v625 = vrot.slane %v623, 5
        %v626 = vor.u32 %v622, %v625
        %v627 = vrot.slane %v626, 4
        %v629 = vshll.u32 %v505, 16
        %v631 = vrot.slane %v629, 5
        %v632 = vsel %vm534, %v627, %v631
        %v634 = vshrl.u32 %v506, 16
        %v636 = vrot.slane %v634, 4
        %v637 = vshll.u32 %v506, 16
        %v639 = vrot.slane %v637, 5
        %v640 = vor.u32 %v636, %v639
        %v641 = vrot.slane %v640, 4
        %v643 = vshll.u32 %v507, 16
        %v645 = vrot.slane %v643, 5
        %v646 = vsel %vm534, %v641, %v645
        %v647 = vunpack.c.l.b16 %v548
        %v648 = vunpack.c.l.b16 %v562
        %v649 = vunpack.c.l.b16 %v576
        %v650 = vunpack.c.l.b16 %v590
        %v651 = vunpack.c.l.b16 %v604
        %v652 = vunpack.c.l.b16 %v618
        %v653 = vunpack.c.l.b16 %v632
        %v654 = vunpack.c.l.b16 %v646
        %v655 = vpack.c.b16 %v648, %v647
        %v656 = vpack.c.b16 %v650, %v649
        %v657 = vpack.c.b16 %v652, %v651
        %v658 = vpack.c.b16 %v654, %v653
        %vm659 = vcmask 64512
        %v661 = vsel %vm659, %v655, 0
        %v664 = vsel %vm659, %v656, 0
        %v667 = vsel %vm659, %v657, 0
        %v670 = vsel %vm659, %v658, 0
        %vm672 = vcmask 1043456
        %v674 = vsel %vm672, %v480, 0
        %676 = vmatprep.subr.bf16.mxu0 0
        %677 = vmatpush1.bf16.msra.mxu0 %v674
        %678 = vmatprep.subr.bf16.mxu0 0
        %679 = vmatpush1.bf16.msra.mxu0 0
        %680 = vmatprep.subr.bf16.mxu0 0
        %681 = vmatpush1.bf16.msra.mxu0 0
        %682 = vmatprep.subr.bf16.mxu0 0
        %683 = vmatpush1.bf16.msra.mxu0 0
        %684 = vmatprep.subr.bf16.mxu0 0
        %685 = vmatpush1.bf16.msra.mxu0 0
        %686 = vmatprep.subr.bf16.mxu0 0
        %687 = vmatpush1.bf16.msra.mxu0 0
        %688 = vmatprep.subr.bf16.mxu0 0
        %689 = vmatpush1.bf16.msra.mxu0 0
        %690 = vmatprep.subr.bf16.mxu0 0
        %691 = vmatpush1.bf16.msra.mxu0 0
        %692 = vmatprep.subr.bf16.mxu0 0
        %693 = vmatpush1.bf16.msra.mxu0 0
        %694 = vmatprep.subr.bf16.mxu0 0
        %695 = vmatpush1.bf16.msra.mxu0 0
        %696 = vmatprep.subr.bf16.mxu0 0
        %697 = vmatpush1.bf16.msra.mxu0 0
        %698 = vmatprep.subr.bf16.mxu0 0
        %699 = vmatpush1.bf16.msra.mxu0 0
        %700 = vmatprep.subr.bf16.mxu0 0
        %701 = vmatpush1.bf16.msra.mxu0 0
        %702 = vmatprep.subr.bf16.mxu0 0
        %703 = vmatpush1.bf16.msra.mxu0 0
        %704 = vmatprep.subr.bf16.mxu0 0
        %705 = vmatpush1.bf16.msra.mxu0 0
        %706 = vmatprep.subr.bf16.mxu0 0
        %707 = vmatpush1.bf16.msra.mxu0 0
        %708 = vmatprep.mubr.bf16.mxu0 0
        %709 = vmatmul.mubr.bf16.gmra.mrb[0].mxu0 %v661
        %v710 = vpop.f32.mrb[0].mxu0
        %v711 = vadd.f32 0.0, %v710
        %v712 = vpop.f32.mrb[0].mxu0
        %v713 = vpop.f32.mrb[0].mxu0
        %v714 = vadd.f32 0.0, %v713
        %v715 = vpop.f32.mrb[0].mxu0
        %716 = vmatprep.mubr.bf16.mxu0 0
        %717 = vmatmul.mubr.bf16.gmra.mrb[0].mxu0 %v664
        %v718 = vpop.f32.mrb[0].mxu0
        %v719 = vadd.f32 0.0, %v718
        %v720 = vpop.f32.mrb[0].mxu0
        %v721 = vpop.f32.mrb[0].mxu0
        %v722 = vadd.f32 0.0, %v721
        %v723 = vpop.f32.mrb[0].mxu0
        %724 = vmatprep.mubr.bf16.mxu0 0
        %725 = vmatmul.mubr.bf16.gmra.mrb[0].mxu0 %v667
        %v726 = vpop.f32.mrb[0].mxu0
        %v727 = vadd.f32 0.0, %v726
        %v728 = vpop.f32.mrb[0].mxu0
        %v729 = vpop.f32.mrb[0].mxu0
        %v730 = vadd.f32 0.0, %v729
        %v731 = vpop.f32.mrb[0].mxu0
        %732 = vmatprep.mubr.bf16.mxu0 0
        %733 = vmatmul.mubr.bf16.gmra.mrb[0].mxu0 %v670
        %v734 = vpop.f32.mrb[0].mxu0
        %v735 = vadd.f32 0.0, %v734
        %v736 = vpop.f32.mrb[0].mxu0
        %v737 = vpop.f32.mrb[0].mxu0
        %v738 = vadd.f32 0.0, %v737
        %v739 = vpop.f32.mrb[0].mxu0
        %740 = vdwg.mxu0
        %v749 = vunpack.c.l.b16 %v492
        %v750 = vunpack.c.l.b16 %v494
        %v751 = vunpack.c.l.b16 %v496
        %v752 = vunpack.c.l.b16 %v498
        %v753 = vunpack.c.l.b16 %v500
        %v754 = vunpack.c.l.b16 %v502
        %v755 = vunpack.c.l.b16 %v504
        %v756 = vunpack.c.l.b16 %v506
        %v757 = vpack.c.b16 %v750, %v749
        %v758 = vpack.c.b16 %v752, %v751
        %v759 = vpack.c.b16 %v754, %v753
        %v760 = vpack.c.b16 %v756, %v755
        %v762 = vsel %vm659, %v757, 0
        %v765 = vsel %vm659, %v758, 0
        %v768 = vsel %vm659, %v759, 0
        %v771 = vsel %vm659, %v760, 0
        %v774 = vsel %vm672, %v479, 0
        %776 = vmatprep.subr.bf16.mxu0 0
        %777 = vmatpush1.bf16.msra.mxu0 %v774
        %778 = vmatprep.subr.bf16.mxu0 0
        %779 = vmatpush1.bf16.msra.mxu0 0
        %780 = vmatprep.subr.bf16.mxu0 0
        %781 = vmatpush1.bf16.msra.mxu0 0
        %782 = vmatprep.subr.bf16.mxu0 0
        %783 = vmatpush1.bf16.msra.mxu0 0
        %784 = vmatprep.subr.bf16.mxu0 0
        %785 = vmatpush1.bf16.msra.mxu0 0
        %786 = vmatprep.subr.bf16.mxu0 0
        %787 = vmatpush1.bf16.msra.mxu0 0
        %788 = vmatprep.subr.bf16.mxu0 0
        %789 = vmatpush1.bf16.msra.mxu0 0
        %790 = vmatprep.subr.bf16.mxu0 0
        %791 = vmatpush1.bf16.msra.mxu0 0
        %792 = vmatprep.subr.bf16.mxu0 0
        %793 = vmatpush1.bf16.msra.mxu0 0
        %794 = vmatprep.subr.bf16.mxu0 0
        %795 = vmatpush1.bf16.msra.mxu0 0
        %796 = vmatprep.subr.bf16.mxu0 0
        %797 = vmatpush1.bf16.msra.mxu0 0
        %798 = vmatprep.subr.bf16.mxu0 0
        %799 = vmatpush1.bf16.msra.mxu0 0
        %800 = vmatprep.subr.bf16.mxu0 0
        %801 = vmatpush1.bf16.msra.mxu0 0
        %802 = vmatprep.subr.bf16.mxu0 0
        %803 = vmatpush1.bf16.msra.mxu0 0
        %804 = vmatprep.subr.bf16.mxu0 0
        %805 = vmatpush1.bf16.msra.mxu0 0
        %806 = vmatprep.subr.bf16.mxu0 0
        %807 = vmatpush1.bf16.msra.mxu0 0
        %808 = vmatprep.mubr.bf16.mxu0 0
        %809 = vmatmul.mubr.bf16.gmra.mrb[0].mxu0 %v762
        %v810 = vpop.f32.mrb[0].mxu0
        %v811 = vadd.f32 %v711, %v810
        %v812 = vpop.f32.mrb[0].mxu0
        %v813 = vpop.f32.mrb[0].mxu0
        %v814 = vadd.f32 %v714, %v813
        %v815 = vpop.f32.mrb[0].mxu0
        %816 = vmatprep.mubr.bf16.mxu0 0
        %817 = vmatmul.mubr.bf16.gmra.mrb[0].mxu0 %v765
        %v818 = vpop.f32.mrb[0].mxu0
        %v819 = vadd.f32 %v719, %v818
        %v820 = vpop.f32.mrb[0].mxu0
        %v821 = vpop.f32.mrb[0].mxu0
        %v822 = vadd.f32 %v722, %v821
        %v823 = vpop.f32.mrb[0].mxu0
        %824 = vmatprep.mubr.bf16.mxu0 0
        %825 = vmatmul.mubr.bf16.gmra.mrb[0].mxu0 %v768
        %v826 = vpop.f32.mrb[0].mxu0
        %v827 = vadd.f32 %v727, %v826
        %v828 = vpop.f32.mrb[0].mxu0
        %v829 = vpop.f32.mrb[0].mxu0
        %v830 = vadd.f32 %v730, %v829
        %v831 = vpop.f32.mrb[0].mxu0
        %832 = vmatprep.mubr.bf16.mxu0 0
        %833 = vmatmul.mubr.bf16.gmra.mrb[0].mxu0 %v771
        %v834 = vpop.f32.mrb[0].mxu0
        %v835 = vadd.f32 %v735, %v834
        %v836 = vpop.f32.mrb[0].mxu0
        %v837 = vpop.f32.mrb[0].mxu0
        %v838 = vadd.f32 %v738, %v837
        %v839 = vpop.f32.mrb[0].mxu0
        %840 = vdwg.mxu0
        %vm849 = vcmask 1042432
        %vm850 = vcmask 1046532
        %vm851 = vmor %vm849, %vm850
        %v852 = vrot.slane %v492, 5
        %v853 = vrot.slane %v852, 4
        %v854 = vrot.slane %v493, 5
        %v855 = vsel %vm851, %v853, %v854
        %v856 = vrot.slane %v494, 5
        %v857 = vrot.slane %v856, 4
        %v858 = vrot.slane %v495, 5
        %v859 = vsel %vm851, %v857, %v858
        %v860 = vrot.slane %v496, 5
        %v861 = vrot.slane %v860, 4
        %v862 = vrot.slane %v497, 5
        %v863 = vsel %vm851, %v861, %v862
        %v864 = vrot.slane %v498, 5
        %v865 = vrot.slane %v864, 4
        %v866 = vrot.slane %v499, 5
        %v867 = vsel %vm851, %v865, %v866
        %v868 = vrot.slane %v500, 5
        %v869 = vrot.slane %v868, 4
        %v870 = vrot.slane %v501, 5
        %v871 = vsel %vm851, %v869, %v870
        %v872 = vrot.slane %v502, 5
        %v873 = vrot.slane %v872, 4
        %v874 = vrot.slane %v503, 5
        %v875 = vsel %vm851, %v873, %v874
        %v876 = vrot.slane %v504, 5
        %v877 = vrot.slane %v876, 4
        %v878 = vrot.slane %v505, 5
        %v879 = vsel %vm851, %v877, %v878
        %v880 = vrot.slane %v506, 5
        %v881 = vrot.slane %v880, 4
        %v882 = vrot.slane %v507, 5
        %v883 = vsel %vm851, %v881, %v882
        %v884 = vunpack.c.l.b16 %v855
        %v885 = vunpack.c.l.b16 %v859
        %v886 = vunpack.c.l.b16 %v863
        %v887 = vunpack.c.l.b16 %v867
        %v888 = vunpack.c.l.b16 %v871
        %v889 = vunpack.c.l.b16 %v875
        %v890 = vunpack.c.l.b16 %v879
        %v891 = vunpack.c.l.b16 %v883
        %v892 = vpack.c.b16 %v885, %v884
        %v893 = vpack.c.b16 %v887, %v886
        %v894 = vpack.c.b16 %v889, %v888
        %v895 = vpack.c.b16 %v891, %v890
        %v897 = vsel %vm659, %v892, 0
        %v900 = vsel %vm659, %v893, 0
        %v903 = vsel %vm659, %v894, 0
        %v906 = vsel %vm659, %v895, 0
        %v909 = vsel %vm672, %v481, 0
        %911 = vmatprep.subr.bf16.mxu0 0
        %912 = vmatpush1.bf16.msra.mxu0 %v909
        %913 = vmatprep.subr.bf16.mxu0 0
        %914 = vmatpush1.bf16.msra.mxu0 0
        %915 = vmatprep.subr.bf16.mxu0 0
        %916 = vmatpush1.bf16.msra.mxu0 0
        %917 = vmatprep.subr.bf16.mxu0 0
        %918 = vmatpush1.bf16.msra.mxu0 0
        %919 = vmatprep.subr.bf16.mxu0 0
        %920 = vmatpush1.bf16.msra.mxu0 0
        %921 = vmatprep.subr.bf16.mxu0 0
        %922 = vmatpush1.bf16.msra.mxu0 0
        %923 = vmatprep.subr.bf16.mxu0 0
        %924 = vmatpush1.bf16.msra.mxu0 0
        %925 = vmatprep.subr.bf16.mxu0 0
        %926 = vmatpush1.bf16.msra.mxu0 0
        %927 = vmatprep.subr.bf16.mxu0 0
        %928 = vmatpush1.bf16.msra.mxu0 0
        %929 = vmatprep.subr.bf16.mxu0 0
        %930 = vmatpush1.bf16.msra.mxu0 0
        %931 = vmatprep.subr.bf16.mxu0 0
        %932 = vmatpush1.bf16.msra.mxu0 0
        %933 = vmatprep.subr.bf16.mxu0 0
        %934 = vmatpush1.bf16.msra.mxu0 0
        %935 = vmatprep.subr.bf16.mxu0 0
        %936 = vmatpush1.bf16.msra.mxu0 0
        %937 = vmatprep.subr.bf16.mxu0 0
        %938 = vmatpush1.bf16.msra.mxu0 0
        %939 = vmatprep.subr.bf16.mxu0 0
        %940 = vmatpush1.bf16.msra.mxu0 0
        %941 = vmatprep.subr.bf16.mxu0 0
        %942 = vmatpush1.bf16.msra.mxu0 0
        %943 = vmatprep.mubr.bf16.mxu0 0
        %944 = vmatmul.mubr.bf16.gmra.mrb[0].mxu0 %v897
        %v945 = vpop.f32.mrb[0].mxu0
        %v946 = vadd.f32 0.0, %v945
        %v947 = vpop.f32.mrb[0].mxu0
        %v948 = vpop.f32.mrb[0].mxu0
        %v949 = vadd.f32 0.0, %v948
        %v950 = vpop.f32.mrb[0].mxu0
        %951 = vmatprep.mubr.bf16.mxu0 0
        %952 = vmatmul.mubr.bf16.gmra.mrb[0].mxu0 %v900
        %v953 = vpop.f32.mrb[0].mxu0
        %v954 = vadd.f32 0.0, %v953
        %v955 = vpop.f32.mrb[0].mxu0
        %v956 = vpop.f32.mrb[0].mxu0
        %v957 = vadd.f32 0.0, %v956
        %v958 = vpop.f32.mrb[0].mxu0
        %959 = vmatprep.mubr.bf16.mxu0 0
        %960 = vmatmul.mubr.bf16.gmra.mrb[0].mxu0 %v903
        %v961 = vpop.f32.mrb[0].mxu0
        %v962 = vadd.f32 0.0, %v961
        %v963 = vpop.f32.mrb[0].mxu0
        %v964 = vpop.f32.mrb[0].mxu0
        %v965 = vadd.f32 0.0, %v964
        %v966 = vpop.f32.mrb[0].mxu0
        %967 = vmatprep.mubr.bf16.mxu0 0
        %968 = vmatmul.mubr.bf16.gmra.mrb[0].mxu0 %v906
        %v969 = vpop.f32.mrb[0].mxu0
        %v970 = vadd.f32 0.0, %v969
        %v971 = vpop.f32.mrb[0].mxu0
        %v972 = vpop.f32.mrb[0].mxu0
        %v973 = vadd.f32 0.0, %v972
        %v974 = vpop.f32.mrb[0].mxu0
        %975 = vdwg.mxu0
        %v976 = vadd.f32 %v811, %v946
        %v977 = vadd.f32 %v814, %v949
        %v978 = vadd.f32 %v819, %v954
        %v979 = vadd.f32 %v822, %v957
        %v980 = vadd.f32 %v827, %v962
        %v981 = vadd.f32 %v830, %v965
        %v982 = vadd.f32 %v835, %v970
        %v983 = vadd.f32 %v838, %v973
        %v985 = vunpack.c.l.b16 %v508
        %v986 = vpack.c.b16 %v751, %v750
        %v987 = vpack.c.b16 %v753, %v752
        %v988 = vpack.c.b16 %v755, %v754
        %v989 = vpack.c.b16 %v985, %v756
        %v991 = vsel %vm659, %v986, 0
        %v994 = vsel %vm659, %v987, 0
        %v997 = vsel %vm659, %v988, 0
        %v1000 = vsel %vm659, %v989, 0
        %v1003 = vsel %vm672, %v482, 0
        %1005 = vmatprep.subr.bf16.mxu0 0
        %1006 = vmatpush1.bf16.msra.mxu0 %v1003
        %1007 = vmatprep.subr.bf16.mxu0 0
        %1008 = vmatpush1.bf16.msra.mxu0 0
        %1009 = vmatprep.subr.bf16.mxu0 0
        %1010 = vmatpush1.bf16.msra.mxu0 0
        %1011 = vmatprep.subr.bf16.mxu0 0
        %1012 = vmatpush1.bf16.msra.mxu0 0
        %1013 = vmatprep.subr.bf16.mxu0 0
        %1014 = vmatpush1.bf16.msra.mxu0 0
        %1015 = vmatprep.subr.bf16.mxu0 0
        %1016 = vmatpush1.bf16.msra.mxu0 0
        %1017 = vmatprep.subr.bf16.mxu0 0
        %1018 = vmatpush1.bf16.msra.mxu0 0
        %1019 = vmatprep.subr.bf16.mxu0 0
        %1020 = vmatpush1.bf16.msra.mxu0 0
        %1021 = vmatprep.subr.bf16.mxu0 0
        %1022 = vmatpush1.bf16.msra.mxu0 0
        %1023 = vmatprep.subr.bf16.mxu0 0
        %1024 = vmatpush1.bf16.msra.mxu0 0
        %1025 = vmatprep.subr.bf16.mxu0 0
        %1026 = vmatpush1.bf16.msra.mxu0 0
        %1027 = vmatprep.subr.bf16.mxu0 0
        %1028 = vmatpush1.bf16.msra.mxu0 0
        %1029 = vmatprep.subr.bf16.mxu0 0
        %1030 = vmatpush1.bf16.msra.mxu0 0
        %1031 = vmatprep.subr.bf16.mxu0 0
        %1032 = vmatpush1.bf16.msra.mxu0 0
        %1033 = vmatprep.subr.bf16.mxu0 0
        %1034 = vmatpush1.bf16.msra.mxu0 0
        %1035 = vmatprep.subr.bf16.mxu0 0
        %1036 = vmatpush1.bf16.msra.mxu0 0
        %1037 = vmatprep.mubr.bf16.mxu0 0
        %1038 = vmatmul.mubr.bf16.gmra.mrb[0].mxu0 %v991
        %v1039 = vpop.f32.mrb[0].mxu0
        %v1040 = vadd.f32 0.0, %v1039
        %v1041 = vpop.f32.mrb[0].mxu0
        %v1042 = vpop.f32.mrb[0].mxu0
        %v1043 = vadd.f32 0.0, %v1042
        %v1044 = vpop.f32.mrb[0].mxu0
        %1045 = vmatprep.mubr.bf16.mxu0 0
        %1046 = vmatmul.mubr.bf16.gmra.mrb[0].mxu0 %v994
        %v1047 = vpop.f32.mrb[0].mxu0
        %v1048 = vadd.f32 0.0, %v1047
        %v1049 = vpop.f32.mrb[0].mxu0
        %v1050 = vpop.f32.mrb[0].mxu0
        %v1051 = vadd.f32 0.0, %v1050
        %v1052 = vpop.f32.mrb[0].mxu0
        %1053 = vmatprep.mubr.bf16.mxu0 0
        %1054 = vmatmul.mubr.bf16.gmra.mrb[0].mxu0 %v997
        %v1055 = vpop.f32.mrb[0].mxu0
        %v1056 = vadd.f32 0.0, %v1055
        %v1057 = vpop.f32.mrb[0].mxu0
        %v1058 = vpop.f32.mrb[0].mxu0
        %v1059 = vadd.f32 0.0, %v1058
        %v1060 = vpop.f32.mrb[0].mxu0
        %1061 = vmatprep.mubr.bf16.mxu0 0
        %1062 = vmatmul.mubr.bf16.gmra.mrb[0].mxu0 %v1000
        %v1063 = vpop.f32.mrb[0].mxu0
        %v1064 = vadd.f32 0.0, %v1063
        %v1065 = vpop.f32.mrb[0].mxu0
        %v1066 = vpop.f32.mrb[0].mxu0
        %v1067 = vadd.f32 0.0, %v1066
        %v1068 = vpop.f32.mrb[0].mxu0
        %1069 = vdwg.mxu0
        %v1070 = vadd.f32 %v976, %v1040
        %v1071 = vadd.f32 %v977, %v1043
        %v1072 = vadd.f32 %v978, %v1048
        %v1073 = vadd.f32 %v979, %v1051
        %v1074 = vadd.f32 %v980, %v1056
        %v1075 = vadd.f32 %v981, %v1059
        %v1076 = vadd.f32 %v982, %v1064
        %v1077 = vadd.f32 %v983, %v1067
        %v1079 = vshrl.u32 %v508, 16
        %v1081 = vrot.slane %v1079, 4
        %v1082 = vshll.u32 %v508, 16
        %v1084 = vrot.slane %v1082, 5
        %v1085 = vor.u32 %v1081, %v1084
        %v1086 = vrot.slane %v1085, 4
        %v1088 = vshll.u32 %v509, 16
        %v1090 = vrot.slane %v1088, 5
        %v1091 = vsel %vm534, %v1086, %v1090
        %v1092 = vunpack.c.l.b16 %v1091
        %v1093 = vpack.c.b16 %v649, %v648
        %v1094 = vpack.c.b16 %v651, %v650
        %v1095 = vpack.c.b16 %v653, %v652
        %v1096 = vpack.c.b16 %v1092, %v654
        %v1098 = vsel %vm659, %v1093, 0
        %v1101 = vsel %vm659, %v1094, 0
        %v1104 = vsel %vm659, %v1095, 0
        %v1107 = vsel %vm659, %v1096, 0
        %v1110 = vsel %vm672, %v483, 0
        %1112 = vmatprep.subr.bf16.mxu0 0
        %1113 = vmatpush1.bf16.msra.mxu0 %v1110
        %1114 = vmatprep.subr.bf16.mxu0 0
        %1115 = vmatpush1.bf16.msra.mxu0 0
        %1116 = vmatprep.subr.bf16.mxu0 0
        %1117 = vmatpush1.bf16.msra.mxu0 0
        %1118 = vmatprep.subr.bf16.mxu0 0
        %1119 = vmatpush1.bf16.msra.mxu0 0
        %1120 = vmatprep.subr.bf16.mxu0 0
        %1121 = vmatpush1.bf16.msra.mxu0 0
        %1122 = vmatprep.subr.bf16.mxu0 0
        %1123 = vmatpush1.bf16.msra.mxu0 0
        %1124 = vmatprep.subr.bf16.mxu0 0
        %1125 = vmatpush1.bf16.msra.mxu0 0
        %1126 = vmatprep.subr.bf16.mxu0 0
        %1127 = vmatpush1.bf16.msra.mxu0 0
        %1128 = vmatprep.subr.bf16.mxu0 0
        %1129 = vmatpush1.bf16.msra.mxu0 0
        %1130 = vmatprep.subr.bf16.mxu0 0
        %1131 = vmatpush1.bf16.msra.mxu0 0
        %1132 = vmatprep.subr.bf16.mxu0 0
        %1133 = vmatpush1.bf16.msra.mxu0 0
        %1134 = vmatprep.subr.bf16.mxu0 0
        %1135 = vmatpush1.bf16.msra.mxu0 0
        %1136 = vmatprep.subr.bf16.mxu0 0
        %1137 = vmatpush1.bf16.msra.mxu0 0
        %1138 = vmatprep.subr.bf16.mxu0 0
        %1139 = vmatpush1.bf16.msra.mxu0 0
        %1140 = vmatprep.subr.bf16.mxu0 0
        %1141 = vmatpush1.bf16.msra.mxu0 0
        %1142 = vmatprep.subr.bf16.mxu0 0
        %1143 = vmatpush1.bf16.msra.mxu0 0
        %1144 = vmatprep.mubr.bf16.mxu0 0
        %1145 = vmatmul.mubr.bf16.gmra.mrb[0].mxu0 %v1098
        %v1146 = vpop.f32.mrb[0].mxu0
        %v1147 = vadd.f32 0.0, %v1146
        %v1148 = vpop.f32.mrb[0].mxu0
        %v1149 = vpop.f32.mrb[0].mxu0
        %v1150 = vadd.f32 0.0, %v1149
        %v1151 = vpop.f32.mrb[0].mxu0
        %1152 = vmatprep.mubr.bf16.mxu0 0
        %1153 = vmatmul.mubr.bf16.gmra.mrb[0].mxu0 %v1101
        %v1154 = vpop.f32.mrb[0].mxu0
        %v1155 = vadd.f32 0.0, %v1154
        %v1156 = vpop.f32.mrb[0].mxu0
        %v1157 = vpop.f32.mrb[0].mxu0
        %v1158 = vadd.f32 0.0, %v1157
        %v1159 = vpop.f32.mrb[0].mxu0
        %1160 = vmatprep.mubr.bf16.mxu0 0
        %1161 = vmatmul.mubr.bf16.gmra.mrb[0].mxu0 %v1104
        %v1162 = vpop.f32.mrb[0].mxu0
        %v1163 = vadd.f32 0.0, %v1162
        %v1164 = vpop.f32.mrb[0].mxu0
        %v1165 = vpop.f32.mrb[0].mxu0
        %v1166 = vadd.f32 0.0, %v1165
        %v1167 = vpop.f32.mrb[0].mxu0
        %1168 = vmatprep.mubr.bf16.mxu0 0
        %1169 = vmatmul.mubr.bf16.gmra.mrb[0].mxu0 %v1107
        %v1170 = vpop.f32.mrb[0].mxu0
        %v1171 = vadd.f32 0.0, %v1170
        %v1172 = vpop.f32.mrb[0].mxu0
        %v1173 = vpop.f32.mrb[0].mxu0
        %v1174 = vadd.f32 0.0, %v1173
        %v1175 = vpop.f32.mrb[0].mxu0
        %1176 = vdwg.mxu0
        %v1177 = vadd.f32 %v1070, %v1147
        %v1178 = vadd.f32 %v1071, %v1150
        %v1179 = vadd.f32 %v1072, %v1155
        %v1180 = vadd.f32 %v1073, %v1158
        %v1181 = vadd.f32 %v1074, %v1163
        %v1182 = vadd.f32 %v1075, %v1166
        %v1183 = vadd.f32 %v1076, %v1171
        %v1184 = vadd.f32 %v1077, %v1174
        %v1186 = vrot.slane %v508, 5
        %v1187 = vrot.slane %v1186, 4
        %v1188 = vrot.slane %v509, 5
        %v1189 = vsel %vm851, %v1187, %v1188
        %v1190 = vunpack.c.l.b16 %v1189
        %v1191 = vpack.c.b16 %v886, %v885
        %v1192 = vpack.c.b16 %v888, %v887
        %v1193 = vpack.c.b16 %v890, %v889
        %v1194 = vpack.c.b16 %v1190, %v891
        %v1196 = vsel %vm659, %v1191, 0
        %v1199 = vsel %vm659, %v1192, 0
        %v1202 = vsel %vm659, %v1193, 0
        %v1205 = vsel %vm659, %v1194, 0
        %v1208 = vsel %vm672, %v484, 0
        %1210 = vmatprep.subr.bf16.mxu0 0
        %1211 = vmatpush1.bf16.msra.mxu0 %v1208
        %1212 = vmatprep.subr.bf16.mxu0 0
        %1213 = vmatpush1.bf16.msra.mxu0 0
        %1214 = vmatprep.subr.bf16.mxu0 0
        %1215 = vmatpush1.bf16.msra.mxu0 0
        %1216 = vmatprep.subr.bf16.mxu0 0
        %1217 = vmatpush1.bf16.msra.mxu0 0
        %1218 = vmatprep.subr.bf16.mxu0 0
        %1219 = vmatpush1.bf16.msra.mxu0 0
        %1220 = vmatprep.subr.bf16.mxu0 0
        %1221 = vmatpush1.bf16.msra.mxu0 0
        %1222 = vmatprep.subr.bf16.mxu0 0
        %1223 = vmatpush1.bf16.msra.mxu0 0
        %1224 = vmatprep.subr.bf16.mxu0 0
        %1225 = vmatpush1.bf16.msra.mxu0 0
        %1226 = vmatprep.subr.bf16.mxu0 0
        %1227 = vmatpush1.bf16.msra.mxu0 0
        %1228 = vmatprep.subr.bf16.mxu0 0
        %1229 = vmatpush1.bf16.msra.mxu0 0
        %1230 = vmatprep.subr.bf16.mxu0 0
        %1231 = vmatpush1.bf16.msra.mxu0 0
        %1232 = vmatprep.subr.bf16.mxu0 0
        %1233 = vmatpush1.bf16.msra.mxu0 0
        %1234 = vmatprep.subr.bf16.mxu0 0
        %1235 = vmatpush1.bf16.msra.mxu0 0
        %1236 = vmatprep.subr.bf16.mxu0 0
        %1237 = vmatpush1.bf16.msra.mxu0 0
        %1238 = vmatprep.subr.bf16.mxu0 0
        %1239 = vmatpush1.bf16.msra.mxu0 0
        %1240 = vmatprep.subr.bf16.mxu0 0
        %1241 = vmatpush1.bf16.msra.mxu0 0
        %1242 = vmatprep.mubr.bf16.mxu0 0
        %1243 = vmatmul.mubr.bf16.gmra.mrb[0].mxu0 %v1196
        %v1244 = vpop.f32.mrb[0].mxu0
        %v1245 = vadd.f32 0.0, %v1244
        %v1246 = vpop.f32.mrb[0].mxu0
        %v1247 = vpop.f32.mrb[0].mxu0
        %v1248 = vadd.f32 0.0, %v1247
        %v1249 = vpop.f32.mrb[0].mxu0
        %1250 = vmatprep.mubr.bf16.mxu0 0
        %1251 = vmatmul.mubr.bf16.gmra.mrb[0].mxu0 %v1199
        %v1252 = vpop.f32.mrb[0].mxu0
        %v1253 = vadd.f32 0.0, %v1252
        %v1254 = vpop.f32.mrb[0].mxu0
        %v1255 = vpop.f32.mrb[0].mxu0
        %v1256 = vadd.f32 0.0, %v1255
        %v1257 = vpop.f32.mrb[0].mxu0
        %1258 = vmatprep.mubr.bf16.mxu0 0
        %1259 = vmatmul.mubr.bf16.gmra.mrb[0].mxu0 %v1202
        %v1260 = vpop.f32.mrb[0].mxu0
        %v1261 = vadd.f32 0.0, %v1260
        %v1262 = vpop.f32.mrb[0].mxu0
        %v1263 = vpop.f32.mrb[0].mxu0
        %v1264 = vadd.f32 0.0, %v1263
        %v1265 = vpop.f32.mrb[0].mxu0
        %1266 = vmatprep.mubr.bf16.mxu0 0
        %1267 = vmatmul.mubr.bf16.gmra.mrb[0].mxu0 %v1205
        %v1268 = vpop.f32.mrb[0].mxu0
        %v1269 = vadd.f32 0.0, %v1268
        %v1270 = vpop.f32.mrb[0].mxu0
        %v1271 = vpop.f32.mrb[0].mxu0
        %v1272 = vadd.f32 0.0, %v1271
        %v1273 = vpop.f32.mrb[0].mxu0
        %1274 = vdwg.mxu0
        %v1275 = vadd.f32 %v1177, %v1245
        %v1276 = vadd.f32 %v1178, %v1248
        %v1277 = vadd.f32 %v1179, %v1253
        %v1278 = vadd.f32 %v1180, %v1256
        %v1279 = vadd.f32 %v1181, %v1261
        %v1280 = vadd.f32 %v1182, %v1264
        %v1281 = vadd.f32 %v1183, %v1269
        %v1282 = vadd.f32 %v1184, %v1272
        %v1284 = vunpack.c.l.b16 %v510
        %v1285 = vpack.c.b16 %v1284, %v985
        %v1287 = vsel %vm659, %v1285, 0
        %v1290 = vsel %vm672, %v485, 0
        %1292 = vmatprep.subr.bf16.mxu0 0
        %1293 = vmatpush1.bf16.msra.mxu0 %v1290
        %1294 = vmatprep.subr.bf16.mxu0 0
        %1295 = vmatpush1.bf16.msra.mxu0 0
        %1296 = vmatprep.subr.bf16.mxu0 0
        %1297 = vmatpush1.bf16.msra.mxu0 0
        %1298 = vmatprep.subr.bf16.mxu0 0
        %1299 = vmatpush1.bf16.msra.mxu0 0
        %1300 = vmatprep.subr.bf16.mxu0 0
        %1301 = vmatpush1.bf16.msra.mxu0 0
        %1302 = vmatprep.subr.bf16.mxu0 0
        %1303 = vmatpush1.bf16.msra.mxu0 0
        %1304 = vmatprep.subr.bf16.mxu0 0
        %1305 = vmatpush1.bf16.msra.mxu0 0
        %1306 = vmatprep.subr.bf16.mxu0 0
        %1307 = vmatpush1.bf16.msra.mxu0 0
        %1308 = vmatprep.subr.bf16.mxu0 0
        %1309 = vmatpush1.bf16.msra.mxu0 0
        %1310 = vmatprep.subr.bf16.mxu0 0
        %1311 = vmatpush1.bf16.msra.mxu0 0
        %1312 = vmatprep.subr.bf16.mxu0 0
        %1313 = vmatpush1.bf16.msra.mxu0 0
        %1314 = vmatprep.subr.bf16.mxu0 0
        %1315 = vmatpush1.bf16.msra.mxu0 0
        %1316 = vmatprep.subr.bf16.mxu0 0
        %1317 = vmatpush1.bf16.msra.mxu0 0
        %1318 = vmatprep.subr.bf16.mxu0 0
        %1319 = vmatpush1.bf16.msra.mxu0 0
        %1320 = vmatprep.subr.bf16.mxu0 0
        %1321 = vmatpush1.bf16.msra.mxu0 0
        %1322 = vmatprep.subr.bf16.mxu0 0
        %1323 = vmatpush1.bf16.msra.mxu0 0
        %1324 = vmatprep.mubr.bf16.mxu0 0
        %1325 = vmatmul.mubr.bf16.gmra.mrb[0].mxu0 %v765
        %v1326 = vpop.f32.mrb[0].mxu0
        %v1327 = vadd.f32 0.0, %v1326
        %v1328 = vpop.f32.mrb[0].mxu0
        %v1329 = vpop.f32.mrb[0].mxu0
        %v1330 = vadd.f32 0.0, %v1329
        %v1331 = vpop.f32.mrb[0].mxu0
        %1332 = vmatprep.mubr.bf16.mxu0 0
        %1333 = vmatmul.mubr.bf16.gmra.mrb[0].mxu0 %v768
        %v1334 = vpop.f32.mrb[0].mxu0
        %v1335 = vadd.f32 0.0, %v1334
        %v1336 = vpop.f32.mrb[0].mxu0
        %v1337 = vpop.f32.mrb[0].mxu0
        %v1338 = vadd.f32 0.0, %v1337
        %v1339 = vpop.f32.mrb[0].mxu0
        %1340 = vmatprep.mubr.bf16.mxu0 0
        %1341 = vmatmul.mubr.bf16.gmra.mrb[0].mxu0 %v771
        %v1342 = vpop.f32.mrb[0].mxu0
        %v1343 = vadd.f32 0.0, %v1342
        %v1344 = vpop.f32.mrb[0].mxu0
        %v1345 = vpop.f32.mrb[0].mxu0
        %v1346 = vadd.f32 0.0, %v1345
        %v1347 = vpop.f32.mrb[0].mxu0
        %1348 = vmatprep.mubr.bf16.mxu0 0
        %1349 = vmatmul.mubr.bf16.gmra.mrb[0].mxu0 %v1287
        %v1350 = vpop.f32.mrb[0].mxu0
        %v1351 = vadd.f32 0.0, %v1350
        %v1352 = vpop.f32.mrb[0].mxu0
        %v1353 = vpop.f32.mrb[0].mxu0
        %v1354 = vadd.f32 0.0, %v1353
        %v1355 = vpop.f32.mrb[0].mxu0
        %1356 = vdwg.mxu0
        %v1357 = vadd.f32 %v1275, %v1327
        %v1358 = vadd.f32 %v1276, %v1330
        %v1359 = vadd.f32 %v1277, %v1335
        %v1360 = vadd.f32 %v1278, %v1338
        %v1361 = vadd.f32 %v1279, %v1343
        %v1362 = vadd.f32 %v1280, %v1346
        %v1363 = vadd.f32 %v1281, %v1351
        %v1364 = vadd.f32 %v1282, %v1354
        %v1366 = vshrl.u32 %v510, 16
        %v1368 = vrot.slane %v1366, 4
        %v1369 = vshll.u32 %v510, 16
        %v1371 = vrot.slane %v1369, 5
        %v1372 = vor.u32 %v1368, %v1371
        %v1373 = vrot.slane %v1372, 4
        %v1375 = vshll.u32 %v511, 16
        %v1377 = vrot.slane %v1375, 5
        %v1378 = vsel %vm534, %v1373, %v1377
        %v1379 = vunpack.c.l.b16 %v1378
        %v1380 = vpack.c.b16 %v1379, %v1092
        %v1382 = vsel %vm659, %v1380, 0
        %v1385 = vsel %vm672, %v486, 0
        %1387 = vmatprep.subr.bf16.mxu0 0
        %1388 = vmatpush1.bf16.msra.mxu0 %v1385
        %1389 = vmatprep.subr.bf16.mxu0 0
        %1390 = vmatpush1.bf16.msra.mxu0 0
        %1391 = vmatprep.subr.bf16.mxu0 0
        %1392 = vmatpush1.bf16.msra.mxu0 0
        %1393 = vmatprep.subr.bf16.mxu0 0
        %1394 = vmatpush1.bf16.msra.mxu0 0
        %1395 = vmatprep.subr.bf16.mxu0 0
        %1396 = vmatpush1.bf16.msra.mxu0 0
        %1397 = vmatprep.subr.bf16.mxu0 0
        %1398 = vmatpush1.bf16.msra.mxu0 0
        %1399 = vmatprep.subr.bf16.mxu0 0
        %1400 = vmatpush1.bf16.msra.mxu0 0
        %1401 = vmatprep.subr.bf16.mxu0 0
        %1402 = vmatpush1.bf16.msra.mxu0 0
        %1403 = vmatprep.subr.bf16.mxu0 0
        %1404 = vmatpush1.bf16.msra.mxu0 0
        %1405 = vmatprep.subr.bf16.mxu0 0
        %1406 = vmatpush1.bf16.msra.mxu0 0
        %1407 = vmatprep.subr.bf16.mxu0 0
        %1408 = vmatpush1.bf16.msra.mxu0 0
        %1409 = vmatprep.subr.bf16.mxu0 0
        %1410 = vmatpush1.bf16.msra.mxu0 0
        %1411 = vmatprep.subr.bf16.mxu0 0
        %1412 = vmatpush1.bf16.msra.mxu0 0
        %1413 = vmatprep.subr.bf16.mxu0 0
        %1414 = vmatpush1.bf16.msra.mxu0 0
        %1415 = vmatprep.subr.bf16.mxu0 0
        %1416 = vmatpush1.bf16.msra.mxu0 0
        %1417 = vmatprep.subr.bf16.mxu0 0
        %1418 = vmatpush1.bf16.msra.mxu0 0
        %1419 = vmatprep.mubr.bf16.mxu0 0
        %1420 = vmatmul.mubr.bf16.gmra.mrb[0].mxu0 %v664
        %v1421 = vpop.f32.mrb[0].mxu0
        %v1422 = vadd.f32 0.0, %v1421
        %v1423 = vpop.f32.mrb[0].mxu0
        %v1424 = vpop.f32.mrb[0].mxu0
        %v1425 = vadd.f32 0.0, %v1424
        %v1426 = vpop.f32.mrb[0].mxu0
        %1427 = vmatprep.mubr.bf16.mxu0 0
        %1428 = vmatmul.mubr.bf16.gmra.mrb[0].mxu0 %v667
        %v1429 = vpop.f32.mrb[0].mxu0
        %v1430 = vadd.f32 0.0, %v1429
        %v1431 = vpop.f32.mrb[0].mxu0
        %v1432 = vpop.f32.mrb[0].mxu0
        %v1433 = vadd.f32 0.0, %v1432
        %v1434 = vpop.f32.mrb[0].mxu0
        %1435 = vmatprep.mubr.bf16.mxu0 0
        %1436 = vmatmul.mubr.bf16.gmra.mrb[0].mxu0 %v670
        %v1437 = vpop.f32.mrb[0].mxu0
        %v1438 = vadd.f32 0.0, %v1437
        %v1439 = vpop.f32.mrb[0].mxu0
        %v1440 = vpop.f32.mrb[0].mxu0
        %v1441 = vadd.f32 0.0, %v1440
        %v1442 = vpop.f32.mrb[0].mxu0
        %1443 = vmatprep.mubr.bf16.mxu0 0
        %1444 = vmatmul.mubr.bf16.gmra.mrb[0].mxu0 %v1382
        %v1445 = vpop.f32.mrb[0].mxu0
        %v1446 = vadd.f32 0.0, %v1445
        %v1447 = vpop.f32.mrb[0].mxu0
        %v1448 = vpop.f32.mrb[0].mxu0
        %v1449 = vadd.f32 0.0, %v1448
        %v1450 = vpop.f32.mrb[0].mxu0
        %1451 = vdwg.mxu0
        %v1452 = vadd.f32 %v1357, %v1422
        %v1453 = vadd.f32 %v1358, %v1425
        %v1454 = vadd.f32 %v1359, %v1430
        %v1455 = vadd.f32 %v1360, %v1433
        %v1456 = vadd.f32 %v1361, %v1438
        %v1457 = vadd.f32 %v1362, %v1441
        %v1458 = vadd.f32 %v1363, %v1446
        %v1459 = vadd.f32 %v1364, %v1449
        %v1461 = vrot.slane %v510, 5
        %v1462 = vrot.slane %v1461, 4
        %v1463 = vrot.slane %v511, 5
        %v1464 = vsel %vm851, %v1462, %v1463
        %v1465 = vunpack.c.l.b16 %v1464
        %v1466 = vpack.c.b16 %v1465, %v1190
        %v1468 = vsel %vm659, %v1466, 0
        %v1471 = vsel %vm672, %v487, 0
        %1473 = vmatprep.subr.bf16.mxu0 0
        %1474 = vmatpush1.bf16.msra.mxu0 %v1471
        %1475 = vmatprep.subr.bf16.mxu0 0
        %1476 = vmatpush1.bf16.msra.mxu0 0
        %1477 = vmatprep.subr.bf16.mxu0 0
        %1478 = vmatpush1.bf16.msra.mxu0 0
        %1479 = vmatprep.subr.bf16.mxu0 0
        %1480 = vmatpush1.bf16.msra.mxu0 0
        %1481 = vmatprep.subr.bf16.mxu0 0
        %1482 = vmatpush1.bf16.msra.mxu0 0
        %1483 = vmatprep.subr.bf16.mxu0 0
        %1484 = vmatpush1.bf16.msra.mxu0 0
        %1485 = vmatprep.subr.bf16.mxu0 0
        %1486 = vmatpush1.bf16.msra.mxu0 0
        %1487 = vmatprep.subr.bf16.mxu0 0
        %1488 = vmatpush1.bf16.msra.mxu0 0
        %1489 = vmatprep.subr.bf16.mxu0 0
        %1490 = vmatpush1.bf16.msra.mxu0 0
        %1491 = vmatprep.subr.bf16.mxu0 0
        %1492 = vmatpush1.bf16.msra.mxu0 0
        %1493 = vmatprep.subr.bf16.mxu0 0
        %1494 = vmatpush1.bf16.msra.mxu0 0
        %1495 = vmatprep.subr.bf16.mxu0 0
        %1496 = vmatpush1.bf16.msra.mxu0 0
        %1497 = vmatprep.subr.bf16.mxu0 0
        %1498 = vmatpush1.bf16.msra.mxu0 0
        %1499 = vmatprep.subr.bf16.mxu0 0
        %1500 = vmatpush1.bf16.msra.mxu0 0
        %1501 = vmatprep.subr.bf16.mxu0 0
        %1502 = vmatpush1.bf16.msra.mxu0 0
        %1503 = vmatprep.subr.bf16.mxu0 0
        %1504 = vmatpush1.bf16.msra.mxu0 0
        %1505 = vmatprep.mubr.bf16.mxu0 0
        %1506 = vmatmul.mubr.bf16.gmra.mrb[0].mxu0 %v900
        %v1507 = vpop.f32.mrb[0].mxu0
        %v1508 = vadd.f32 0.0, %v1507
        %v1509 = vpop.f32.mrb[0].mxu0
        %v1510 = vpop.f32.mrb[0].mxu0
        %v1511 = vadd.f32 0.0, %v1510
        %v1512 = vpop.f32.mrb[0].mxu0
        %1513 = vmatprep.mubr.bf16.mxu0 0
        %1514 = vmatmul.mubr.bf16.gmra.mrb[0].mxu0 %v903
        %v1515 = vpop.f32.mrb[0].mxu0
        %v1516 = vadd.f32 0.0, %v1515
        %v1517 = vpop.f32.mrb[0].mxu0
        %v1518 = vpop.f32.mrb[0].mxu0
        %v1519 = vadd.f32 0.0, %v1518
        %v1520 = vpop.f32.mrb[0].mxu0
        %1521 = vmatprep.mubr.bf16.mxu0 0
        %1522 = vmatmul.mubr.bf16.gmra.mrb[0].mxu0 %v906
        %v1523 = vpop.f32.mrb[0].mxu0
        %v1524 = vadd.f32 0.0, %v1523
        %v1525 = vpop.f32.mrb[0].mxu0
        %v1526 = vpop.f32.mrb[0].mxu0
        %v1527 = vadd.f32 0.0, %v1526
        %v1528 = vpop.f32.mrb[0].mxu0
        %1529 = vmatprep.mubr.bf16.mxu0 0
        %1530 = vmatmul.mubr.bf16.gmra.mrb[0].mxu0 %v1468
        %v1531 = vpop.f32.mrb[0].mxu0
        %v1532 = vadd.f32 0.0, %v1531
        %v1533 = vpop.f32.mrb[0].mxu0
        %v1534 = vpop.f32.mrb[0].mxu0
        %v1535 = vadd.f32 0.0, %v1534
        %v1536 = vpop.f32.mrb[0].mxu0
        %1537 = vdwg.mxu0
        %v1538 = vadd.f32 %v1452, %v1508
        %v1539 = vadd.f32 %v1453, %v1511
        %v1540 = vadd.f32 %v1454, %v1516
        %v1541 = vadd.f32 %v1455, %v1519
        %v1542 = vadd.f32 %v1456, %v1524
        %v1543 = vadd.f32 %v1457, %v1527
        %v1544 = vadd.f32 %v1458, %v1532
        %v1545 = vadd.f32 %v1459, %v1535
        %v1547 = vlaneseq
        %v1548 = vshrl.u32 %v1547, 7
        %v1549 = vsub.s32 0, %v1548
        %v1550 = vrot.slane %v488, %v1549
        %v1552 = vadd.f32 %v1538, %v1550
        %v1553 = vadd.f32 %v1539, %v1550
        %v1554 = vadd.f32 %v1540, %v1550
        %v1555 = vadd.f32 %v1541, %v1550
        %v1556 = vadd.f32 %v1542, %v1550
        %v1557 = vadd.f32 %v1543, %v1550
        %v1558 = vadd.f32 %v1544, %v1550
        %v1559 = vadd.f32 %v1545, %v1550
        %vm1560 = vcmp.ge.f32.partialorder %v1552, 0.0
        %vm1561 = vcmp.ge.f32.partialorder %v1553, 0.0
        %vm1562 = vcmp.ge.f32.partialorder %v1554, 0.0
        %vm1563 = vcmp.ge.f32.partialorder %v1555, 0.0
        %vm1564 = vcmp.ge.f32.partialorder %v1556, 0.0
        %vm1565 = vcmp.ge.f32.partialorder %v1557, 0.0
        %vm1566 = vcmp.ge.f32.partialorder %v1558, 0.0
        %vm1567 = vcmp.ge.f32.partialorder %v1559, 0.0
        %v1569 = vlaneseq
        %v1570 = vshrl.u32 %v1569, 7
        %v1571 = vsub.s32 0, %v1570
        %v1572 = vrot.slane %v489, %v1571
        %v1574 = vmul.f32 %v1572, %v1552
        %v1575 = vmul.f32 %v1572, %v1553
        %v1576 = vmul.f32 %v1572, %v1554
        %v1577 = vmul.f32 %v1572, %v1555
        %v1578 = vmul.f32 %v1572, %v1556
        %v1579 = vmul.f32 %v1572, %v1557
        %v1580 = vmul.f32 %v1572, %v1558
        %v1581 = vmul.f32 %v1572, %v1559
        %v1582 = vsel %vm1560, %v1552, %v1574
        %v1583 = vsel %vm1561, %v1553, %v1575
        %v1584 = vsel %vm1562, %v1554, %v1576
        %v1585 = vsel %vm1563, %v1555, %v1577
        %v1586 = vsel %vm1564, %v1556, %v1578
        %v1587 = vsel %vm1565, %v1557, %v1579
        %v1588 = vsel %vm1566, %v1558, %v1580
        %v1589 = vsel %vm1567, %v1559, %v1581
        %v1590 = vpack.c.bf16 %v1583, %v1582
        %v1591 = vpack.c.bf16 %v1585, %v1584
        %v1592 = vpack.c.bf16 %v1587, %v1586
        %v1593 = vpack.c.bf16 %v1589, %v1588
        %v1594 = vld [vmem:[%s4] sm:$0xf]
        %v1595 = vld [vmem:[%s4 + $0x4] sm:$0xf]
        %v1596 = vld [vmem:[%s4 + $0x8] sm:$0xf]
        %v1597 = vld [vmem:[%s4 + $0xc] sm:$0xf]
        %v1598 = vld [vmem:[%s4 + $0x10] sm:$0xf]
        %v1599 = vld [vmem:[%s4 + $0x14] sm:$0xf]
        %v1600 = vld [vmem:[%s4 + $0x18] sm:$0xf]
        %v1601 = vld [vmem:[%s4 + $0x1c] sm:$0xf]
        %v1602 = vld [vmem:[%s4 + $0x20] sm:$0xf]
        %v1603 = vld [vmem:[%s4 + $0x24] sm:$0xf]
        %v1604 = vld [vmem:[%s4 + $0x28] sm:$0xf]
        %v1605 = vld [vmem:[%s4 + $0x2c] sm:$0xf]
        %v1606 = vld [vmem:[%s4 + $0x30] sm:$0xf]
        %v1607 = vld [vmem:[%s4 + $0x34] sm:$0xf]
        %v1608 = vld [vmem:[%s4 + $0x38] sm:$0xf]
        %v1609 = vld [vmem:[%s4 + $0x3c] sm:$0xf]
        %v1611 = vlaneseq
        %v1612 = vshrl.u32 %v1611, 7
        %v1613 = vsub.s32 0, %v1612
        %v1614 = vrot.slane %v490, %v1613
        %v1632 = vunpack.c.l.b16 %v1594
        %v1633 = vunpack.c.l.b16 %v1595
        %v1634 = vunpack.c.l.b16 %v1596
        %v1635 = vunpack.c.l.b16 %v1597
        %v1636 = vunpack.c.l.b16 %v1598
        %v1637 = vunpack.c.l.b16 %v1599
        %v1638 = vunpack.c.l.b16 %v1600
        %v1639 = vunpack.c.l.b16 %v1601
        %v1640 = vunpack.c.l.b16 %v1602
        %v1641 = vunpack.c.l.b16 %v1603
        %v1642 = vunpack.c.l.b16 %v1604
        %v1643 = vunpack.c.l.b16 %v1605
        %v1644 = vunpack.c.l.b16 %v1606
        %v1645 = vunpack.c.l.b16 %v1607
        %v1646 = vunpack.c.l.b16 %v1608
        %v1647 = vunpack.c.l.b16 %v1609
        %v1648 = vpack.c.b16 %v1633, %v1632
        %v1649 = vpack.c.b16 %v1635, %v1634
        %v1650 = vpack.c.b16 %v1637, %v1636
        %v1651 = vpack.c.b16 %v1639, %v1638
        %v1652 = vpack.c.b16 %v1641, %v1640
        %v1653 = vpack.c.b16 %v1643, %v1642
        %v1654 = vpack.c.b16 %v1645, %v1644
        %v1655 = vpack.c.b16 %v1647, %v1646
        %1664 = vmatprep.subr.bf16.mxu0 0
        %1665 = vmatpush1.bf16.msra.mxu0 %v1648
        %1666 = vmatprep.subr.bf16.mxu0 0
        %1667 = vmatpush1.bf16.msra.mxu0 %v1649
        %1668 = vmatprep.subr.bf16.mxu0 0
        %1669 = vmatpush1.bf16.msra.mxu0 %v1650
        %1670 = vmatprep.subr.bf16.mxu0 0
        %1671 = vmatpush1.bf16.msra.mxu0 %v1651
        %1672 = vmatprep.subr.bf16.mxu0 0
        %1673 = vmatpush1.bf16.msra.mxu0 %v1652
        %1674 = vmatprep.subr.bf16.mxu0 0
        %1675 = vmatpush1.bf16.msra.mxu0 %v1653
        %1676 = vmatprep.subr.bf16.mxu0 0
        %1677 = vmatpush1.bf16.msra.mxu0 %v1654
        %1678 = vmatprep.subr.bf16.mxu0 0
        %1679 = vmatpush1.bf16.msra.mxu0 %v1655
        %1680 = vmatprep.subr.bf16.mxu0 0
        %1681 = vmatpush1.bf16.msra.mxu0 0
        %1682 = vmatprep.subr.bf16.mxu0 0
        %1683 = vmatpush1.bf16.msra.mxu0 0
        %1684 = vmatprep.subr.bf16.mxu0 0
        %1685 = vmatpush1.bf16.msra.mxu0 0
        %1686 = vmatprep.subr.bf16.mxu0 0
        %1687 = vmatpush1.bf16.msra.mxu0 0
        %1688 = vmatprep.subr.bf16.mxu0 0
        %1689 = vmatpush1.bf16.msra.mxu0 0
        %1690 = vmatprep.subr.bf16.mxu0 0
        %1691 = vmatpush1.bf16.msra.mxu0 0
        %1692 = vmatprep.subr.bf16.mxu0 0
        %1693 = vmatpush1.bf16.msra.mxu0 0
        %1694 = vmatprep.subr.bf16.mxu0 0
        %1695 = vmatpush1.bf16.msra.mxu0 0
        %1696 = vmatprep.mubr.bf16.mxu0 0
        %1697 = vmatmul.mubr.bf16.gmra.mrb[0].mxu0 %v1590
        %v1698 = vpop.f32.mrb[0].mxu0
        %v1699 = vadd.f32 %v1614, %v1698
        %v1700 = vpop.f32.mrb[0].mxu0
        %v1701 = vpop.f32.mrb[0].mxu0
        %v1702 = vadd.f32 %v1614, %v1701
        %v1703 = vpop.f32.mrb[0].mxu0
        %1704 = vmatprep.mubr.bf16.mxu0 0
        %1705 = vmatmul.mubr.bf16.gmra.mrb[0].mxu0 %v1591
        %v1706 = vpop.f32.mrb[0].mxu0
        %v1707 = vadd.f32 %v1614, %v1706
        %v1708 = vpop.f32.mrb[0].mxu0
        %v1709 = vpop.f32.mrb[0].mxu0
        %v1710 = vadd.f32 %v1614, %v1709
        %v1711 = vpop.f32.mrb[0].mxu0
        %1712 = vmatprep.mubr.bf16.mxu0 0
        %1713 = vmatmul.mubr.bf16.gmra.mrb[0].mxu0 %v1592
        %v1714 = vpop.f32.mrb[0].mxu0
        %v1715 = vadd.f32 %v1614, %v1714
        %v1716 = vpop.f32.mrb[0].mxu0
        %v1717 = vpop.f32.mrb[0].mxu0
        %v1718 = vadd.f32 %v1614, %v1717
        %v1719 = vpop.f32.mrb[0].mxu0
        %1720 = vmatprep.mubr.bf16.mxu0 0
        %1721 = vmatmul.mubr.bf16.gmra.mrb[0].mxu0 %v1593
        %v1722 = vpop.f32.mrb[0].mxu0
        %v1723 = vadd.f32 %v1614, %v1722
        %v1724 = vpop.f32.mrb[0].mxu0
        %v1725 = vpop.f32.mrb[0].mxu0
        %v1726 = vadd.f32 %v1614, %v1725
        %v1727 = vpop.f32.mrb[0].mxu0
        %1728 = vdwg.mxu0
        %vm1729 = vcmp.ge.f32.partialorder %v1699, 0.0
        %vm1730 = vcmp.ge.f32.partialorder %v1702, 0.0
        %vm1731 = vcmp.ge.f32.partialorder %v1707, 0.0
        %vm1732 = vcmp.ge.f32.partialorder %v1710, 0.0
        %vm1733 = vcmp.ge.f32.partialorder %v1715, 0.0
        %vm1734 = vcmp.ge.f32.partialorder %v1718, 0.0
        %vm1735 = vcmp.ge.f32.partialorder %v1723, 0.0
        %vm1736 = vcmp.ge.f32.partialorder %v1726, 0.0
        %v1738 = vlaneseq
        %v1739 = vshrl.u32 %v1738, 7
        %v1740 = vsub.s32 0, %v1739
        %v1741 = vrot.slane %v491, %v1740
        %v1743 = vmul.f32 %v1741, %v1699
        %v1744 = vmul.f32 %v1741, %v1702
        %v1745 = vmul.f32 %v1741, %v1707
        %v1746 = vmul.f32 %v1741, %v1710
        %v1747 = vmul.f32 %v1741, %v1715
        %v1748 = vmul.f32 %v1741, %v1718
        %v1749 = vmul.f32 %v1741, %v1723
        %v1750 = vmul.f32 %v1741, %v1726
        %v1751 = vsel %vm1729, %v1699, %v1743
        %v1752 = vsel %vm1730, %v1702, %v1744
        %v1753 = vsel %vm1731, %v1707, %v1745
        %v1754 = vsel %vm1732, %v1710, %v1746
        %v1755 = vsel %vm1733, %v1715, %v1747
        %v1756 = vsel %vm1734, %v1718, %v1748
        %v1757 = vsel %vm1735, %v1723, %v1749
        %v1758 = vsel %vm1736, %v1726, %v1750
        %v1760 = vshrl.u32 %v512, 16
        %v1762 = vrot.slane %v1760, 4
        %v1763 = vshll.u32 %v512, 16
        %v1765 = vrot.slane %v1763, 5
        %v1766 = vor.u32 %v1762, %v1765
        %v1767 = vrot.slane %v1766, 4
        %v1769 = vshll.u32 %v513, 16
        %v1771 = vrot.slane %v1769, 5
        %v1772 = vsel %vm534, %v1767, %v1771
        %v1774 = vshrl.u32 %v514, 16
        %v1776 = vrot.slane %v1774, 4
        %v1777 = vshll.u32 %v514, 16
        %v1779 = vrot.slane %v1777, 5
        %v1780 = vor.u32 %v1776, %v1779
        %v1781 = vrot.slane %v1780, 4
        %v1783 = vshll.u32 %v515, 16
        %v1785 = vrot.slane %v1783, 5
        %v1786 = vsel %vm534, %v1781, %v1785
        %v1788 = vshrl.u32 %v516, 16
        %v1790 = vrot.slane %v1788, 4
        %v1791 = vshll.u32 %v516, 16
        %v1793 = vrot.slane %v1791, 5
        %v1794 = vor.u32 %v1790, %v1793
        %v1795 = vrot.slane %v1794, 4
        %v1797 = vshll.u32 %v517, 16
        %v1799 = vrot.slane %v1797, 5
        %v1800 = vsel %vm534, %v1795, %v1799
        %v1802 = vshrl.u32 %v518, 16
        %v1804 = vrot.slane %v1802, 4
        %v1805 = vshll.u32 %v518, 16
        %v1807 = vrot.slane %v1805, 5
        %v1808 = vor.u32 %v1804, %v1807
        %v1809 = vrot.slane %v1808, 4
        %v1811 = vshll.u32 %v519, 16
        %v1813 = vrot.slane %v1811, 5
        %v1814 = vsel %vm534, %v1809, %v1813
        %v1816 = vshrl.u32 %v520, 16
        %v1818 = vrot.slane %v1816, 4
        %v1819 = vshll.u32 %v520, 16
        %v1821 = vrot.slane %v1819, 5
        %v1822 = vor.u32 %v1818, %v1821
        %v1823 = vrot.slane %v1822, 4
        %v1825 = vshll.u32 %v521, 16
        %v1827 = vrot.slane %v1825, 5
        %v1828 = vsel %vm534, %v1823, %v1827
        %v1830 = vshrl.u32 %v522, 16
        %v1832 = vrot.slane %v1830, 4
        %v1833 = vshll.u32 %v522, 16
        %v1835 = vrot.slane %v1833, 5
        %v1836 = vor.u32 %v1832, %v1835
        %v1837 = vrot.slane %v1836, 4
        %v1839 = vshll.u32 %v523, 16
        %v1841 = vrot.slane %v1839, 5
        %v1842 = vsel %vm534, %v1837, %v1841
        %v1844 = vshrl.u32 %v524, 16
        %v1846 = vrot.slane %v1844, 4
        %v1847 = vshll.u32 %v524, 16
        %v1849 = vrot.slane %v1847, 5
        %v1850 = vor.u32 %v1846, %v1849
        %v1851 = vrot.slane %v1850, 4
        %v1853 = vshll.u32 %v525, 16
        %v1855 = vrot.slane %v1853, 5
        %v1856 = vsel %vm534, %v1851, %v1855
        %v1858 = vshrl.u32 %v526, 16
        %v1860 = vrot.slane %v1858, 4
        %v1861 = vshll.u32 %v526, 16
        %v1863 = vrot.slane %v1861, 5
        %v1864 = vor.u32 %v1860, %v1863
        %v1865 = vrot.slane %v1864, 4
        %v1867 = vshll.u32 %v527, 16
        %v1869 = vrot.slane %v1867, 5
        %v1870 = vsel %vm534, %v1865, %v1869
        %v1871 = vunpack.c.l.b16 %v1772
        %v1872 = vunpack.c.l.b16 %v1786
        %v1873 = vunpack.c.l.b16 %v1800
        %v1874 = vunpack.c.l.b16 %v1814
        %v1875 = vunpack.c.l.b16 %v1828
        %v1876 = vunpack.c.l.b16 %v1842
        %v1877 = vunpack.c.l.b16 %v1856
        %v1878 = vunpack.c.l.b16 %v1870
        %v1879 = vpack.c.b16 %v1872, %v1871
        %v1880 = vpack.c.b16 %v1874, %v1873
        %v1881 = vpack.c.b16 %v1876, %v1875
        %v1882 = vpack.c.b16 %v1878, %v1877
        %v1884 = vsel %vm659, %v1879, 0
        %v1887 = vsel %vm659, %v1880, 0
        %v1890 = vsel %vm659, %v1881, 0
        %v1893 = vsel %vm659, %v1882, 0
        %1895 = vmatprep.subr.bf16.mxu0 0
        %1896 = vmatpush1.bf16.msra.mxu0 %v674
        %1897 = vmatprep.subr.bf16.mxu0 0
        %1898 = vmatpush1.bf16.msra.mxu0 0
        %1899 = vmatprep.subr.bf16.mxu0 0
        %1900 = vmatpush1.bf16.msra.mxu0 0
        %1901 = vmatprep.subr.bf16.mxu0 0
        %1902 = vmatpush1.bf16.msra.mxu0 0
        %1903 = vmatprep.subr.bf16.mxu0 0
        %1904 = vmatpush1.bf16.msra.mxu0 0
        %1905 = vmatprep.subr.bf16.mxu0 0
        %1906 = vmatpush1.bf16.msra.mxu0 0
        %1907 = vmatprep.subr.bf16.mxu0 0
        %1908 = vmatpush1.bf16.msra.mxu0 0
        %1909 = vmatprep.subr.bf16.mxu0 0
        %1910 = vmatpush1.bf16.msra.mxu0 0
        %1911 = vmatprep.subr.bf16.mxu0 0
        %1912 = vmatpush1.bf16.msra.mxu0 0
        %1913 = vmatprep.subr.bf16.mxu0 0
        %1914 = vmatpush1.bf16.msra.mxu0 0
        %1915 = vmatprep.subr.bf16.mxu0 0
        %1916 = vmatpush1.bf16.msra.mxu0 0
        %1917 = vmatprep.subr.bf16.mxu0 0
        %1918 = vmatpush1.bf16.msra.mxu0 0
        %1919 = vmatprep.subr.bf16.mxu0 0
        %1920 = vmatpush1.bf16.msra.mxu0 0
        %1921 = vmatprep.subr.bf16.mxu0 0
        %1922 = vmatpush1.bf16.msra.mxu0 0
        %1923 = vmatprep.subr.bf16.mxu0 0
        %1924 = vmatpush1.bf16.msra.mxu0 0
        %1925 = vmatprep.subr.bf16.mxu0 0
        %1926 = vmatpush1.bf16.msra.mxu0 0
        %1927 = vmatprep.mubr.bf16.mxu0 0
        %1928 = vmatmul.mubr.bf16.gmra.mrb[0].mxu0 %v1884
        %v1929 = vpop.f32.mrb[0].mxu0
        %v1930 = vadd.f32 0.0, %v1929
        %v1931 = vpop.f32.mrb[0].mxu0
        %v1932 = vpop.f32.mrb[0].mxu0
        %v1933 = vadd.f32 0.0, %v1932
        %v1934 = vpop.f32.mrb[0].mxu0
        %1935 = vmatprep.mubr.bf16.mxu0 0
        %1936 = vmatmul.mubr.bf16.gmra.mrb[0].mxu0 %v1887
        %v1937 = vpop.f32.mrb[0].mxu0
        %v1938 = vadd.f32 0.0, %v1937
        %v1939 = vpop.f32.mrb[0].mxu0
        %v1940 = vpop.f32.mrb[0].mxu0
        %v1941 = vadd.f32 0.0, %v1940
        %v1942 = vpop.f32.mrb[0].mxu0
        %1943 = vmatprep.mubr.bf16.mxu0 0
        %1944 = vmatmul.mubr.bf16.gmra.mrb[0].mxu0 %v1890
        %v1945 = vpop.f32.mrb[0].mxu0
        %v1946 = vadd.f32 0.0, %v1945
        %v1947 = vpop.f32.mrb[0].mxu0
        %v1948 = vpop.f32.mrb[0].mxu0
        %v1949 = vadd.f32 0.0, %v1948
        %v1950 = vpop.f32.mrb[0].mxu0
        %1951 = vmatprep.mubr.bf16.mxu0 0
        %1952 = vmatmul.mubr.bf16.gmra.mrb[0].mxu0 %v1893
        %v1953 = vpop.f32.mrb[0].mxu0
        %v1954 = vadd.f32 0.0, %v1953
        %v1955 = vpop.f32.mrb[0].mxu0
        %v1956 = vpop.f32.mrb[0].mxu0
        %v1957 = vadd.f32 0.0, %v1956
        %v1958 = vpop.f32.mrb[0].mxu0
        %1959 = vdwg.mxu0
        %v1968 = vunpack.c.l.b16 %v512
        %v1969 = vunpack.c.l.b16 %v514
        %v1970 = vunpack.c.l.b16 %v516
        %v1971 = vunpack.c.l.b16 %v518
        %v1972 = vunpack.c.l.b16 %v520
        %v1973 = vunpack.c.l.b16 %v522
        %v1974 = vunpack.c.l.b16 %v524
        %v1975 = vunpack.c.l.b16 %v526
        %v1976 = vpack.c.b16 %v1969, %v1968
        %v1977 = vpack.c.b16 %v1971, %v1970
        %v1978 = vpack.c.b16 %v1973, %v1972
        %v1979 = vpack.c.b16 %v1975, %v1974
        %v1981 = vsel %vm659, %v1976, 0
        %v1984 = vsel %vm659, %v1977, 0
        %v1987 = vsel %vm659, %v1978, 0
        %v1990 = vsel %vm659, %v1979, 0
        %1992 = vmatprep.subr.bf16.mxu0 0
        %1993 = vmatpush1.bf16.msra.mxu0 %v774
        %1994 = vmatprep.subr.bf16.mxu0 0
        %1995 = vmatpush1.bf16.msra.mxu0 0
        %1996 = vmatprep.subr.bf16.mxu0 0
        %1997 = vmatpush1.bf16.msra.mxu0 0
        %1998 = vmatprep.subr.bf16.mxu0 0
        %1999 = vmatpush1.bf16.msra.mxu0 0
        %2000 = vmatprep.subr.bf16.mxu0 0
        %2001 = vmatpush1.bf16.msra.mxu0 0
        %2002 = vmatprep.subr.bf16.mxu0 0
        %2003 = vmatpush1.bf16.msra.mxu0 0
        %2004 = vmatprep.subr.bf16.mxu0 0
        %2005 = vmatpush1.bf16.msra.mxu0 0
        %2006 = vmatprep.subr.bf16.mxu0 0
        %2007 = vmatpush1.bf16.msra.mxu0 0
        %2008 = vmatprep.subr.bf16.mxu0 0
        %2009 = vmatpush1.bf16.msra.mxu0 0
        %2010 = vmatprep.subr.bf16.mxu0 0
        %2011 = vmatpush1.bf16.msra.mxu0 0
        %2012 = vmatprep.subr.bf16.mxu0 0
        %2013 = vmatpush1.bf16.msra.mxu0 0
        %2014 = vmatprep.subr.bf16.mxu0 0
        %2015 = vmatpush1.bf16.msra.mxu0 0
        %2016 = vmatprep.subr.bf16.mxu0 0
        %2017 = vmatpush1.bf16.msra.mxu0 0
        %2018 = vmatprep.subr.bf16.mxu0 0
        %2019 = vmatpush1.bf16.msra.mxu0 0
        %2020 = vmatprep.subr.bf16.mxu0 0
        %2021 = vmatpush1.bf16.msra.mxu0 0
        %2022 = vmatprep.subr.bf16.mxu0 0
        %2023 = vmatpush1.bf16.msra.mxu0 0
        %2024 = vmatprep.mubr.bf16.mxu0 0
        %2025 = vmatmul.mubr.bf16.gmra.mrb[0].mxu0 %v1981
        %v2026 = vpop.f32.mrb[0].mxu0
        %v2027 = vadd.f32 %v1930, %v2026
        %v2028 = vpop.f32.mrb[0].mxu0
        %v2029 = vpop.f32.mrb[0].mxu0
        %v2030 = vadd.f32 %v1933, %v2029
        %v2031 = vpop.f32.mrb[0].mxu0
        %2032 = vmatprep.mubr.bf16.mxu0 0
        %2033 = vmatmul.mubr.bf16.gmra.mrb[0].mxu0 %v1984
        %v2034 = vpop.f32.mrb[0].mxu0
        %v2035 = vadd.f32 %v1938, %v2034
        %v2036 = vpop.f32.mrb[0].mxu0
        %v2037 = vpop.f32.mrb[0].mxu0
        %v2038 = vadd.f32 %v1941, %v2037
        %v2039 = vpop.f32.mrb[0].mxu0
        %2040 = vmatprep.mubr.bf16.mxu0 0
        %2041 = vmatmul.mubr.bf16.gmra.mrb[0].mxu0 %v1987
        %v2042 = vpop.f32.mrb[0].mxu0
        %v2043 = vadd.f32 %v1946, %v2042
        %v2044 = vpop.f32.mrb[0].mxu0
        %v2045 = vpop.f32.mrb[0].mxu0
        %v2046 = vadd.f32 %v1949, %v2045
        %v2047 = vpop.f32.mrb[0].mxu0
        %2048 = vmatprep.mubr.bf16.mxu0 0
        %2049 = vmatmul.mubr.bf16.gmra.mrb[0].mxu0 %v1990
        %v2050 = vpop.f32.mrb[0].mxu0
        %v2051 = vadd.f32 %v1954, %v2050
        %v2052 = vpop.f32.mrb[0].mxu0
        %v2053 = vpop.f32.mrb[0].mxu0
        %v2054 = vadd.f32 %v1957, %v2053
        %v2055 = vpop.f32.mrb[0].mxu0
        %2056 = vdwg.mxu0
        %v2065 = vrot.slane %v512, 5
        %v2066 = vrot.slane %v2065, 4
        %v2067 = vrot.slane %v513, 5
        %v2068 = vsel %vm851, %v2066, %v2067
        %v2069 = vrot.slane %v514, 5
        %v2070 = vrot.slane %v2069, 4
        %v2071 = vrot.slane %v515, 5
        %v2072 = vsel %vm851, %v2070, %v2071
        %v2073 = vrot.slane %v516, 5
        %v2074 = vrot.slane %v2073, 4
        %v2075 = vrot.slane %v517, 5
        %v2076 = vsel %vm851, %v2074, %v2075
        %v2077 = vrot.slane %v518, 5
        %v2078 = vrot.slane %v2077, 4
        %v2079 = vrot.slane %v519, 5
        %v2080 = vsel %vm851, %v2078, %v2079
        %v2081 = vrot.slane %v520, 5
        %v2082 = vrot.slane %v2081, 4
        %v2083 = vrot.slane %v521, 5
        %v2084 = vsel %vm851, %v2082, %v2083
        %v2085 = vrot.slane %v522, 5
        %v2086 = vrot.slane %v2085, 4
        %v2087 = vrot.slane %v523, 5
        %v2088 = vsel %vm851, %v2086, %v2087
        %v2089 = vrot.slane %v524, 5
        %v2090 = vrot.slane %v2089, 4
        %v2091 = vrot.slane %v525, 5
        %v2092 = vsel %vm851, %v2090, %v2091
        %v2093 = vrot.slane %v526, 5
        %v2094 = vrot.slane %v2093, 4
        %v2095 = vrot.slane %v527, 5
        %v2096 = vsel %vm851, %v2094, %v2095
        %v2097 = vunpack.c.l.b16 %v2068
        %v2098 = vunpack.c.l.b16 %v2072
        %v2099 = vunpack.c.l.b16 %v2076
        %v2100 = vunpack.c.l.b16 %v2080
        %v2101 = vunpack.c.l.b16 %v2084
        %v2102 = vunpack.c.l.b16 %v2088
        %v2103 = vunpack.c.l.b16 %v2092
        %v2104 = vunpack.c.l.b16 %v2096
        %v2105 = vpack.c.b16 %v2098, %v2097
        %v2106 = vpack.c.b16 %v2100, %v2099
        %v2107 = vpack.c.b16 %v2102, %v2101
        %v2108 = vpack.c.b16 %v2104, %v2103
        %v2110 = vsel %vm659, %v2105, 0
        %v2113 = vsel %vm659, %v2106, 0
        %v2116 = vsel %vm659, %v2107, 0
        %v2119 = vsel %vm659, %v2108, 0
        %2121 = vmatprep.subr.bf16.mxu0 0
        %2122 = vmatpush1.bf16.msra.mxu0 %v909
        %2123 = vmatprep.subr.bf16.mxu0 0
        %2124 = vmatpush1.bf16.msra.mxu0 0
        %2125 = vmatprep.subr.bf16.mxu0 0
        %2126 = vmatpush1.bf16.msra.mxu0 0
        %2127 = vmatprep.subr.bf16.mxu0 0
        %2128 = vmatpush1.bf16.msra.mxu0 0
        %2129 = vmatprep.subr.bf16.mxu0 0
        %2130 = vmatpush1.bf16.msra.mxu0 0
        %2131 = vmatprep.subr.bf16.mxu0 0
        %2132 = vmatpush1.bf16.msra.mxu0 0
        %2133 = vmatprep.subr.bf16.mxu0 0
        %2134 = vmatpush1.bf16.msra.mxu0 0
        %2135 = vmatprep.subr.bf16.mxu0 0
        %2136 = vmatpush1.bf16.msra.mxu0 0
        %2137 = vmatprep.subr.bf16.mxu0 0
        %2138 = vmatpush1.bf16.msra.mxu0 0
        %2139 = vmatprep.subr.bf16.mxu0 0
        %2140 = vmatpush1.bf16.msra.mxu0 0
        %2141 = vmatprep.subr.bf16.mxu0 0
        %2142 = vmatpush1.bf16.msra.mxu0 0
        %2143 = vmatprep.subr.bf16.mxu0 0
        %2144 = vmatpush1.bf16.msra.mxu0 0
        %2145 = vmatprep.subr.bf16.mxu0 0
        %2146 = vmatpush1.bf16.msra.mxu0 0
        %2147 = vmatprep.subr.bf16.mxu0 0
        %2148 = vmatpush1.bf16.msra.mxu0 0
        %2149 = vmatprep.subr.bf16.mxu0 0
        %2150 = vmatpush1.bf16.msra.mxu0 0
        %2151 = vmatprep.subr.bf16.mxu0 0
        %2152 = vmatpush1.bf16.msra.mxu0 0
        %2153 = vmatprep.mubr.bf16.mxu0 0
        %2154 = vmatmul.mubr.bf16.gmra.mrb[0].mxu0 %v2110
        %v2155 = vpop.f32.mrb[0].mxu0
        %v2156 = vadd.f32 0.0, %v2155
        %v2157 = vpop.f32.mrb[0].mxu0
        %v2158 = vpop.f32.mrb[0].mxu0
        %v2159 = vadd.f32 0.0, %v2158
        %v2160 = vpop.f32.mrb[0].mxu0
        %2161 = vmatprep.mubr.bf16.mxu0 0
        %2162 = vmatmul.mubr.bf16.gmra.mrb[0].mxu0 %v2113
        %v2163 = vpop.f32.mrb[0].mxu0
        %v2164 = vadd.f32 0.0, %v2163
        %v2165 = vpop.f32.mrb[0].mxu0
        %v2166 = vpop.f32.mrb[0].mxu0
        %v2167 = vadd.f32 0.0, %v2166
        %v2168 = vpop.f32.mrb[0].mxu0
        %2169 = vmatprep.mubr.bf16.mxu0 0
        %2170 = vmatmul.mubr.bf16.gmra.mrb[0].mxu0 %v2116
        %v2171 = vpop.f32.mrb[0].mxu0
        %v2172 = vadd.f32 0.0, %v2171
        %v2173 = vpop.f32.mrb[0].mxu0
        %v2174 = vpop.f32.mrb[0].mxu0
        %v2175 = vadd.f32 0.0, %v2174
        %v2176 = vpop.f32.mrb[0].mxu0
        %2177 = vmatprep.mubr.bf16.mxu0 0
        %2178 = vmatmul.mubr.bf16.gmra.mrb[0].mxu0 %v2119
        %v2179 = vpop.f32.mrb[0].mxu0
        %v2180 = vadd.f32 0.0, %v2179
        %v2181 = vpop.f32.mrb[0].mxu0
        %v2182 = vpop.f32.mrb[0].mxu0
        %v2183 = vadd.f32 0.0, %v2182
        %v2184 = vpop.f32.mrb[0].mxu0
        %2185 = vdwg.mxu0
        %v2186 = vadd.f32 %v2027, %v2156
        %v2187 = vadd.f32 %v2030, %v2159
        %v2188 = vadd.f32 %v2035, %v2164
        %v2189 = vadd.f32 %v2038, %v2167
        %v2190 = vadd.f32 %v2043, %v2172
        %v2191 = vadd.f32 %v2046, %v2175
        %v2192 = vadd.f32 %v2051, %v2180
        %v2193 = vadd.f32 %v2054, %v2183
        %v2195 = vunpack.c.l.b16 %v528
        %v2196 = vpack.c.b16 %v1970, %v1969
        %v2197 = vpack.c.b16 %v1972, %v1971
        %v2198 = vpack.c.b16 %v1974, %v1973
        %v2199 = vpack.c.b16 %v2195, %v1975
        %v2201 = vsel %vm659, %v2196, 0
        %v2204 = vsel %vm659, %v2197, 0
        %v2207 = vsel %vm659, %v2198, 0
        %v2210 = vsel %vm659, %v2199, 0
        %2212 = vmatprep.subr.bf16.mxu0 0
        %2213 = vmatpush1.bf16.msra.mxu0 %v1003
        %2214 = vmatprep.subr.bf16.mxu0 0
        %2215 = vmatpush1.bf16.msra.mxu0 0
        %2216 = vmatprep.subr.bf16.mxu0 0
        %2217 = vmatpush1.bf16.msra.mxu0 0
        %2218 = vmatprep.subr.bf16.mxu0 0
        %2219 = vmatpush1.bf16.msra.mxu0 0
        %2220 = vmatprep.subr.bf16.mxu0 0
        %2221 = vmatpush1.bf16.msra.mxu0 0
        %2222 = vmatprep.subr.bf16.mxu0 0
        %2223 = vmatpush1.bf16.msra.mxu0 0
        %2224 = vmatprep.subr.bf16.mxu0 0
        %2225 = vmatpush1.bf16.msra.mxu0 0
        %2226 = vmatprep.subr.bf16.mxu0 0
        %2227 = vmatpush1.bf16.msra.mxu0 0
        %2228 = vmatprep.subr.bf16.mxu0 0
        %2229 = vmatpush1.bf16.msra.mxu0 0
        %2230 = vmatprep.subr.bf16.mxu0 0
        %2231 = vmatpush1.bf16.msra.mxu0 0
        %2232 = vmatprep.subr.bf16.mxu0 0
        %2233 = vmatpush1.bf16.msra.mxu0 0
        %2234 = vmatprep.subr.bf16.mxu0 0
        %2235 = vmatpush1.bf16.msra.mxu0 0
        %2236 = vmatprep.subr.bf16.mxu0 0
        %2237 = vmatpush1.bf16.msra.mxu0 0
        %2238 = vmatprep.subr.bf16.mxu0 0
        %2239 = vmatpush1.bf16.msra.mxu0 0
        %2240 = vmatprep.subr.bf16.mxu0 0
        %2241 = vmatpush1.bf16.msra.mxu0 0
        %2242 = vmatprep.subr.bf16.mxu0 0
        %2243 = vmatpush1.bf16.msra.mxu0 0
        %2244 = vmatprep.mubr.bf16.mxu0 0
        %2245 = vmatmul.mubr.bf16.gmra.mrb[0].mxu0 %v2201
        %v2246 = vpop.f32.mrb[0].mxu0
        %v2247 = vadd.f32 0.0, %v2246
        %v2248 = vpop.f32.mrb[0].mxu0
        %v2249 = vpop.f32.mrb[0].mxu0
        %v2250 = vadd.f32 0.0, %v2249
        %v2251 = vpop.f32.mrb[0].mxu0
        %2252 = vmatprep.mubr.bf16.mxu0 0
        %2253 = vmatmul.mubr.bf16.gmra.mrb[0].mxu0 %v2204
        %v2254 = vpop.f32.mrb[0].mxu0
        %v2255 = vadd.f32 0.0, %v2254
        %v2256 = vpop.f32.mrb[0].mxu0
        %v2257 = vpop.f32.mrb[0].mxu0
        %v2258 = vadd.f32 0.0, %v2257
        %v2259 = vpop.f32.mrb[0].mxu0
        %2260 = vmatprep.mubr.bf16.mxu0 0
        %2261 = vmatmul.mubr.bf16.gmra.mrb[0].mxu0 %v2207
        %v2262 = vpop.f32.mrb[0].mxu0
        %v2263 = vadd.f32 0.0, %v2262
        %v2264 = vpop.f32.mrb[0].mxu0
        %v2265 = vpop.f32.mrb[0].mxu0
        %v2266 = vadd.f32 0.0, %v2265
        %v2267 = vpop.f32.mrb[0].mxu0
        %2268 = vmatprep.mubr.bf16.mxu0 0
        %2269 = vmatmul.mubr.bf16.gmra.mrb[0].mxu0 %v2210
        %v2270 = vpop.f32.mrb[0].mxu0
        %v2271 = vadd.f32 0.0, %v2270
        %v2272 = vpop.f32.mrb[0].mxu0
        %v2273 = vpop.f32.mrb[0].mxu0
        %v2274 = vadd.f32 0.0, %v2273
        %v2275 = vpop.f32.mrb[0].mxu0
        %2276 = vdwg.mxu0
        %v2277 = vadd.f32 %v2186, %v2247
        %v2278 = vadd.f32 %v2187, %v2250
        %v2279 = vadd.f32 %v2188, %v2255
        %v2280 = vadd.f32 %v2189, %v2258
        %v2281 = vadd.f32 %v2190, %v2263
        %v2282 = vadd.f32 %v2191, %v2266
        %v2283 = vadd.f32 %v2192, %v2271
        %v2284 = vadd.f32 %v2193, %v2274
        %v2286 = vshrl.u32 %v528, 16
        %v2288 = vrot.slane %v2286, 4
        %v2289 = vshll.u32 %v528, 16
        %v2291 = vrot.slane %v2289, 5
        %v2292 = vor.u32 %v2288, %v2291
        %v2293 = vrot.slane %v2292, 4
        %v2295 = vshll.u32 %v529, 16
        %v2297 = vrot.slane %v2295, 5
        %v2298 = vsel %vm534, %v2293, %v2297
        %v2299 = vunpack.c.l.b16 %v2298
        %v2300 = vpack.c.b16 %v1873, %v1872
        %v2301 = vpack.c.b16 %v1875, %v1874
        %v2302 = vpack.c.b16 %v1877, %v1876
        %v2303 = vpack.c.b16 %v2299, %v1878
        %v2305 = vsel %vm659, %v2300, 0
        %v2308 = vsel %vm659, %v2301, 0
        %v2311 = vsel %vm659, %v2302, 0
        %v2314 = vsel %vm659, %v2303, 0
        %2316 = vmatprep.subr.bf16.mxu0 0
        %2317 = vmatpush1.bf16.msra.mxu0 %v1110
        %2318 = vmatprep.subr.bf16.mxu0 0
        %2319 = vmatpush1.bf16.msra.mxu0 0
        %2320 = vmatprep.subr.bf16.mxu0 0
        %2321 = vmatpush1.bf16.msra.mxu0 0
        %2322 = vmatprep.subr.bf16.mxu0 0
        %2323 = vmatpush1.bf16.msra.mxu0 0
        %2324 = vmatprep.subr.bf16.mxu0 0
        %2325 = vmatpush1.bf16.msra.mxu0 0
        %2326 = vmatprep.subr.bf16.mxu0 0
        %2327 = vmatpush1.bf16.msra.mxu0 0
        %2328 = vmatprep.subr.bf16.mxu0 0
        %2329 = vmatpush1.bf16.msra.mxu0 0
        %2330 = vmatprep.subr.bf16.mxu0 0
        %2331 = vmatpush1.bf16.msra.mxu0 0
        %2332 = vmatprep.subr.bf16.mxu0 0
        %2333 = vmatpush1.bf16.msra.mxu0 0
        %2334 = vmatprep.subr.bf16.mxu0 0
        %2335 = vmatpush1.bf16.msra.mxu0 0
        %2336 = vmatprep.subr.bf16.mxu0 0
        %2337 = vmatpush1.bf16.msra.mxu0 0
        %2338 = vmatprep.subr.bf16.mxu0 0
        %2339 = vmatpush1.bf16.msra.mxu0 0
        %2340 = vmatprep.subr.bf16.mxu0 0
        %2341 = vmatpush1.bf16.msra.mxu0 0
        %2342 = vmatprep.subr.bf16.mxu0 0
        %2343 = vmatpush1.bf16.msra.mxu0 0
        %2344 = vmatprep.subr.bf16.mxu0 0
        %2345 = vmatpush1.bf16.msra.mxu0 0
        %2346 = vmatprep.subr.bf16.mxu0 0
        %2347 = vmatpush1.bf16.msra.mxu0 0
        %2348 = vmatprep.mubr.bf16.mxu0 0
        %2349 = vmatmul.mubr.bf16.gmra.mrb[0].mxu0 %v2305
        %v2350 = vpop.f32.mrb[0].mxu0
        %v2351 = vadd.f32 0.0, %v2350
        %v2352 = vpop.f32.mrb[0].mxu0
        %v2353 = vpop.f32.mrb[0].mxu0
        %v2354 = vadd.f32 0.0, %v2353
        %v2355 = vpop.f32.mrb[0].mxu0
        %2356 = vmatprep.mubr.bf16.mxu0 0
        %2357 = vmatmul.mubr.bf16.gmra.mrb[0].mxu0 %v2308
        %v2358 = vpop.f32.mrb[0].mxu0
        %v2359 = vadd.f32 0.0, %v2358
        %v2360 = vpop.f32.mrb[0].mxu0
        %v2361 = vpop.f32.mrb[0].mxu0
        %v2362 = vadd.f32 0.0, %v2361
        %v2363 = vpop.f32.mrb[0].mxu0
        %2364 = vmatprep.mubr.bf16.mxu0 0
        %2365 = vmatmul.mubr.bf16.gmra.mrb[0].mxu0 %v2311
        %v2366 = vpop.f32.mrb[0].mxu0
        %v2367 = vadd.f32 0.0, %v2366
        %v2368 = vpop.f32.mrb[0].mxu0
        %v2369 = vpop.f32.mrb[0].mxu0
        %v2370 = vadd.f32 0.0, %v2369
        %v2371 = vpop.f32.mrb[0].mxu0
        %2372 = vmatprep.mubr.bf16.mxu0 0
        %2373 = vmatmul.mubr.bf16.gmra.mrb[0].mxu0 %v2314
        %v2374 = vpop.f32.mrb[0].mxu0
        %v2375 = vadd.f32 0.0, %v2374
        %v2376 = vpop.f32.mrb[0].mxu0
        %v2377 = vpop.f32.mrb[0].mxu0
        %v2378 = vadd.f32 0.0, %v2377
        %v2379 = vpop.f32.mrb[0].mxu0
        %2380 = vdwg.mxu0
        %v2381 = vadd.f32 %v2277, %v2351
        %v2382 = vadd.f32 %v2278, %v2354
        %v2383 = vadd.f32 %v2279, %v2359
        %v2384 = vadd.f32 %v2280, %v2362
        %v2385 = vadd.f32 %v2281, %v2367
        %v2386 = vadd.f32 %v2282, %v2370
        %v2387 = vadd.f32 %v2283, %v2375
        %v2388 = vadd.f32 %v2284, %v2378
        %v2390 = vrot.slane %v528, 5
        %v2391 = vrot.slane %v2390, 4
        %v2392 = vrot.slane %v529, 5
        %v2393 = vsel %vm851, %v2391, %v2392
        %v2394 = vunpack.c.l.b16 %v2393
        %v2395 = vpack.c.b16 %v2099, %v2098
        %v2396 = vpack.c.b16 %v2101, %v2100
        %v2397 = vpack.c.b16 %v2103, %v2102
        %v2398 = vpack.c.b16 %v2394, %v2104
        %v2400 = vsel %vm659, %v2395, 0
        %v2403 = vsel %vm659, %v2396, 0
        %v2406 = vsel %vm659, %v2397, 0
        %v2409 = vsel %vm659, %v2398, 0
        %2411 = vmatprep.subr.bf16.mxu0 0
        %2412 = vmatpush1.bf16.msra.mxu0 %v1208
        %2413 = vmatprep.subr.bf16.mxu0 0
        %2414 = vmatpush1.bf16.msra.mxu0 0
        %2415 = vmatprep.subr.bf16.mxu0 0
        %2416 = vmatpush1.bf16.msra.mxu0 0
        %2417 = vmatprep.subr.bf16.mxu0 0
        %2418 = vmatpush1.bf16.msra.mxu0 0
        %2419 = vmatprep.subr.bf16.mxu0 0
        %2420 = vmatpush1.bf16.msra.mxu0 0
        %2421 = vmatprep.subr.bf16.mxu0 0
        %2422 = vmatpush1.bf16.msra.mxu0 0
        %2423 = vmatprep.subr.bf16.mxu0 0
        %2424 = vmatpush1.bf16.msra.mxu0 0
        %2425 = vmatprep.subr.bf16.mxu0 0
        %2426 = vmatpush1.bf16.msra.mxu0 0
        %2427 = vmatprep.subr.bf16.mxu0 0
        %2428 = vmatpush1.bf16.msra.mxu0 0
        %2429 = vmatprep.subr.bf16.mxu0 0
        %2430 = vmatpush1.bf16.msra.mxu0 0
        %2431 = vmatprep.subr.bf16.mxu0 0
        %2432 = vmatpush1.bf16.msra.mxu0 0
        %2433 = vmatprep.subr.bf16.mxu0 0
        %2434 = vmatpush1.bf16.msra.mxu0 0
        %2435 = vmatprep.subr.bf16.mxu0 0
        %2436 = vmatpush1.bf16.msra.mxu0 0
        %2437 = vmatprep.subr.bf16.mxu0 0
        %2438 = vmatpush1.bf16.msra.mxu0 0
        %2439 = vmatprep.subr.bf16.mxu0 0
        %2440 = vmatpush1.bf16.msra.mxu0 0
        %2441 = vmatprep.subr.bf16.mxu0 0
        %2442 = vmatpush1.bf16.msra.mxu0 0
        %2443 = vmatprep.mubr.bf16.mxu0 0
        %2444 = vmatmul.mubr.bf16.gmra.mrb[0].mxu0 %v2400
        %v2445 = vpop.f32.mrb[0].mxu0
        %v2446 = vadd.f32 0.0, %v2445
        %v2447 = vpop.f32.mrb[0].mxu0
        %v2448 = vpop.f32.mrb[0].mxu0
        %v2449 = vadd.f32 0.0, %v2448
        %v2450 = vpop.f32.mrb[0].mxu0
        %2451 = vmatprep.mubr.bf16.mxu0 0
        %2452 = vmatmul.mubr.bf16.gmra.mrb[0].mxu0 %v2403
        %v2453 = vpop.f32.mrb[0].mxu0
        %v2454 = vadd.f32 0.0, %v2453
        %v2455 = vpop.f32.mrb[0].mxu0
        %v2456 = vpop.f32.mrb[0].mxu0
        %v2457 = vadd.f32 0.0, %v2456
        %v2458 = vpop.f32.mrb[0].mxu0
        %2459 = vmatprep.mubr.bf16.mxu0 0
        %2460 = vmatmul.mubr.bf16.gmra.mrb[0].mxu0 %v2406
        %v2461 = vpop.f32.mrb[0].mxu0
        %v2462 = vadd.f32 0.0, %v2461
        %v2463 = vpop.f32.mrb[0].mxu0
        %v2464 = vpop.f32.mrb[0].mxu0
        %v2465 = vadd.f32 0.0, %v2464
        %v2466 = vpop.f32.mrb[0].mxu0
        %2467 = vmatprep.mubr.bf16.mxu0 0
        %2468 = vmatmul.mubr.bf16.gmra.mrb[0].mxu0 %v2409
        %v2469 = vpop.f32.mrb[0].mxu0
        %v2470 = vadd.f32 0.0, %v2469
        %v2471 = vpop.f32.mrb[0].mxu0
        %v2472 = vpop.f32.mrb[0].mxu0
        %v2473 = vadd.f32 0.0, %v2472
        %v2474 = vpop.f32.mrb[0].mxu0
        %2475 = vdwg.mxu0
        %v2476 = vadd.f32 %v2381, %v2446
        %v2477 = vadd.f32 %v2382, %v2449
        %v2478 = vadd.f32 %v2383, %v2454
        %v2479 = vadd.f32 %v2384, %v2457
        %v2480 = vadd.f32 %v2385, %v2462
        %v2481 = vadd.f32 %v2386, %v2465
        %v2482 = vadd.f32 %v2387, %v2470
        %v2483 = vadd.f32 %v2388, %v2473
        %v2485 = vunpack.c.l.b16 %v530
        %v2486 = vpack.c.b16 %v2485, %v2195
        %v2488 = vsel %vm659, %v2486, 0
        %2490 = vmatprep.subr.bf16.mxu0 0
        %2491 = vmatpush1.bf16.msra.mxu0 %v1290
        %2492 = vmatprep.subr.bf16.mxu0 0
        %2493 = vmatpush1.bf16.msra.mxu0 0
        %2494 = vmatprep.subr.bf16.mxu0 0
        %2495 = vmatpush1.bf16.msra.mxu0 0
        %2496 = vmatprep.subr.bf16.mxu0 0
        %2497 = vmatpush1.bf16.msra.mxu0 0
        %2498 = vmatprep.subr.bf16.mxu0 0
        %2499 = vmatpush1.bf16.msra.mxu0 0
        %2500 = vmatprep.subr.bf16.mxu0 0
        %2501 = vmatpush1.bf16.msra.mxu0 0
        %2502 = vmatprep.subr.bf16.mxu0 0
        %2503 = vmatpush1.bf16.msra.mxu0 0
        %2504 = vmatprep.subr.bf16.mxu0 0
        %2505 = vmatpush1.bf16.msra.mxu0 0
        %2506 = vmatprep.subr.bf16.mxu0 0
        %2507 = vmatpush1.bf16.msra.mxu0 0
        %2508 = vmatprep.subr.bf16.mxu0 0
        %2509 = vmatpush1.bf16.msra.mxu0 0
        %2510 = vmatprep.subr.bf16.mxu0 0
        %2511 = vmatpush1.bf16.msra.mxu0 0
        %2512 = vmatprep.subr.bf16.mxu0 0
        %2513 = vmatpush1.bf16.msra.mxu0 0
        %2514 = vmatprep.subr.bf16.mxu0 0
        %2515 = vmatpush1.bf16.msra.mxu0 0
        %2516 = vmatprep.subr.bf16.mxu0 0
        %2517 = vmatpush1.bf16.msra.mxu0 0
        %2518 = vmatprep.subr.bf16.mxu0 0
        %2519 = vmatpush1.bf16.msra.mxu0 0
        %2520 = vmatprep.subr.bf16.mxu0 0
        %2521 = vmatpush1.bf16.msra.mxu0 0
        %2522 = vmatprep.mubr.bf16.mxu0 0
        %2523 = vmatmul.mubr.bf16.gmra.mrb[0].mxu0 %v1984
        %v2524 = vpop.f32.mrb[0].mxu0
        %v2525 = vadd.f32 0.0, %v2524
        %v2526 = vpop.f32.mrb[0].mxu0
        %v2527 = vpop.f32.mrb[0].mxu0
        %v2528 = vadd.f32 0.0, %v2527
        %v2529 = vpop.f32.mrb[0].mxu0
        %2530 = vmatprep.mubr.bf16.mxu0 0
        %2531 = vmatmul.mubr.bf16.gmra.mrb[0].mxu0 %v1987
        %v2532 = vpop.f32.mrb[0].mxu0
        %v2533 = vadd.f32 0.0, %v2532
        %v2534 = vpop.f32.mrb[0].mxu0
        %v2535 = vpop.f32.mrb[0].mxu0
        %v2536 = vadd.f32 0.0, %v2535
        %v2537 = vpop.f32.mrb[0].mxu0
        %2538 = vmatprep.mubr.bf16.mxu0 0
        %2539 = vmatmul.mubr.bf16.gmra.mrb[0].mxu0 %v1990
        %v2540 = vpop.f32.mrb[0].mxu0
        %v2541 = vadd.f32 0.0, %v2540
        %v2542 = vpop.f32.mrb[0].mxu0
        %v2543 = vpop.f32.mrb[0].mxu0
        %v2544 = vadd.f32 0.0, %v2543
        %v2545 = vpop.f32.mrb[0].mxu0
        %2546 = vmatprep.mubr.bf16.mxu0 0
        %2547 = vmatmul.mubr.bf16.gmra.mrb[0].mxu0 %v2488
        %v2548 = vpop.f32.mrb[0].mxu0
        %v2549 = vadd.f32 0.0, %v2548
        %v2550 = vpop.f32.mrb[0].mxu0
        %v2551 = vpop.f32.mrb[0].mxu0
        %v2552 = vadd.f32 0.0, %v2551
        %v2553 = vpop.f32.mrb[0].mxu0
        %2554 = vdwg.mxu0
        %v2555 = vadd.f32 %v2476, %v2525
        %v2556 = vadd.f32 %v2477, %v2528
        %v2557 = vadd.f32 %v2478, %v2533
        %v2558 = vadd.f32 %v2479, %v2536
        %v2559 = vadd.f32 %v2480, %v2541
        %v2560 = vadd.f32 %v2481, %v2544
        %v2561 = vadd.f32 %v2482, %v2549
        %v2562 = vadd.f32 %v2483, %v2552
        %v2564 = vshrl.u32 %v530, 16
        %v2566 = vrot.slane %v2564, 4
        %v2567 = vshll.u32 %v530, 16
        %v2569 = vrot.slane %v2567, 5
        %v2570 = vor.u32 %v2566, %v2569
        %v2571 = vrot.slane %v2570, 4
        %v2573 = vshll.u32 %v531, 16
        %v2575 = vrot.slane %v2573, 5
        %v2576 = vsel %vm534, %v2571, %v2575
        %v2577 = vunpack.c.l.b16 %v2576
        %v2578 = vpack.c.b16 %v2577, %v2299
        %v2580 = vsel %vm659, %v2578, 0
        %2582 = vmatprep.subr.bf16.mxu0 0
        %2583 = vmatpush1.bf16.msra.mxu0 %v1385
        %2584 = vmatprep.subr.bf16.mxu0 0
        %2585 = vmatpush1.bf16.msra.mxu0 0
        %2586 = vmatprep.subr.bf16.mxu0 0
        %2587 = vmatpush1.bf16.msra.mxu0 0
        %2588 = vmatprep.subr.bf16.mxu0 0
        %2589 = vmatpush1.bf16.msra.mxu0 0
        %2590 = vmatprep.subr.bf16.mxu0 0
        %2591 = vmatpush1.bf16.msra.mxu0 0
        %2592 = vmatprep.subr.bf16.mxu0 0
        %2593 = vmatpush1.bf16.msra.mxu0 0
        %2594 = vmatprep.subr.bf16.mxu0 0
        %2595 = vmatpush1.bf16.msra.mxu0 0
        %2596 = vmatprep.subr.bf16.mxu0 0
        %2597 = vmatpush1.bf16.msra.mxu0 0
        %2598 = vmatprep.subr.bf16.mxu0 0
        %2599 = vmatpush1.bf16.msra.mxu0 0
        %2600 = vmatprep.subr.bf16.mxu0 0
        %2601 = vmatpush1.bf16.msra.mxu0 0
        %2602 = vmatprep.subr.bf16.mxu0 0
        %2603 = vmatpush1.bf16.msra.mxu0 0
        %2604 = vmatprep.subr.bf16.mxu0 0
        %2605 = vmatpush1.bf16.msra.mxu0 0
        %2606 = vmatprep.subr.bf16.mxu0 0
        %2607 = vmatpush1.bf16.msra.mxu0 0
        %2608 = vmatprep.subr.bf16.mxu0 0
        %2609 = vmatpush1.bf16.msra.mxu0 0
        %2610 = vmatprep.subr.bf16.mxu0 0
        %2611 = vmatpush1.bf16.msra.mxu0 0
        %2612 = vmatprep.subr.bf16.mxu0 0
        %2613 = vmatpush1.bf16.msra.mxu0 0
        %2614 = vmatprep.mubr.bf16.mxu0 0
        %2615 = vmatmul.mubr.bf16.gmra.mrb[0].mxu0 %v1887
        %v2616 = vpop.f32.mrb[0].mxu0
        %v2617 = vadd.f32 0.0, %v2616
        %v2618 = vpop.f32.mrb[0].mxu0
        %v2619 = vpop.f32.mrb[0].mxu0
        %v2620 = vadd.f32 0.0, %v2619
        %v2621 = vpop.f32.mrb[0].mxu0
        %2622 = vmatprep.mubr.bf16.mxu0 0
        %2623 = vmatmul.mubr.bf16.gmra.mrb[0].mxu0 %v1890
        %v2624 = vpop.f32.mrb[0].mxu0
        %v2625 = vadd.f32 0.0, %v2624
        %v2626 = vpop.f32.mrb[0].mxu0
        %v2627 = vpop.f32.mrb[0].mxu0
        %v2628 = vadd.f32 0.0, %v2627
        %v2629 = vpop.f32.mrb[0].mxu0
        %2630 = vmatprep.mubr.bf16.mxu0 0
        %2631 = vmatmul.mubr.bf16.gmra.mrb[0].mxu0 %v1893
        %v2632 = vpop.f32.mrb[0].mxu0
        %v2633 = vadd.f32 0.0, %v2632
        %v2634 = vpop.f32.mrb[0].mxu0
        %v2635 = vpop.f32.mrb[0].mxu0
        %v2636 = vadd.f32 0.0, %v2635
        %v2637 = vpop.f32.mrb[0].mxu0
        %2638 = vmatprep.mubr.bf16.mxu0 0
        %2639 = vmatmul.mubr.bf16.gmra.mrb[0].mxu0 %v2580
        %v2640 = vpop.f32.mrb[0].mxu0
        %v2641 = vadd.f32 0.0, %v2640
        %v2642 = vpop.f32.mrb[0].mxu0
        %v2643 = vpop.f32.mrb[0].mxu0
        %v2644 = vadd.f32 0.0, %v2643
        %v2645 = vpop.f32.mrb[0].mxu0
        %2646 = vdwg.mxu0
        %v2647 = vadd.f32 %v2555, %v2617
        %v2648 = vadd.f32 %v2556, %v2620
        %v2649 = vadd.f32 %v2557, %v2625
        %v2650 = vadd.f32 %v2558, %v2628
        %v2651 = vadd.f32 %v2559, %v2633
        %v2652 = vadd.f32 %v2560, %v2636
        %v2653 = vadd.f32 %v2561, %v2641
        %v2654 = vadd.f32 %v2562, %v2644
        %v2656 = vrot.slane %v530, 5
        %v2657 = vrot.slane %v2656, 4
        %v2658 = vrot.slane %v531, 5
        %v2659 = vsel %vm851, %v2657, %v2658
        %v2660 = vunpack.c.l.b16 %v2659
        %v2661 = vpack.c.b16 %v2660, %v2394
        %v2663 = vsel %vm659, %v2661, 0
        %2665 = vmatprep.subr.bf16.mxu0 0
        %2666 = vmatpush1.bf16.msra.mxu0 %v1471
        %2667 = vmatprep.subr.bf16.mxu0 0
        %2668 = vmatpush1.bf16.msra.mxu0 0
        %2669 = vmatprep.subr.bf16.mxu0 0
        %2670 = vmatpush1.bf16.msra.mxu0 0
        %2671 = vmatprep.subr.bf16.mxu0 0
        %2672 = vmatpush1.bf16.msra.mxu0 0
        %2673 = vmatprep.subr.bf16.mxu0 0
        %2674 = vmatpush1.bf16.msra.mxu0 0
        %2675 = vmatprep.subr.bf16.mxu0 0
        %2676 = vmatpush1.bf16.msra.mxu0 0
        %2677 = vmatprep.subr.bf16.mxu0 0
        %2678 = vmatpush1.bf16.msra.mxu0 0
        %2679 = vmatprep.subr.bf16.mxu0 0
        %2680 = vmatpush1.bf16.msra.mxu0 0
        %2681 = vmatprep.subr.bf16.mxu0 0
        %2682 = vmatpush1.bf16.msra.mxu0 0
        %2683 = vmatprep.subr.bf16.mxu0 0
        %2684 = vmatpush1.bf16.msra.mxu0 0
        %2685 = vmatprep.subr.bf16.mxu0 0
        %2686 = vmatpush1.bf16.msra.mxu0 0
        %2687 = vmatprep.subr.bf16.mxu0 0
        %2688 = vmatpush1.bf16.msra.mxu0 0
        %2689 = vmatprep.subr.bf16.mxu0 0
        %2690 = vmatpush1.bf16.msra.mxu0 0
        %2691 = vmatprep.subr.bf16.mxu0 0
        %2692 = vmatpush1.bf16.msra.mxu0 0
        %2693 = vmatprep.subr.bf16.mxu0 0
        %2694 = vmatpush1.bf16.msra.mxu0 0
        %2695 = vmatprep.subr.bf16.mxu0 0
        %2696 = vmatpush1.bf16.msra.mxu0 0
        %2697 = vmatprep.mubr.bf16.mxu0 0
        %2698 = vmatmul.mubr.bf16.gmra.mrb[0].mxu0 %v2113
        %v2699 = vpop.f32.mrb[0].mxu0
        %v2700 = vadd.f32 0.0, %v2699
        %v2701 = vpop.f32.mrb[0].mxu0
        %v2702 = vpop.f32.mrb[0].mxu0
        %v2703 = vadd.f32 0.0, %v2702
        %v2704 = vpop.f32.mrb[0].mxu0
        %2705 = vmatprep.mubr.bf16.mxu0 0
        %2706 = vmatmul.mubr.bf16.gmra.mrb[0].mxu0 %v2116
        %v2707 = vpop.f32.mrb[0].mxu0
        %v2708 = vadd.f32 0.0, %v2707
        %v2709 = vpop.f32.mrb[0].mxu0
        %v2710 = vpop.f32.mrb[0].mxu0
        %v2711 = vadd.f32 0.0, %v2710
        %v2712 = vpop.f32.mrb[0].mxu0
        %2713 = vmatprep.mubr.bf16.mxu0 0
        %2714 = vmatmul.mubr.bf16.gmra.mrb[0].mxu0 %v2119
        %v2715 = vpop.f32.mrb[0].mxu0
        %v2716 = vadd.f32 0.0, %v2715
        %v2717 = vpop.f32.mrb[0].mxu0
        %v2718 = vpop.f32.mrb[0].mxu0
        %v2719 = vadd.f32 0.0, %v2718
        %v2720 = vpop.f32.mrb[0].mxu0
        %2721 = vmatprep.mubr.bf16.mxu0 0
        %2722 = vmatmul.mubr.bf16.gmra.mrb[0].mxu0 %v2663
        %v2723 = vpop.f32.mrb[0].mxu0
        %v2724 = vadd.f32 0.0, %v2723
        %v2725 = vpop.f32.mrb[0].mxu0
        %v2726 = vpop.f32.mrb[0].mxu0
        %v2727 = vadd.f32 0.0, %v2726
        %v2728 = vpop.f32.mrb[0].mxu0
        %2729 = vdwg.mxu0
        %v2730 = vadd.f32 %v2647, %v2700
        %v2731 = vadd.f32 %v2648, %v2703
        %v2732 = vadd.f32 %v2649, %v2708
        %v2733 = vadd.f32 %v2650, %v2711
        %v2734 = vadd.f32 %v2651, %v2716
        %v2735 = vadd.f32 %v2652, %v2719
        %v2736 = vadd.f32 %v2653, %v2724
        %v2737 = vadd.f32 %v2654, %v2727
        %v2738 = vadd.f32 %v2730, %v1550
        %v2739 = vadd.f32 %v2731, %v1550
        %v2740 = vadd.f32 %v2732, %v1550
        %v2741 = vadd.f32 %v2733, %v1550
        %v2742 = vadd.f32 %v2734, %v1550
        %v2743 = vadd.f32 %v2735, %v1550
        %v2744 = vadd.f32 %v2736, %v1550
        %v2745 = vadd.f32 %v2737, %v1550
        %vm2746 = vcmp.ge.f32.partialorder %v2738, 0.0
        %vm2747 = vcmp.ge.f32.partialorder %v2739, 0.0
        %vm2748 = vcmp.ge.f32.partialorder %v2740, 0.0
        %vm2749 = vcmp.ge.f32.partialorder %v2741, 0.0
        %vm2750 = vcmp.ge.f32.partialorder %v2742, 0.0
        %vm2751 = vcmp.ge.f32.partialorder %v2743, 0.0
        %vm2752 = vcmp.ge.f32.partialorder %v2744, 0.0
        %vm2753 = vcmp.ge.f32.partialorder %v2745, 0.0
        %v2754 = vmul.f32 %v1572, %v2738
        %v2755 = vmul.f32 %v1572, %v2739
        %v2756 = vmul.f32 %v1572, %v2740
        %v2757 = vmul.f32 %v1572, %v2741
        %v2758 = vmul.f32 %v1572, %v2742
        %v2759 = vmul.f32 %v1572, %v2743
        %v2760 = vmul.f32 %v1572, %v2744
        %v2761 = vmul.f32 %v1572, %v2745
        %v2762 = vsel %vm2746, %v2738, %v2754
        %v2763 = vsel %vm2747, %v2739, %v2755
        %v2764 = vsel %vm2748, %v2740, %v2756
        %v2765 = vsel %vm2749, %v2741, %v2757
        %v2766 = vsel %vm2750, %v2742, %v2758
        %v2767 = vsel %vm2751, %v2743, %v2759
        %v2768 = vsel %vm2752, %v2744, %v2760
        %v2769 = vsel %vm2753, %v2745, %v2761
        %v2770 = vpack.c.bf16 %v2763, %v2762
        %v2771 = vpack.c.bf16 %v2765, %v2764
        %v2772 = vpack.c.bf16 %v2767, %v2766
        %v2773 = vpack.c.bf16 %v2769, %v2768
        %2774 = vmatprep.subr.bf16.mxu0 0
        %2775 = vmatpush1.bf16.msra.mxu0 %v1648
        %2776 = vmatprep.subr.bf16.mxu0 0
        %2777 = vmatpush1.bf16.msra.mxu0 %v1649
        %2778 = vmatprep.subr.bf16.mxu0 0
        %2779 = vmatpush1.bf16.msra.mxu0 %v1650
        %2780 = vmatprep.subr.bf16.mxu0 0
        %2781 = vmatpush1.bf16.msra.mxu0 %v1651
        %2782 = vmatprep.subr.bf16.mxu0 0
        %2783 = vmatpush1.bf16.msra.mxu0 %v1652
        %2784 = vmatprep.subr.bf16.mxu0 0
        %2785 = vmatpush1.bf16.msra.mxu0 %v1653
        %2786 = vmatprep.subr.bf16.mxu0 0
        %2787 = vmatpush1.bf16.msra.mxu0 %v1654
        %2788 = vmatprep.subr.bf16.mxu0 0
        %2789 = vmatpush1.bf16.msra.mxu0 %v1655
        %2790 = vmatprep.subr.bf16.mxu0 0
        %2791 = vmatpush1.bf16.msra.mxu0 0
        %2792 = vmatprep.subr.bf16.mxu0 0
        %2793 = vmatpush1.bf16.msra.mxu0 0
        %2794 = vmatprep.subr.bf16.mxu0 0
        %2795 = vmatpush1.bf16.msra.mxu0 0
        %2796 = vmatprep.subr.bf16.mxu0 0
        %2797 = vmatpush1.bf16.msra.mxu0 0
        %2798 = vmatprep.subr.bf16.mxu0 0
        %2799 = vmatpush1.bf16.msra.mxu0 0
        %2800 = vmatprep.subr.bf16.mxu0 0
        %2801 = vmatpush1.bf16.msra.mxu0 0
        %2802 = vmatprep.subr.bf16.mxu0 0
        %2803 = vmatpush1.bf16.msra.mxu0 0
        %2804 = vmatprep.subr.bf16.mxu0 0
        %2805 = vmatpush1.bf16.msra.mxu0 0
        %2806 = vmatprep.mubr.bf16.mxu0 0
        %2807 = vmatmul.mubr.bf16.gmra.mrb[0].mxu0 %v2770
        %v2808 = vpop.f32.mrb[0].mxu0
        %v2809 = vadd.f32 %v1614, %v2808
        %v2810 = vpop.f32.mrb[0].mxu0
        %v2811 = vpop.f32.mrb[0].mxu0
        %v2812 = vadd.f32 %v1614, %v2811
        %v2813 = vpop.f32.mrb[0].mxu0
        %2814 = vmatprep.mubr.bf16.mxu0 0
        %2815 = vmatmul.mubr.bf16.gmra.mrb[0].mxu0 %v2771
        %v2816 = vpop.f32.mrb[0].mxu0
        %v2817 = vadd.f32 %v1614, %v2816
        %v2818 = vpop.f32.mrb[0].mxu0
        %v2819 = vpop.f32.mrb[0].mxu0
        %v2820 = vadd.f32 %v1614, %v2819
        %v2821 = vpop.f32.mrb[0].mxu0
        %2822 = vmatprep.mubr.bf16.mxu0 0
        %2823 = vmatmul.mubr.bf16.gmra.mrb[0].mxu0 %v2772
        %v2824 = vpop.f32.mrb[0].mxu0
        %v2825 = vadd.f32 %v1614, %v2824
        %v2826 = vpop.f32.mrb[0].mxu0
        %v2827 = vpop.f32.mrb[0].mxu0
        %v2828 = vadd.f32 %v1614, %v2827
        %v2829 = vpop.f32.mrb[0].mxu0
        %2830 = vmatprep.mubr.bf16.mxu0 0
        %2831 = vmatmul.mubr.bf16.gmra.mrb[0].mxu0 %v2773
        %v2832 = vpop.f32.mrb[0].mxu0
        %v2833 = vadd.f32 %v1614, %v2832
        %v2834 = vpop.f32.mrb[0].mxu0
        %v2835 = vpop.f32.mrb[0].mxu0
        %v2836 = vadd.f32 %v1614, %v2835
        %v2837 = vpop.f32.mrb[0].mxu0
        %2838 = vdwg.mxu0
        %vm2839 = vcmp.ge.f32.partialorder %v2809, 0.0
        %vm2840 = vcmp.ge.f32.partialorder %v2812, 0.0
        %vm2841 = vcmp.ge.f32.partialorder %v2817, 0.0
        %vm2842 = vcmp.ge.f32.partialorder %v2820, 0.0
        %vm2843 = vcmp.ge.f32.partialorder %v2825, 0.0
        %vm2844 = vcmp.ge.f32.partialorder %v2828, 0.0
        %vm2845 = vcmp.ge.f32.partialorder %v2833, 0.0
        %vm2846 = vcmp.ge.f32.partialorder %v2836, 0.0
        %v2847 = vmul.f32 %v1741, %v2809
        %v2848 = vmul.f32 %v1741, %v2812
        %v2849 = vmul.f32 %v1741, %v2817
        %v2850 = vmul.f32 %v1741, %v2820
        %v2851 = vmul.f32 %v1741, %v2825
        %v2852 = vmul.f32 %v1741, %v2828
        %v2853 = vmul.f32 %v1741, %v2833
        %v2854 = vmul.f32 %v1741, %v2836
        %v2855 = vsel %vm2839, %v2809, %v2847
        %v2856 = vsel %vm2840, %v2812, %v2848
        %v2857 = vsel %vm2841, %v2817, %v2849
        %v2858 = vsel %vm2842, %v2820, %v2850
        %v2859 = vsel %vm2843, %v2825, %v2851
        %v2860 = vsel %vm2844, %v2828, %v2852
        %v2861 = vsel %vm2845, %v2833, %v2853
        %v2862 = vsel %vm2846, %v2836, %v2854
        %v2863 = vpack.c.bf16 %v1752, %v1751
        %v2864 = vpack.c.bf16 %v1754, %v1753
        %v2865 = vpack.c.bf16 %v1756, %v1755
        %v2866 = vpack.c.bf16 %v1758, %v1757
        %v2867 = vld [vmem:[%s7] sm:$0xf]
        %v2868 = vld [vmem:[%s7 + $0x4] sm:$0xf]
        %v2869 = vld [vmem:[%s7 + $0x8] sm:$0xf]
        %v2870 = vld [vmem:[%s7 + $0xc] sm:$0xf]
        %v2871 = vld [vmem:[%s7 + $0x10] sm:$0xf]
        %v2872 = vld [vmem:[%s7 + $0x14] sm:$0xf]
        %v2873 = vld [vmem:[%s7 + $0x18] sm:$0xf]
        %v2874 = vld [vmem:[%s7 + $0x1c] sm:$0xf]
        %v2875 = vld [vmem:[%s7 + $0x20] sm:$0xf]
        %v2876 = vld [vmem:[%s7 + $0x24] sm:$0xf]
        %v2877 = vld [vmem:[%s7 + $0x28] sm:$0xf]
        %v2878 = vld [vmem:[%s7 + $0x2c] sm:$0xf]
        %v2879 = vld [vmem:[%s7 + $0x30] sm:$0xf]
        %v2880 = vld [vmem:[%s7 + $0x34] sm:$0xf]
        %v2881 = vld [vmem:[%s7 + $0x38] sm:$0xf]
        %v2882 = vld [vmem:[%s7 + $0x3c] sm:$0xf]
        %v2899 = vunpack.c.l.b16 %v2867
        %v2900 = vunpack.c.l.b16 %v2868
        %v2901 = vunpack.c.l.b16 %v2869
        %v2902 = vunpack.c.l.b16 %v2870
        %v2903 = vunpack.c.l.b16 %v2871
        %v2904 = vunpack.c.l.b16 %v2872
        %v2905 = vunpack.c.l.b16 %v2873
        %v2906 = vunpack.c.l.b16 %v2874
        %v2907 = vunpack.c.l.b16 %v2875
        %v2908 = vunpack.c.l.b16 %v2876
        %v2909 = vunpack.c.l.b16 %v2877
        %v2910 = vunpack.c.l.b16 %v2878
        %v2911 = vunpack.c.l.b16 %v2879
        %v2912 = vunpack.c.l.b16 %v2880
        %v2913 = vunpack.c.l.b16 %v2881
        %v2914 = vunpack.c.l.b16 %v2882
        %v2915 = vpack.c.b16 %v2900, %v2899
        %v2916 = vpack.c.b16 %v2902, %v2901
        %v2917 = vpack.c.b16 %v2904, %v2903
        %v2918 = vpack.c.b16 %v2906, %v2905
        %v2919 = vpack.c.b16 %v2908, %v2907
        %v2920 = vpack.c.b16 %v2910, %v2909
        %v2921 = vpack.c.b16 %v2912, %v2911
        %v2922 = vpack.c.b16 %v2914, %v2913
        %2931 = vmatprep.subr.bf16.mxu0 0
        %2932 = vmatpush1.bf16.msra.mxu0 %v2915
        %2933 = vmatprep.subr.bf16.mxu0 0
        %2934 = vmatpush1.bf16.msra.mxu0 %v2916
        %2935 = vmatprep.subr.bf16.mxu0 0
        %2936 = vmatpush1.bf16.msra.mxu0 %v2917
        %2937 = vmatprep.subr.bf16.mxu0 0
        %2938 = vmatpush1.bf16.msra.mxu0 %v2918
        %2939 = vmatprep.subr.bf16.mxu0 0
        %2940 = vmatpush1.bf16.msra.mxu0 %v2919
        %2941 = vmatprep.subr.bf16.mxu0 0
        %2942 = vmatpush1.bf16.msra.mxu0 %v2920
        %2943 = vmatprep.subr.bf16.mxu0 0
        %2944 = vmatpush1.bf16.msra.mxu0 %v2921
        %2945 = vmatprep.subr.bf16.mxu0 0
        %2946 = vmatpush1.bf16.msra.mxu0 %v2922
        %2947 = vmatprep.subr.bf16.mxu0 0
        %2948 = vmatpush1.bf16.msra.mxu0 0
        %2949 = vmatprep.subr.bf16.mxu0 0
        %2950 = vmatpush1.bf16.msra.mxu0 0
        %2951 = vmatprep.subr.bf16.mxu0 0
        %2952 = vmatpush1.bf16.msra.mxu0 0
        %2953 = vmatprep.subr.bf16.mxu0 0
        %2954 = vmatpush1.bf16.msra.mxu0 0
        %2955 = vmatprep.subr.bf16.mxu0 0
        %2956 = vmatpush1.bf16.msra.mxu0 0
        %2957 = vmatprep.subr.bf16.mxu0 0
        %2958 = vmatpush1.bf16.msra.mxu0 0
        %2959 = vmatprep.subr.bf16.mxu0 0
        %2960 = vmatpush1.bf16.msra.mxu0 0
        %2961 = vmatprep.subr.bf16.mxu0 0
        %2962 = vmatpush1.bf16.msra.mxu0 0
        %2963 = vmatprep.mubr.bf16.mxu0 0
        %2964 = vmatmul.mubr.bf16.gmra.mrb[0].mxu0 %v2863
        %v2965 = vpop.f32.mrb[0].mxu0
        %v2966 = vadd.f32 0.0, %v2965
        %v2967 = vpop.f32.mrb[0].mxu0
        %v2968 = vpop.f32.mrb[0].mxu0
        %v2969 = vadd.f32 0.0, %v2968
        %v2970 = vpop.f32.mrb[0].mxu0
        %2971 = vmatprep.mubr.bf16.mxu0 0
        %2972 = vmatmul.mubr.bf16.gmra.mrb[0].mxu0 %v2864
        %v2973 = vpop.f32.mrb[0].mxu0
        %v2974 = vadd.f32 0.0, %v2973
        %v2975 = vpop.f32.mrb[0].mxu0
        %v2976 = vpop.f32.mrb[0].mxu0
        %v2977 = vadd.f32 0.0, %v2976
        %v2978 = vpop.f32.mrb[0].mxu0
        %2979 = vmatprep.mubr.bf16.mxu0 0
        %2980 = vmatmul.mubr.bf16.gmra.mrb[0].mxu0 %v2865
        %v2981 = vpop.f32.mrb[0].mxu0
        %v2982 = vadd.f32 0.0, %v2981
        %v2983 = vpop.f32.mrb[0].mxu0
        %v2984 = vpop.f32.mrb[0].mxu0
        %v2985 = vadd.f32 0.0, %v2984
        %v2986 = vpop.f32.mrb[0].mxu0
        %2987 = vmatprep.mubr.bf16.mxu0 0
        %2988 = vmatmul.mubr.bf16.gmra.mrb[0].mxu0 %v2866
        %v2989 = vpop.f32.mrb[0].mxu0
        %v2990 = vadd.f32 0.0, %v2989
        %v2991 = vpop.f32.mrb[0].mxu0
        %v2992 = vpop.f32.mrb[0].mxu0
        %v2993 = vadd.f32 0.0, %v2992
        %v2994 = vpop.f32.mrb[0].mxu0
        %2995 = vdwg.mxu0
        %v2996 = vpack.c.bf16 %v2856, %v2855
        %v2997 = vpack.c.bf16 %v2858, %v2857
        %v2998 = vpack.c.bf16 %v2860, %v2859
        %v2999 = vpack.c.bf16 %v2862, %v2861
        %v3000 = vld [vmem:[%s8] sm:$0xff]
        %v3001 = vld [vmem:[%s8 + $0x8] sm:$0xff]
        %v3002 = vld [vmem:[%s8 + $0x10] sm:$0xff]
        %v3003 = vld [vmem:[%s8 + $0x18] sm:$0xff]
        %v3004 = vld [vmem:[%s8 + $0x20] sm:$0xff]
        %v3005 = vld [vmem:[%s8 + $0x28] sm:$0xff]
        %v3006 = vld [vmem:[%s8 + $0x30] sm:$0xff]
        %v3007 = vld [vmem:[%s8 + $0x38] sm:$0xff]
        %v3008 = vld [vmem:[%s8 + $0x40] sm:$0xff]
        %v3009 = vld [vmem:[%s8 + $0x48] sm:$0xff]
        %v3010 = vld [vmem:[%s8 + $0x50] sm:$0xff]
        %v3011 = vld [vmem:[%s8 + $0x58] sm:$0xff]
        %v3012 = vld [vmem:[%s8 + $0x60] sm:$0xff]
        %v3013 = vld [vmem:[%s8 + $0x68] sm:$0xff]
        %v3014 = vld [vmem:[%s8 + $0x70] sm:$0xff]
        %v3015 = vld [vmem:[%s8 + $0x78] sm:$0xff]
        %v3032 = vunpack.c.l.b16 %v3000
        %v3033 = vunpack.c.h.b16 %v3000
        %v3034 = vunpack.c.l.b16 %v3001
        %v3035 = vunpack.c.h.b16 %v3001
        %v3036 = vunpack.c.l.b16 %v3002
        %v3037 = vunpack.c.h.b16 %v3002
        %v3038 = vunpack.c.l.b16 %v3003
        %v3039 = vunpack.c.h.b16 %v3003
        %v3040 = vunpack.c.l.b16 %v3004
        %v3041 = vunpack.c.h.b16 %v3004
        %v3042 = vunpack.c.l.b16 %v3005
        %v3043 = vunpack.c.h.b16 %v3005
        %v3044 = vunpack.c.l.b16 %v3006
        %v3045 = vunpack.c.h.b16 %v3006
        %v3046 = vunpack.c.l.b16 %v3007
        %v3047 = vunpack.c.h.b16 %v3007
        %v3048 = vunpack.c.l.b16 %v3008
        %v3049 = vunpack.c.h.b16 %v3008
        %v3050 = vunpack.c.l.b16 %v3009
        %v3051 = vunpack.c.h.b16 %v3009
        %v3052 = vunpack.c.l.b16 %v3010
        %v3053 = vunpack.c.h.b16 %v3010
        %v3054 = vunpack.c.l.b16 %v3011
        %v3055 = vunpack.c.h.b16 %v3011
        %v3056 = vunpack.c.l.b16 %v3012
        %v3057 = vunpack.c.h.b16 %v3012
        %v3058 = vunpack.c.l.b16 %v3013
        %v3059 = vunpack.c.h.b16 %v3013
        %v3060 = vunpack.c.l.b16 %v3014
        %v3061 = vunpack.c.h.b16 %v3014
        %v3062 = vunpack.c.l.b16 %v3015
        %v3063 = vunpack.c.h.b16 %v3015
        %v3064 = vpack.c.b16 %v3034, %v3032
        %v3065 = vpack.c.b16 %v3035, %v3033
        %v3066 = vpack.c.b16 %v3038, %v3036
        %v3067 = vpack.c.b16 %v3039, %v3037
        %v3068 = vpack.c.b16 %v3042, %v3040
        %v3069 = vpack.c.b16 %v3043, %v3041
        %v3070 = vpack.c.b16 %v3046, %v3044
        %v3071 = vpack.c.b16 %v3047, %v3045
        %v3072 = vpack.c.b16 %v3050, %v3048
        %v3073 = vpack.c.b16 %v3051, %v3049
        %v3074 = vpack.c.b16 %v3054, %v3052
        %v3075 = vpack.c.b16 %v3055, %v3053
        %v3076 = vpack.c.b16 %v3058, %v3056
        %v3077 = vpack.c.b16 %v3059, %v3057
        %v3078 = vpack.c.b16 %v3062, %v3060
        %v3079 = vpack.c.b16 %v3063, %v3061
        %3096 = vmatprep.subr.bf16.mxu0 %v3065
        %3097 = vmatpush1.bf16.msra.mxu0 %v3064
        %3098 = vmatprep.subr.bf16.mxu0 %v3067
        %3099 = vmatpush1.bf16.msra.mxu0 %v3066
        %3100 = vmatprep.subr.bf16.mxu0 %v3069
        %3101 = vmatpush1.bf16.msra.mxu0 %v3068
        %3102 = vmatprep.subr.bf16.mxu0 %v3071
        %3103 = vmatpush1.bf16.msra.mxu0 %v3070
        %3104 = vmatprep.subr.bf16.mxu0 %v3073
        %3105 = vmatpush1.bf16.msra.mxu0 %v3072
        %3106 = vmatprep.subr.bf16.mxu0 %v3075
        %3107 = vmatpush1.bf16.msra.mxu0 %v3074
        %3108 = vmatprep.subr.bf16.mxu0 %v3077
        %3109 = vmatpush1.bf16.msra.mxu0 %v3076
        %3110 = vmatprep.subr.bf16.mxu0 %v3079
        %3111 = vmatpush1.bf16.msra.mxu0 %v3078
        %3112 = vmatprep.subr.bf16.mxu0 0
        %3113 = vmatpush1.bf16.msra.mxu0 0
        %3114 = vmatprep.subr.bf16.mxu0 0
        %3115 = vmatpush1.bf16.msra.mxu0 0
        %3116 = vmatprep.subr.bf16.mxu0 0
        %3117 = vmatpush1.bf16.msra.mxu0 0
        %3118 = vmatprep.subr.bf16.mxu0 0
        %3119 = vmatpush1.bf16.msra.mxu0 0
        %3120 = vmatprep.subr.bf16.mxu0 0
        %3121 = vmatpush1.bf16.msra.mxu0 0
        %3122 = vmatprep.subr.bf16.mxu0 0
        %3123 = vmatpush1.bf16.msra.mxu0 0
        %3124 = vmatprep.subr.bf16.mxu0 0
        %3125 = vmatpush1.bf16.msra.mxu0 0
        %3126 = vmatprep.subr.bf16.mxu0 0
        %3127 = vmatpush1.bf16.msra.mxu0 0
        %3128 = vmatprep.mubr.bf16.mxu0 0
        %3129 = vmatmul.mubr.bf16.gmra.mrb[0].mxu0 %v2996
        %v3130 = vpop.f32.mrb[0].mxu0
        %v3131 = vadd.f32 0.0, %v3130
        %v3132 = vpop.f32.mrb[0].mxu0
        %v3133 = vadd.f32 0.0, %v3132
        %v3134 = vpop.f32.mrb[0].mxu0
        %v3135 = vadd.f32 0.0, %v3134
        %v3136 = vpop.f32.mrb[0].mxu0
        %v3137 = vadd.f32 0.0, %v3136
        %3138 = vmatprep.mubr.bf16.mxu0 0
        %3139 = vmatmul.mubr.bf16.gmra.mrb[0].mxu0 %v2997
        %v3140 = vpop.f32.mrb[0].mxu0
        %v3141 = vadd.f32 0.0, %v3140
        %v3142 = vpop.f32.mrb[0].mxu0
        %v3143 = vadd.f32 0.0, %v3142
        %v3144 = vpop.f32.mrb[0].mxu0
        %v3145 = vadd.f32 0.0, %v3144
        %v3146 = vpop.f32.mrb[0].mxu0
        %v3147 = vadd.f32 0.0, %v3146
        %3148 = vmatprep.mubr.bf16.mxu0 0
        %3149 = vmatmul.mubr.bf16.gmra.mrb[0].mxu0 %v2998
        %v3150 = vpop.f32.mrb[0].mxu0
        %v3151 = vadd.f32 0.0, %v3150
        %v3152 = vpop.f32.mrb[0].mxu0
        %v3153 = vadd.f32 0.0, %v3152
        %v3154 = vpop.f32.mrb[0].mxu0
        %v3155 = vadd.f32 0.0, %v3154
        %v3156 = vpop.f32.mrb[0].mxu0
        %v3157 = vadd.f32 0.0, %v3156
        %3158 = vmatprep.mubr.bf16.mxu0 0
        %3159 = vmatmul.mubr.bf16.gmra.mrb[0].mxu0 %v2999
        %v3160 = vpop.f32.mrb[0].mxu0
        %v3161 = vadd.f32 0.0, %v3160
        %v3162 = vpop.f32.mrb[0].mxu0
        %v3163 = vadd.f32 0.0, %v3162
        %v3164 = vpop.f32.mrb[0].mxu0
        %v3165 = vadd.f32 0.0, %v3164
        %v3166 = vpop.f32.mrb[0].mxu0
        %v3167 = vadd.f32 0.0, %v3166
        %3168 = vdwg.mxu0
        %v3169 = vpack.c.bf16 %v2969, %v2966
        %v3170 = vpack.c.bf16 %v2977, %v2974
        %v3171 = vpack.c.bf16 %v2985, %v2982
        %v3172 = vpack.c.bf16 %v2993, %v2990
        %v3177 = vunpack.c.l.b16 %v3169
        %v3178 = vunpack.c.h.b16 %v3169
        %v3179 = vunpack.c.l.b16 %v3170
        %v3180 = vunpack.c.h.b16 %v3170
        %v3181 = vunpack.c.l.b16 %v3171
        %v3182 = vunpack.c.h.b16 %v3171
        %v3183 = vunpack.c.l.b16 %v3172
        %v3184 = vunpack.c.h.b16 %v3172
        %v3185 = vpack.c.b16 %v3177, %v3177
        %v3186 = vpack.c.b16 %v3178, %v3178
        %v3187 = vpack.c.b16 %v3179, %v3179
        %v3188 = vpack.c.b16 %v3180, %v3180
        %v3189 = vpack.c.b16 %v3181, %v3181
        %v3190 = vpack.c.b16 %v3182, %v3182
        %v3191 = vpack.c.b16 %v3183, %v3183
        %v3192 = vpack.c.b16 %v3184, %v3184
        %3201 = vst [vmem:[%s443] sm:$0xf] %v3185
        %3202 = vst [vmem:[%s443 + $0x4] sm:$0xf] %v3186
        %3203 = vst [vmem:[%s443 + $0x8] sm:$0xf] %v3187
        %3204 = vst [vmem:[%s443 + $0xc] sm:$0xf] %v3188
        %3205 = vst [vmem:[%s443 + $0x10] sm:$0xf] %v3189
        %3206 = vst [vmem:[%s443 + $0x14] sm:$0xf] %v3190
        %3207 = vst [vmem:[%s443 + $0x18] sm:$0xf] %v3191
        %3208 = vst [vmem:[%s443 + $0x1c] sm:$0xf] %v3192
        %v3209 = vpack.c.bf16 %v3135, %v3131
        %v3210 = vpack.c.bf16 %v3145, %v3141
        %v3211 = vpack.c.bf16 %v3155, %v3151
        %v3212 = vpack.c.bf16 %v3165, %v3161
        %v3217 = vunpack.c.l.b16 %v3209
        %v3218 = vunpack.c.h.b16 %v3209
        %v3219 = vunpack.c.l.b16 %v3210
        %v3220 = vunpack.c.h.b16 %v3210
        %v3221 = vunpack.c.l.b16 %v3211
        %v3222 = vunpack.c.h.b16 %v3211
        %v3223 = vunpack.c.l.b16 %v3212
        %v3224 = vunpack.c.h.b16 %v3212
        %v3225 = vpack.c.b16 %v3217, %v3217
        %v3226 = vpack.c.b16 %v3218, %v3218
        %v3227 = vpack.c.b16 %v3219, %v3219
        %v3228 = vpack.c.b16 %v3220, %v3220
        %v3229 = vpack.c.b16 %v3221, %v3221
        %v3230 = vpack.c.b16 %v3222, %v3222
        %v3231 = vpack.c.b16 %v3223, %v3223
        %v3232 = vpack.c.b16 %v3224, %v3224
        %3241 = vst [vmem:[%s450] sm:$0xf] %v3225
        %3242 = vst [vmem:[%s450 + $0x4] sm:$0xf] %v3226
        %3243 = vst [vmem:[%s450 + $0x8] sm:$0xf] %v3227
        %3244 = vst [vmem:[%s450 + $0xc] sm:$0xf] %v3228
        %3245 = vst [vmem:[%s450 + $0x10] sm:$0xf] %v3229
        %3246 = vst [vmem:[%s450 + $0x14] sm:$0xf] %v3230
        %3247 = vst [vmem:[%s450 + $0x18] sm:$0xf] %v3231
        %3248 = vst [vmem:[%s450 + $0x1c] sm:$0xf] %v3232
        %v3249 = vpack.c.bf16 %v3137, %v3133
        %v3250 = vpack.c.bf16 %v3147, %v3143
        %v3251 = vpack.c.bf16 %v3157, %v3153
        %v3252 = vpack.c.bf16 %v3167, %v3163
        %v3257 = vunpack.c.l.b16 %v3249
        %v3258 = vunpack.c.h.b16 %v3249
        %v3259 = vunpack.c.l.b16 %v3250
        %v3260 = vunpack.c.h.b16 %v3250
        %v3261 = vunpack.c.l.b16 %v3251
        %v3262 = vunpack.c.h.b16 %v3251
        %v3263 = vunpack.c.l.b16 %v3252
        %v3264 = vunpack.c.h.b16 %v3252
        %v3265 = vpack.c.b16 %v3257, %v3257
        %v3266 = vpack.c.b16 %v3258, %v3258
        %v3267 = vpack.c.b16 %v3259, %v3259
        %v3268 = vpack.c.b16 %v3260, %v3260
        %v3269 = vpack.c.b16 %v3261, %v3261
        %v3270 = vpack.c.b16 %v3262, %v3262
        %v3271 = vpack.c.b16 %v3263, %v3263
        %v3272 = vpack.c.b16 %v3264, %v3264
        %3281 = vst [vmem:[%s457] sm:$0xf] %v3265
        %3282 = vst [vmem:[%s457 + $0x4] sm:$0xf] %v3266
        %3283 = vst [vmem:[%s457 + $0x8] sm:$0xf] %v3267
        %3284 = vst [vmem:[%s457 + $0xc] sm:$0xf] %v3268
        %3285 = vst [vmem:[%s457 + $0x10] sm:$0xf] %v3269
        %3286 = vst [vmem:[%s457 + $0x14] sm:$0xf] %v3270
        %3287 = vst [vmem:[%s457 + $0x18] sm:$0xf] %v3271
        %3288 = vst [vmem:[%s457 + $0x1c] sm:$0xf] %v3272
        %v3293 = vunpack.c.l.b16 %v2996
        %v3294 = vunpack.c.h.b16 %v2996
        %v3295 = vunpack.c.l.b16 %v2997
        %v3296 = vunpack.c.h.b16 %v2997
        %v3297 = vunpack.c.l.b16 %v2998
        %v3298 = vunpack.c.h.b16 %v2998
        %v3299 = vunpack.c.l.b16 %v2999
        %v3300 = vunpack.c.h.b16 %v2999
        %v3301 = vpack.c.b16 %v3293, %v3293
        %v3302 = vpack.c.b16 %v3294, %v3294
        %v3303 = vpack.c.b16 %v3295, %v3295
        %v3304 = vpack.c.b16 %v3296, %v3296
        %v3305 = vpack.c.b16 %v3297, %v3297
        %v3306 = vpack.c.b16 %v3298, %v3298
        %v3307 = vpack.c.b16 %v3299, %v3299
        %v3308 = vpack.c.b16 %v3300, %v3300
        %3317 = vst [vmem:[%s464] sm:$0xf] %v3301
        %3318 = vst [vmem:[%s464 + $0x4] sm:$0xf] %v3302
        %3319 = vst [vmem:[%s464 + $0x8] sm:$0xf] %v3303
        %3320 = vst [vmem:[%s464 + $0xc] sm:$0xf] %v3304
        %3321 = vst [vmem:[%s464 + $0x10] sm:$0xf] %v3305
        %3322 = vst [vmem:[%s464 + $0x14] sm:$0xf] %v3306
        %3323 = vst [vmem:[%s464 + $0x18] sm:$0xf] %v3307
        %3324 = vst [vmem:[%s464 + $0x1c] sm:$0xf] %v3308
        %s3325 = sand.u32 %s251, 1
        %s3326 = scalar_lea.sflag [#allocation3], %s3325
        %s3327 = sand.u32 %s251, 1
        %s3328 = smul.addr %s3327, 32
        %s3329 = scalar_lea.vmem [#allocation2], %s3328
        %s3330 = sand.u32 %s33, 1
        %s3331 = scalar_lea.sflag [#allocation5], %s3330
        %s3332 = sand.u32 %s279, 1
        %s3333 = smul.addr %s3332, 32
        %s3334 = scalar_lea.vmem [#allocation4], %s3333
        %s3335 = sand.u32 %s33, 1
        %s3336 = scalar_lea.sflag [#allocation5], %s3335
        %s3337 = sand.u32 %s307, 1
        %s3338 = smul.addr %s3337, 32
        %s3339 = scalar_lea.vmem [#allocation6], %s3338
        %s3340 = sand.u32 %s335, 1
        %s3341 = scalar_lea.sflag [#allocation8], %s3340
        %s3342 = sand.u32 %s335, 1
        %s3343 = smul.addr %s3342, 32
        %s3344 = scalar_lea.vmem [#allocation7], %s3343
        // Predicated region
        $region57: #{tpu_custom_call.1} parent=55 // pred_check
          %p3345 = pneg %p261
        $region58: #{tpu_custom_call.1} parent=55 // pred_check_branch
          %3347 = sbr.rel (%p3345) target = $region60
        $region59: #{tpu_custom_call.1} parent=55 // pred_region
          %s3348 = smul.u32 8, %s38
          %s3350 = ssub.s32 512, 512
          %3351 = vsyncadd %s3326, %s3350
          %s3352 = smul.addr %s37, 8
          %s3353 = sadd.s32 %s3348, %s3352
          %s3354 = smul.addr %s3353, 64
          %s3355 = scalar_lea.hbm %s9, %s3354
          %s3356 = sshll.u32 %s3329, 4
          %s3357 = int_to_ptr.vmem [resolvable:$true] %s3356
          %3362 = dma.vmem_to_hbm [thread:$0]  %s3357, 512, %s3355, %s3326, 64, 64, 4
        $region60: #{tpu_custom_call.1} parent=55 // pred_fallthru
          _
        // Predicated region
        $region61: #{tpu_custom_call.1} parent=55 // pred_check
          %p3363 = pneg %p289
        $region62: #{tpu_custom_call.1} parent=55 // pred_check_branch
          %3365 = sbr.rel (%p3363) target = $region64
        $region63: #{tpu_custom_call.1} parent=55 // pred_region
          %s3366 = smul.u32 8, %s38
          %s3368 = ssub.s32 512, 512
          %3369 = vsyncadd %s3331, %s3368
          %s3370 = smul.addr %s37, 8
          %s3371 = sadd.s32 %s3366, %s3370
          %s3372 = smul.addr %s3371, 64
          %s3373 = scalar_lea.hbm %s10, %s3372
          %s3374 = sshll.u32 %s3334, 4
          %s3375 = int_to_ptr.vmem [resolvable:$true] %s3374
          %3380 = dma.vmem_to_hbm [thread:$0]  %s3375, 512, %s3373, %s3331, 64, 64, 4
        $region64: #{tpu_custom_call.1} parent=55 // pred_fallthru
          _
        // Predicated region
        $region65: #{tpu_custom_call.1} parent=55 // pred_check
          %p3381 = pneg %p317
        $region66: #{tpu_custom_call.1} parent=55 // pred_check_branch
          %3383 = sbr.rel (%p3381) target = $region68
        $region67: #{tpu_custom_call.1} parent=55 // pred_region
          %s3384 = smul.u32 8, %s38
          %s3386 = ssub.s32 512, 512
          %3387 = vsyncadd %s3336, %s3386
          %s3388 = smul.addr %s37, 8
          %s3389 = sadd.s32 %s3384, %s3388
          %s3390 = smul.addr %s3389, 64
          %s3391 = scalar_lea.hbm %s11, %s3390
          %s3392 = sshll.u32 %s3339, 4
          %s3393 = int_to_ptr.vmem [resolvable:$true] %s3392
          %3398 = dma.vmem_to_hbm [thread:$0]  %s3393, 512, %s3391, %s3336, 64, 64, 4
        $region68: #{tpu_custom_call.1} parent=55 // pred_fallthru
          _
        // Predicated region
        $region69: #{tpu_custom_call.1} parent=55 // pred_check
          %p3399 = pneg %p345
        $region70: #{tpu_custom_call.1} parent=55 // pred_check_branch
          %3401 = sbr.rel (%p3399) target = $region72
        $region71: #{tpu_custom_call.1} parent=55 // pred_region
          %s3402 = smul.u32 8, %s38
          %s3404 = ssub.s32 512, 512
          %3405 = vsyncadd %s3341, %s3404
          %s3406 = smul.addr %s37, 8
          %s3407 = sadd.s32 %s3402, %s3406
          %s3408 = smul.addr %s3407, 64
          %s3409 = scalar_lea.hbm %s12, %s3408
          %s3410 = sshll.u32 %s3344, 4
          %s3411 = int_to_ptr.vmem [resolvable:$true] %s3410
          %3416 = dma.vmem_to_hbm [thread:$0]  %s3411, 512, %s3409, %s3341, 64, 64, 4
        $region72: #{tpu_custom_call.1} parent=55 // pred_fallthru
          _
      $region56: #{tpu_custom_call.1} parent=5 // pred_fallthru
        _
      %p3417 = scmp.le.s32.totalorder 2, %s28
      // Predicated region
      $region73: #{tpu_custom_call.1} parent=5 // pred_check
        %p3418 = pneg %p3417
      $region74: #{tpu_custom_call.1} parent=5 // pred_check_branch
        %3420 = sbr.rel (%p3418) target = $region76
      $region75: #{tpu_custom_call.1} parent=5 // pred_region
        %s3421 = ssub.s32 %s28, 2
        // Predicated region
        $region77: #{tpu_custom_call.1} parent=75 // pred_check
          %p3422 = pneg %p267
        $region78: #{tpu_custom_call.1} parent=75 // pred_check_branch
          %3424 = sbr.rel (%p3422) target = $region80
        $region79: #{tpu_custom_call.1} parent=75 // pred_region
          %s3425 = sand.u32 %s252, 1
          %s3426 = scalar_lea.sflag [#allocation3], %s3425
          %s3427 = sand.u32 %s252, 1
          %s3428 = smul.addr %s3427, 32
          %s3429 = scalar_lea.vmem [#allocation2], %s3428
          %3430 = dma.done %s3426, 512
        $region80: #{tpu_custom_call.1} parent=75 // pred_fallthru
          _
        // Predicated region
        $region81: #{tpu_custom_call.1} parent=75 // pred_check
          %p3431 = pneg %p295
        $region82: #{tpu_custom_call.1} parent=75 // pred_check_branch
          %3433 = sbr.rel (%p3431) target = $region84
        $region83: #{tpu_custom_call.1} parent=75 // pred_region
          %s3434 = sand.u32 %s34, 1
          %s3435 = scalar_lea.sflag [#allocation5], %s3434
          %s3436 = sand.u32 %s280, 1
          %s3437 = smul.addr %s3436, 32
          %s3438 = scalar_lea.vmem [#allocation4], %s3437
          %3439 = dma.done %s3435, 512
        $region84: #{tpu_custom_call.1} parent=75 // pred_fallthru
          _
        // Predicated region
        $region85: #{tpu_custom_call.1} parent=75 // pred_check
          %p3440 = pneg %p323
        $region86: #{tpu_custom_call.1} parent=75 // pred_check_branch
          %3442 = sbr.rel (%p3440) target = $region88
        $region87: #{tpu_custom_call.1} parent=75 // pred_region
          %s3443 = sand.u32 %s34, 1
          %s3444 = scalar_lea.sflag [#allocation5], %s3443
          %s3445 = sand.u32 %s308, 1
          %s3446 = smul.addr %s3445, 32
          %s3447 = scalar_lea.vmem [#allocation6], %s3446
          %3448 = dma.done %s3444, 512
        $region88: #{tpu_custom_call.1} parent=75 // pred_fallthru
          _
        // Predicated region
        $region89: #{tpu_custom_call.1} parent=75 // pred_check
          %p3449 = pneg %p351
        $region90: #{tpu_custom_call.1} parent=75 // pred_check_branch
          %3451 = sbr.rel (%p3449) target = $region92
        $region91: #{tpu_custom_call.1} parent=75 // pred_region
          %s3452 = sand.u32 %s336, 1
          %s3453 = scalar_lea.sflag [#allocation8], %s3452
          %s3454 = sand.u32 %s336, 1
          %s3455 = smul.addr %s3454, 32
          %s3456 = scalar_lea.vmem [#allocation7], %s3455
          %3457 = dma.done %s3453, 512
        $region92: #{tpu_custom_call.1} parent=75 // pred_fallthru
          _
      $region76: #{tpu_custom_call.1} parent=5 // pred_fallthru
        _
    $region6: #{tpu_custom_call.1} parent=1 // loop_footer
      %s32 = sadd.s32 1, %s28
    $region7: #{tpu_custom_call.1} parent=1 // loop_footer_branch
      %27 = sbr.rel target = $region3
    $region8: #{tpu_custom_call.1} parent=1 // loop_exit
      _
    %3458 = vsyncpa [#allocation3], 1
    %s3459 = scalar_lea.sflag [#allocation3], 1
    %3460 = vsyncpa %s3459, 1
    %3461 = vsyncpa [#allocation5], 1
    %s3462 = scalar_lea.sflag [#allocation5], 1
    %3463 = vsyncpa %s3462, 1
    %3464 = vsyncpa [#allocation8], 1
    %s3465 = scalar_lea.sflag [#allocation8], 1
    %3466 = vsyncpa %s3465, 1

</llo_original>
